<compile_context>
chip_gen: v7x
topology: tpu7x:2x2x1
jax: 0.10.0
libtpu: 0.0.40
codegen_flags: <defaults>
</compile_context>

<pallas_src>
import functools

import jax
import jax.numpy as jnp
from jax import lax
from jax.experimental import pallas as pl
from jax.experimental.pallas import tpu as pltpu

EPS = 1e-5
LANE = 128


# ----------------------------------------------------------------------------
# in-kernel helpers
# ----------------------------------------------------------------------------
def _conv3x3_im2col(z_hwc, w_ref, pad_ref, H, W):
    """3x3 / pad-1 conv as a single deep-K bf16 matmul.

    z_hwc: (H, W, Cin_p) f32 activation for this image.
    w_ref: (9*Cin_p, Cout_p) bf16 im2col-packed weights.
    pad_ref: (H+2, W+2, Cin_p) f32 scratch whose 1-pixel border is already zero.
    Returns (H*W, Cout_p) f32.
    """
    Cin = z_hwc.shape[-1]
    # only the interior is rewritten per grid step; the halo stays zero.
    pad_ref[1:H + 1, 1:W + 1, :] = z_hwc
    cols = [pad_ref[ky:ky + H, kx:kx + W, :].reshape(H * W, Cin)
            for ky in range(3) for kx in range(3)]
    patches = jnp.concatenate(cols, axis=-1).astype(jnp.bfloat16)   # (H*W, 9*Cin)
    return jnp.dot(patches, w_ref[...], preferred_element_type=jnp.float32)


def _accum_stats(stats_ref, y2d):
    """Accumulate per-channel sum / sum-of-squares into the resident (2, C) output."""
    stats_ref[...] += jnp.concatenate(
        [jnp.sum(y2d, axis=0, keepdims=True),
         jnp.sum(y2d * y2d, axis=0, keepdims=True)], axis=0)


# ----------------------------------------------------------------------------
# kernels
# ----------------------------------------------------------------------------
def _conv1_stats_kernel(H, W, x_ref, w_ref, y_ref, stats_ref, pad_ref):
    @pl.when(pl.program_id(0) == 0)
    def _init():
        stats_ref[...] = jnp.zeros_like(stats_ref)
        pad_ref[...] = jnp.zeros_like(pad_ref)       # zero the halo once

    Cin = x_ref.shape[-1]
    x = x_ref[...].reshape(H, W, Cin)
    y = _conv3x3_im2col(x, w_ref, pad_ref, H, W)     # (H*W, Cp) f32
    y_ref[...] = y.reshape(y_ref.shape)
    _accum_stats(stats_ref, y)


def _bn_relu_conv2_stats_kernel(H, W, y1_ref, aff_ref, w_ref, y2_ref, stats_ref,
                                pad_ref):
    @pl.when(pl.program_id(0) == 0)
    def _init():
        stats_ref[...] = jnp.zeros_like(stats_ref)
        pad_ref[...] = jnp.zeros_like(pad_ref)       # zero the halo once

    Cp = y2_ref.shape[-1]
    y1 = y1_ref[...].reshape(H * W, Cp)
    scale = aff_ref[0:1, :]
    shift = aff_ref[1:2, :]
    z = jnp.maximum(y1 * scale + shift, 0.0)         # folded BN1 + ReLU
    y = _conv3x3_im2col(z.reshape(H, W, Cp), w_ref, pad_ref, H, W)
    y2_ref[...] = y.reshape(y2_ref.shape)
    _accum_stats(stats_ref, y)


def _bn_add_relu_kernel(H, W, y2_ref, x_ref, aff_ref, out_ref):
    Cp = out_ref.shape[-1]
    y2 = y2_ref[...].reshape(H * W, Cp)
    x = x_ref[...].reshape(H * W, Cp)
    scale = aff_ref[0:1, :]
    shift = aff_ref[1:2, :]
    out = jnp.maximum(y2 * scale + shift + x, 0.0)   # folded BN2 + residual + ReLU
    out_ref[...] = out.reshape(out_ref.shape)


# ----------------------------------------------------------------------------
# host-side wrapper
# ----------------------------------------------------------------------------
def _round_up(x, m):
    return (x + m - 1) // m * m


def _fold_bn(stats, count, gamma, beta):
    """Fold training-mode BN (batch stats, biased var) into scale/shift (2, Cp)."""
    mean = stats[0] / count
    var = stats[1] / count - mean * mean
    scale = gamma * lax.rsqrt(var + EPS)
    shift = beta - mean * scale
    return jnp.stack([scale, shift], axis=0).astype(jnp.float32)


@jax.jit
def block_forward(x_nchw, params):
    N, C, H, W = x_nchw.shape
    Cout = params["w1"].shape[0]
    assert C == Cout, ("identity residual requires in_channels == out_channels "
                       "(stride=1, i_downsample=None)")
    Cp = _round_up(C, LANE)                          # pad channels to lane width

    # --- layout plumbing (XLA): NCHW -> NHWC, channel pad, im2col weight pack
    x = jnp.transpose(x_nchw, (0, 2, 3, 1))
    x = jnp.pad(x, ((0, 0), (0, 0), (0, 0), (0, Cp - C)))          # (N,H,W,Cp) f32

    def pack_w(w_oihw):   # (Cout,Cin,3,3) -> (9*Cp, Cp) bf16, (ky,kx,cin) along K
        w = jnp.transpose(w_oihw, (2, 3, 1, 0))
        w = jnp.pad(w, ((0, 0), (0, 0), (0, Cp - C), (0, Cp - C)))
        return w.reshape(9 * Cp, Cp).astype(jnp.bfloat16)

    w1 = pack_w(params["w1"])
    w2 = pack_w(params["w2"])
    # padded channels get gamma=0 / beta=0 -> stay exactly zero end-to-end.
    gamma = jnp.pad(params["bn2_g"], (0, Cp - C))
    beta = jnp.pad(params["bn2_b"], (0, Cp - C))

    count = float(N * H * W)
    row_block = (1, H, W, Cp)
    img_map = lambda n: (n, 0, 0, 0)
    const2_map = lambda n: (0, 0)
    vmem_limit = 32 * 1024 * 1024
    conv_flops = 2 * N * H * W * 9 * Cp * Cp
    act_bytes = N * H * W * Cp * 4
    w_bytes = 9 * Cp * Cp * 2

    # --- pass 1: conv1 (deep-K bf16 im2col matmul) + BN1 stat reduction -------
    y1, s1 = pl.pallas_call(
        functools.partial(_conv1_stats_kernel, H, W),
        grid=(N,),
        in_specs=[pl.BlockSpec(row_block, img_map),
                  pl.BlockSpec((9 * Cp, Cp), const2_map)],
        out_specs=[pl.BlockSpec(row_block, img_map),
                   pl.BlockSpec((2, Cp), const2_map)],
        out_shape=[jax.ShapeDtypeStruct((N, H, W, Cp), jnp.float32),
                   jax.ShapeDtypeStruct((2, Cp), jnp.float32)],
        scratch_shapes=[pltpu.VMEM((H + 2, W + 2, Cp), jnp.float32)],
        compiler_params=pltpu.CompilerParams(
            dimension_semantics=("arbitrary",),      # stats accumulator resident
            vmem_limit_bytes=vmem_limit),
        cost_estimate=pl.CostEstimate(flops=conv_flops, transcendentals=0,
                                      bytes_accessed=2 * act_bytes + w_bytes),
    )(x, w1)
    aff1 = _fold_bn(s1, count, gamma, beta)

    # --- pass 2: folded BN1 + ReLU, conv2, + BN2 stat reduction ---------------
    y2, s2 = pl.pallas_call(
        functools.partial(_bn_relu_conv2_stats_kernel, H, W),
        grid=(N,),
        in_specs=[pl.BlockSpec(row_block, img_map),
                  pl.BlockSpec((2, Cp), const2_map),
                  pl.BlockSpec((9 * Cp, Cp), const2_map)],
        out_specs=[pl.BlockSpec(row_block, img_map),
                   pl.BlockSpec((2, Cp), const2_map)],
        out_shape=[jax.ShapeDtypeStruct((N, H, W, Cp), jnp.float32),
                   jax.ShapeDtypeStruct((2, Cp), jnp.float32)],
        scratch_shapes=[pltpu.VMEM((H + 2, W + 2, Cp), jnp.float32)],
        compiler_params=pltpu.CompilerParams(
            dimension_semantics=("arbitrary",),
            vmem_limit_bytes=vmem_limit),
        cost_estimate=pl.CostEstimate(flops=conv_flops, transcendentals=0,
                                      bytes_accessed=2 * act_bytes + w_bytes),
    )(y1, aff1, w2)
    aff2 = _fold_bn(s2, count, gamma, beta)

    # --- pass 3: folded BN2 + residual add + ReLU (parallel -> v7x dual TCs) --
    out = pl.pallas_call(
        functools.partial(_bn_add_relu_kernel, H, W),
        grid=(N,),
        in_specs=[pl.BlockSpec(row_block, img_map),
                  pl.BlockSpec(row_block, img_map),
                  pl.BlockSpec((2, Cp), const2_map)],
        out_specs=pl.BlockSpec(row_block, img_map),
        out_shape=jax.ShapeDtypeStruct((N, H, W, Cp), jnp.float32),
        compiler_params=pltpu.CompilerParams(
            dimension_semantics=("parallel",),
            vmem_limit_bytes=vmem_limit),
        cost_estimate=pl.CostEstimate(flops=3 * N * H * W * Cp, transcendentals=0,
                                      bytes_accessed=3 * act_bytes),
    )(y2, x, aff2)

    # strip channel padding, back to NCHW
    return jnp.transpose(out[..., :C], (0, 3, 1, 2))


# ----------------------------------------------------------------------------
# params + pure-XLA reference
# ----------------------------------------------------------------------------
def init_params(key, in_channels, out_channels):
    ks = jax.random.split(key, 6)
    return {
        # Conv2d(..., bias=False) weights, PyTorch OIHW layout
        "w1": jax.random.normal(ks[0], (out_channels, in_channels, 3, 3), jnp.float32) * 0.1,
        "w2": jax.random.normal(ks[1], (out_channels, out_channels, 3, 3), jnp.float32) * 0.1,
        # batch_norm1 exists in __init__ but forward() never uses it (kept for fidelity)
        "bn1_g": 1.0 + 0.1 * jax.random.normal(ks[2], (out_channels,), jnp.float32),
        "bn1_b": 0.1 * jax.random.normal(ks[3], (out_channels,), jnp.float32),
        # forward() applies batch_norm2 after BOTH convs
        "bn2_g": 1.0 + 0.1 * jax.random.normal(ks[4], (out_channels,), jnp.float32),
        "bn2_b": 0.1 * jax.random.normal(ks[5], (out_channels,), jnp.float32),
    }


def ref_forward(x_nchw, params):
    """Pure-XLA reference mirroring Block.forward (training-mode BN; conv inputs
    rounded to bf16 with f32 accumulation, matching the kernel's MXU dtype)."""
    def conv3x3(x, w):
        return lax.conv_general_dilated(
            x.astype(jnp.bfloat16), w.astype(jnp.bfloat16),
            window_strides=(1, 1), padding=[(1, 1), (1, 1)],
            dimension_numbers=("NCHW", "OIHW", "NCHW"),
            preferred_element_type=jnp.float32)

    def bn_train(x, g, b):
        m = jnp.mean(x, axis=(0, 2, 3), keepdims=True)
        v = jnp.mean((x - m) ** 2, axis=(0, 2, 3), keepdims=True)
        return (x - m) * lax.rsqrt(v + EPS) * g.reshape(1, -1, 1, 1) + b.reshape(1, -1, 1, 1)

    g, b = params["bn2_g"], params["bn2_b"]
    identity = x_nchw
    y = jax.nn.relu(bn_train(conv3x3(x_nchw, params["w1"]), g, b))
    y = bn_train(conv3x3(y, params["w2"]), g, b)
    return jax.nn.relu(y + identity)


if __name__ == "__main__":
    # Block(in_channels=16, out_channels=16): stride=1, i_downsample=None,
    # so the identity residual is valid.
    N, C, H, W = 2, 16, 16, 16

    key = jax.random.PRNGKey(0)
    kx, kp = jax.random.split(key)
    x = jax.random.normal(kx, (N, C, H, W), jnp.float32)
    params = init_params(kp, C, C)

    out = jax.block_until_ready(block_forward(x, params))
    ref = jax.block_until_ready(ref_forward(x, params))

    assert out.shape == ref.shape == (N, C, H, W)
    max_diff = jnp.max(jnp.abs(out - ref))
    assert jnp.allclose(out, ref, atol=5e-3, rtol=5e-3), f"max abs diff = {max_diff}"

    print("KERNEL_OK")
</pallas_src>

<mosaic_0001>
module attributes {stable_mosaic.version = 11 : i64} {
  func.func @_bn_relu_conv2_stats_kernel(%arg0: i32, %arg1: memref<1x16x16x128xf32, #tpu.memory_space<vmem>>, %arg2: memref<2x128xf32, #tpu.memory_space<vmem>>, %arg3: memref<1152x128xbf16, #tpu.memory_space<vmem>>, %arg4: memref<1x16x16x128xf32, #tpu.memory_space<vmem>>, %arg5: memref<2x128xf32, #tpu.memory_space<vmem>>, %arg6: memref<18x18x128xf32, #tpu.memory_space<vmem>>) attributes {dimension_semantics = [#tpu.dimension_semantics<arbitrary>], iteration_bounds = array<i64: 2>, scalar_prefetch = 0 : i64, scratch_operands = 1 : i64, tpu.core_type = #tpu.core_type<tc>, window_params = [{transform_indices = @transform_0, window_bounds = array<i64: 1, 16, 16, 128>}, {pipeline_mode = #tpu.pipeline_mode<synchronous>, transform_indices = @transform_1, window_bounds = array<i64: 2, 128>}, {pipeline_mode = #tpu.pipeline_mode<synchronous>, transform_indices = @transform_2, window_bounds = array<i64: 1152, 128>}, {transform_indices = @transform_3, window_bounds = array<i64: 1, 16, 16, 128>}, {pipeline_mode = #tpu.pipeline_mode<synchronous>, transform_indices = @transform_4, window_bounds = array<i64: 2, 128>}]} {
    %c0_i32 = arith.constant 0 : i32
    %0 = arith.cmpi eq, %arg0, %c0_i32 : i32
    %1 = arith.extui %0 : i1 to i32
    %c0_i32_0 = arith.constant 0 : i32
    %2 = arith.cmpi ne, %1, %c0_i32_0 : i32
    scf.if %2 {
      %cst_49 = arith.constant 0.000000e+00 : f32
      %48 = vector.broadcast %cst_49 : f32 to vector<2x128xf32>
      %c0_50 = arith.constant 0 : index
      %c0_51 = arith.constant 0 : index
      %49 = vector.load %arg5[%c0_50, %c0_51] : memref<2x128xf32, #tpu.memory_space<vmem>>, vector<2x128xf32>
      tpu.vector_store %arg5[%c0_50, %c0_51], %48 {strides = array<i32>} : memref<2x128xf32, #tpu.memory_space<vmem>>, vector<2x128xf32>,
      %cst_52 = arith.constant 0.000000e+00 : f32
      %50 = vector.broadcast %cst_52 : f32 to vector<18x18x128xf32>
      %c0_53 = arith.constant 0 : index
      %c0_54 = arith.constant 0 : index
      %c0_55 = arith.constant 0 : index
      %51 = vector.load %arg6[%c0_53, %c0_54, %c0_55] : memref<18x18x128xf32, #tpu.memory_space<vmem>>, vector<18x18x128xf32>
      tpu.vector_store %arg6[%c0_53, %c0_54, %c0_55], %50 {strides = array<i32>} : memref<18x18x128xf32, #tpu.memory_space<vmem>>, vector<18x18x128xf32>,
    } else {
    }
    %c0 = arith.constant 0 : index
    %c0_1 = arith.constant 0 : index
    %c0_2 = arith.constant 0 : index
    %c0_3 = arith.constant 0 : index
    %3 = vector.load %arg1[%c0, %c0_1, %c0_2, %c0_3] : memref<1x16x16x128xf32, #tpu.memory_space<vmem>>, vector<1x16x16x128xf32>
    %4 = vector.shape_cast %3 : vector<1x16x16x128xf32> to vector<256x128xf32>
    %c0_4 = arith.constant 0 : index
    %c0_5 = arith.constant 0 : index
    %5 = vector.load %arg2[%c0_4, %c0_5] : memref<2x128xf32, #tpu.memory_space<vmem>>, vector<1x128xf32>
    %c1 = arith.constant 1 : index
    %c0_6 = arith.constant 0 : index
    %6 = vector.load %arg2[%c1, %c0_6] : memref<2x128xf32, #tpu.memory_space<vmem>>, vector<1x128xf32>
    %7 = vector.broadcast %5 : vector<1x128xf32> to vector<256x128xf32>
    %8 = arith.mulf %4, %7 : vector<256x128xf32>
    %9 = vector.broadcast %6 : vector<1x128xf32> to vector<256x128xf32>
    %10 = arith.addf %8, %9 : vector<256x128xf32>
    %cst = arith.constant 0.000000e+00 : f32
    %11 = vector.broadcast %cst : f32 to vector<256x128xf32>
    %12 = arith.maximumf %10, %11 : vector<256x128xf32>
    %13 = vector.shape_cast %12 : vector<256x128xf32> to vector<16x16x128xf32>
    %c1_7 = arith.constant 1 : index
    %c1_8 = arith.constant 1 : index
    %c0_9 = arith.constant 0 : index
    %14 = vector.load %arg6[%c1_7, %c1_8, %c0_9] : memref<18x18x128xf32, #tpu.memory_space<vmem>>, vector<16x16x128xf32>
    tpu.vector_store %arg6[%c1_7, %c1_8, %c0_9], %13 {strides = array<i32>} : memref<18x18x128xf32, #tpu.memory_space<vmem>>, vector<16x16x128xf32>,
    %c0_10 = arith.constant 0 : index
    %c0_11 = arith.constant 0 : index
    %c0_12 = arith.constant 0 : index
    %15 = vector.load %arg6[%c0_10, %c0_11, %c0_12] : memref<18x18x128xf32, #tpu.memory_space<vmem>>, vector<16x16x128xf32>
    %16 = vector.shape_cast %15 : vector<16x16x128xf32> to vector<256x128xf32>
    %c0_13 = arith.constant 0 : index
    %c1_14 = arith.constant 1 : index
    %c0_15 = arith.constant 0 : index
    %17 = vector.load %arg6[%c0_13, %c1_14, %c0_15] : memref<18x18x128xf32, #tpu.memory_space<vmem>>, vector<16x16x128xf32>
    %18 = vector.shape_cast %17 : vector<16x16x128xf32> to vector<256x128xf32>
    %c0_16 = arith.constant 0 : index
    %c2 = arith.constant 2 : index
    %c0_17 = arith.constant 0 : index
    %19 = vector.load %arg6[%c0_16, %c2, %c0_17] : memref<18x18x128xf32, #tpu.memory_space<vmem>>, vector<16x16x128xf32>
    %20 = vector.shape_cast %19 : vector<16x16x128xf32> to vector<256x128xf32>
    %c1_18 = arith.constant 1 : index
    %c0_19 = arith.constant 0 : index
    %c0_20 = arith.constant 0 : index
    %21 = vector.load %arg6[%c1_18, %c0_19, %c0_20] : memref<18x18x128xf32, #tpu.memory_space<vmem>>, vector<16x16x128xf32>
    %22 = vector.shape_cast %21 : vector<16x16x128xf32> to vector<256x128xf32>
    %c1_21 = arith.constant 1 : index
    %c1_22 = arith.constant 1 : index
    %c0_23 = arith.constant 0 : index
    %23 = vector.load %arg6[%c1_21, %c1_22, %c0_23] : memref<18x18x128xf32, #tpu.memory_space<vmem>>, vector<16x16x128xf32>
    %24 = vector.shape_cast %23 : vector<16x16x128xf32> to vector<256x128xf32>
    %c1_24 = arith.constant 1 : index
    %c2_25 = arith.constant 2 : index
    %c0_26 = arith.constant 0 : index
    %25 = vector.load %arg6[%c1_24, %c2_25, %c0_26] : memref<18x18x128xf32, #tpu.memory_space<vmem>>, vector<16x16x128xf32>
    %26 = vector.shape_cast %25 : vector<16x16x128xf32> to vector<256x128xf32>
    %c2_27 = arith.constant 2 : index
    %c0_28 = arith.constant 0 : index
    %c0_29 = arith.constant 0 : index
    %27 = vector.load %arg6[%c2_27, %c0_28, %c0_29] : memref<18x18x128xf32, #tpu.memory_space<vmem>>, vector<16x16x128xf32>
    %28 = vector.shape_cast %27 : vector<16x16x128xf32> to vector<256x128xf32>
    %c2_30 = arith.constant 2 : index
    %c1_31 = arith.constant 1 : index
    %c0_32 = arith.constant 0 : index
    %29 = vector.load %arg6[%c2_30, %c1_31, %c0_32] : memref<18x18x128xf32, #tpu.memory_space<vmem>>, vector<16x16x128xf32>
    %30 = vector.shape_cast %29 : vector<16x16x128xf32> to vector<256x128xf32>
    %c2_33 = arith.constant 2 : index
    %c2_34 = arith.constant 2 : index
    %c0_35 = arith.constant 0 : index
    %31 = vector.load %arg6[%c2_33, %c2_34, %c0_35] : memref<18x18x128xf32, #tpu.memory_space<vmem>>, vector<16x16x128xf32>
    %32 = vector.shape_cast %31 : vector<16x16x128xf32> to vector<256x128xf32>
    %33 = tpu.concatenate %16, %18, %20, %22, %24, %26, %28, %30, %32 in 1 : vector<256x128xf32>, vector<256x128xf32>, vector<256x128xf32>, vector<256x128xf32>, vector<256x128xf32>, vector<256x128xf32>, vector<256x128xf32>, vector<256x128xf32>, vector<256x128xf32> -> vector<256x1152xf32>
    %34 = arith.truncf %33 : vector<256x1152xf32> to vector<256x1152xbf16>
    %c0_36 = arith.constant 0 : index
    %c0_37 = arith.constant 0 : index
    %35 = vector.load %arg3[%c0_36, %c0_37] : memref<1152x128xbf16, #tpu.memory_space<vmem>>, vector<1152x128xbf16>
    %cst_38 = arith.constant dense<0.000000e+00> : vector<256x128xf32>
    %36 = tpu.matmul %34, %35, %cst_38 {dimension_numbers = #tpu.dot_dimension_numbers<[1], [0], [0], [1], [0, 0, 1, 1], [], []>} : vector<256x1152xbf16>, vector<1152x128xbf16>, vector<256x128xf32> -> vector<256x128xf32>
    %37 = vector.shape_cast %36 : vector<256x128xf32> to vector<1x16x16x128xf32>
    %c0_39 = arith.constant 0 : index
    %c0_40 = arith.constant 0 : index
    %c0_41 = arith.constant 0 : index
    %c0_42 = arith.constant 0 : index
    %38 = vector.load %arg4[%c0_39, %c0_40, %c0_41, %c0_42] : memref<1x16x16x128xf32, #tpu.memory_space<vmem>>, vector<1x16x16x128xf32>
    tpu.vector_store %arg4[%c0_39, %c0_40, %c0_41, %c0_42], %37 {strides = array<i32>} : memref<1x16x16x128xf32, #tpu.memory_space<vmem>>, vector<1x16x16x128xf32>,
    %c0_43 = arith.constant 0 : index
    %c0_44 = arith.constant 0 : index
    %39 = vector.load %arg5[%c0_43, %c0_44] : memref<2x128xf32, #tpu.memory_space<vmem>>, vector<2x128xf32>
    %cst_45 = arith.constant dense<0.000000e+00> : vector<128xf32>
    %40 = vector.multi_reduction <add>, %36, %cst_45 [0] : vector<256x128xf32> to vector<128xf32>
    %41 = vector.shape_cast %40 : vector<128xf32> to vector<1x128xf32>
    %42 = arith.mulf %36, %36 : vector<256x128xf32>
    %cst_46 = arith.constant dense<0.000000e+00> : vector<128xf32>
    %43 = vector.multi_reduction <add>, %42, %cst_46 [0] : vector<256x128xf32> to vector<128xf32>
    %44 = vector.shape_cast %43 : vector<128xf32> to vector<1x128xf32>
    %45 = tpu.concatenate %41, %44 in 0 : vector<1x128xf32>, vector<1x128xf32> -> vector<2x128xf32>
    %46 = arith.addf %39, %45 : vector<2x128xf32>
    %c0_47 = arith.constant 0 : index
    %c0_48 = arith.constant 0 : index
    %47 = vector.load %arg5[%c0_47, %c0_48] : memref<2x128xf32, #tpu.memory_space<vmem>>, vector<2x128xf32>
    tpu.vector_store %arg5[%c0_47, %c0_48], %46 {strides = array<i32>} : memref<2x128xf32, #tpu.memory_space<vmem>>, vector<2x128xf32>,
    return
  }
  func.func @transform_0(%arg0: i32) -> (i32, i32, i32, i32) {
    %c0_i32 = arith.constant 0 : i32
    %c0_i32_0 = arith.constant 0 : i32
    %c0_i32_1 = arith.constant 0 : i32
    %c0_i32_2 = arith.constant 0 : i32
    return %arg0, %c0_i32, %c0_i32_0, %c0_i32_1 : i32, i32, i32, i32
  }
  func.func @transform_1(%arg0: i32) -> (i32, i32) {
    %c0_i32 = arith.constant 0 : i32
    %c0_i32_0 = arith.constant 0 : i32
    %c0_i32_1 = arith.constant 0 : i32
    return %c0_i32, %c0_i32_0 : i32, i32
  }
  func.func @transform_2(%arg0: i32) -> (i32, i32) {
    %c0_i32 = arith.constant 0 : i32
    %c0_i32_0 = arith.constant 0 : i32
    %c0_i32_1 = arith.constant 0 : i32
    return %c0_i32, %c0_i32_0 : i32, i32
  }
  func.func @transform_3(%arg0: i32) -> (i32, i32, i32, i32) {
    %c0_i32 = arith.constant 0 : i32
    %c0_i32_0 = arith.constant 0 : i32
    %c0_i32_1 = arith.constant 0 : i32
    %c0_i32_2 = arith.constant 0 : i32
    return %arg0, %c0_i32, %c0_i32_0, %c0_i32_1 : i32, i32, i32, i32
  }
  func.func @transform_4(%arg0: i32) -> (i32, i32) {
    %c0_i32 = arith.constant 0 : i32
    %c0_i32_0 = arith.constant 0 : i32
    %c0_i32_1 = arith.constant 0 : i32
    return %c0_i32, %c0_i32_0 : i32, i32
  }
}

module attributes {stable_mosaic.version = 11 : i64} {
  func.func @_conv1_stats_kernel(%arg0: i32, %arg1: memref<1x16x16x128xf32, #tpu.memory_space<vmem>>, %arg2: memref<1152x128xbf16, #tpu.memory_space<vmem>>, %arg3: memref<1x16x16x128xf32, #tpu.memory_space<vmem>>, %arg4: memref<2x128xf32, #tpu.memory_space<vmem>>, %arg5: memref<18x18x128xf32, #tpu.memory_space<vmem>>) attributes {dimension_semantics = [#tpu.dimension_semantics<arbitrary>], iteration_bounds = array<i64: 2>, scalar_prefetch = 0 : i64, scratch_operands = 1 : i64, tpu.core_type = #tpu.core_type<tc>, window_params = [{transform_indices = @transform_0, window_bounds = array<i64: 1, 16, 16, 128>}, {pipeline_mode = #tpu.pipeline_mode<synchronous>, transform_indices = @transform_1, window_bounds = array<i64: 1152, 128>}, {transform_indices = @transform_2, window_bounds = array<i64: 1, 16, 16, 128>}, {pipeline_mode = #tpu.pipeline_mode<synchronous>, transform_indices = @transform_3, window_bounds = array<i64: 2, 128>}]} {
    %c0_i32 = arith.constant 0 : i32
    %0 = arith.cmpi eq, %arg0, %c0_i32 : i32
    %1 = arith.extui %0 : i1 to i32
    %c0_i32_0 = arith.constant 0 : i32
    %2 = arith.cmpi ne, %1, %c0_i32_0 : i32
    scf.if %2 {
      %cst_44 = arith.constant 0.000000e+00 : f32
      %39 = vector.broadcast %cst_44 : f32 to vector<2x128xf32>
      %c0_45 = arith.constant 0 : index
      %c0_46 = arith.constant 0 : index
      %40 = vector.load %arg4[%c0_45, %c0_46] : memref<2x128xf32, #tpu.memory_space<vmem>>, vector<2x128xf32>
      tpu.vector_store %arg4[%c0_45, %c0_46], %39 {strides = array<i32>} : memref<2x128xf32, #tpu.memory_space<vmem>>, vector<2x128xf32>,
      %cst_47 = arith.constant 0.000000e+00 : f32
      %41 = vector.broadcast %cst_47 : f32 to vector<18x18x128xf32>
      %c0_48 = arith.constant 0 : index
      %c0_49 = arith.constant 0 : index
      %c0_50 = arith.constant 0 : index
      %42 = vector.load %arg5[%c0_48, %c0_49, %c0_50] : memref<18x18x128xf32, #tpu.memory_space<vmem>>, vector<18x18x128xf32>
      tpu.vector_store %arg5[%c0_48, %c0_49, %c0_50], %41 {strides = array<i32>} : memref<18x18x128xf32, #tpu.memory_space<vmem>>, vector<18x18x128xf32>,
    } else {
    }
    %c0 = arith.constant 0 : index
    %c0_1 = arith.constant 0 : index
    %c0_2 = arith.constant 0 : index
    %c0_3 = arith.constant 0 : index
    %3 = vector.load %arg1[%c0, %c0_1, %c0_2, %c0_3] : memref<1x16x16x128xf32, #tpu.memory_space<vmem>>, vector<1x16x16x128xf32>
    %4 = vector.shape_cast %3 : vector<1x16x16x128xf32> to vector<16x16x128xf32>
    %c1 = arith.constant 1 : index
    %c1_4 = arith.constant 1 : index
    %c0_5 = arith.constant 0 : index
    %5 = vector.load %arg5[%c1, %c1_4, %c0_5] : memref<18x18x128xf32, #tpu.memory_space<vmem>>, vector<16x16x128xf32>
    tpu.vector_store %arg5[%c1, %c1_4, %c0_5], %4 {strides = array<i32>} : memref<18x18x128xf32, #tpu.memory_space<vmem>>, vector<16x16x128xf32>,
    %c0_6 = arith.constant 0 : index
    %c0_7 = arith.constant 0 : index
    %c0_8 = arith.constant 0 : index
    %6 = vector.load %arg5[%c0_6, %c0_7, %c0_8] : memref<18x18x128xf32, #tpu.memory_space<vmem>>, vector<16x16x128xf32>
    %7 = vector.shape_cast %6 : vector<16x16x128xf32> to vector<256x128xf32>
    %c0_9 = arith.constant 0 : index
    %c1_10 = arith.constant 1 : index
    %c0_11 = arith.constant 0 : index
    %8 = vector.load %arg5[%c0_9, %c1_10, %c0_11] : memref<18x18x128xf32, #tpu.memory_space<vmem>>, vector<16x16x128xf32>
    %9 = vector.shape_cast %8 : vector<16x16x128xf32> to vector<256x128xf32>
    %c0_12 = arith.constant 0 : index
    %c2 = arith.constant 2 : index
    %c0_13 = arith.constant 0 : index
    %10 = vector.load %arg5[%c0_12, %c2, %c0_13] : memref<18x18x128xf32, #tpu.memory_space<vmem>>, vector<16x16x128xf32>
    %11 = vector.shape_cast %10 : vector<16x16x128xf32> to vector<256x128xf32>
    %c1_14 = arith.constant 1 : index
    %c0_15 = arith.constant 0 : index
    %c0_16 = arith.constant 0 : index
    %12 = vector.load %arg5[%c1_14, %c0_15, %c0_16] : memref<18x18x128xf32, #tpu.memory_space<vmem>>, vector<16x16x128xf32>
    %13 = vector.shape_cast %12 : vector<16x16x128xf32> to vector<256x128xf32>
    %c1_17 = arith.constant 1 : index
    %c1_18 = arith.constant 1 : index
    %c0_19 = arith.constant 0 : index
    %14 = vector.load %arg5[%c1_17, %c1_18, %c0_19] : memref<18x18x128xf32, #tpu.memory_space<vmem>>, vector<16x16x128xf32>
    %15 = vector.shape_cast %14 : vector<16x16x128xf32> to vector<256x128xf32>
    %c1_20 = arith.constant 1 : index
    %c2_21 = arith.constant 2 : index
    %c0_22 = arith.constant 0 : index
    %16 = vector.load %arg5[%c1_20, %c2_21, %c0_22] : memref<18x18x128xf32, #tpu.memory_space<vmem>>, vector<16x16x128xf32>
    %17 = vector.shape_cast %16 : vector<16x16x128xf32> to vector<256x128xf32>
    %c2_23 = arith.constant 2 : index
    %c0_24 = arith.constant 0 : index
    %c0_25 = arith.constant 0 : index
    %18 = vector.load %arg5[%c2_23, %c0_24, %c0_25] : memref<18x18x128xf32, #tpu.memory_space<vmem>>, vector<16x16x128xf32>
    %19 = vector.shape_cast %18 : vector<16x16x128xf32> to vector<256x128xf32>
    %c2_26 = arith.constant 2 : index
    %c1_27 = arith.constant 1 : index
    %c0_28 = arith.constant 0 : index
    %20 = vector.load %arg5[%c2_26, %c1_27, %c0_28] : memref<18x18x128xf32, #tpu.memory_space<vmem>>, vector<16x16x128xf32>
    %21 = vector.shape_cast %20 : vector<16x16x128xf32> to vector<256x128xf32>
    %c2_29 = arith.constant 2 : index
    %c2_30 = arith.constant 2 : index
    %c0_31 = arith.constant 0 : index
    %22 = vector.load %arg5[%c2_29, %c2_30, %c0_31] : memref<18x18x128xf32, #tpu.memory_space<vmem>>, vector<16x16x128xf32>
    %23 = vector.shape_cast %22 : vector<16x16x128xf32> to vector<256x128xf32>
    %24 = tpu.concatenate %7, %9, %11, %13, %15, %17, %19, %21, %23 in 1 : vector<256x128xf32>, vector<256x128xf32>, vector<256x128xf32>, vector<256x128xf32>, vector<256x128xf32>, vector<256x128xf32>, vector<256x128xf32>, vector<256x128xf32>, vector<256x128xf32> -> vector<256x1152xf32>
    %25 = arith.truncf %24 : vector<256x1152xf32> to vector<256x1152xbf16>
    %c0_32 = arith.constant 0 : index
    %c0_33 = arith.constant 0 : index
    %26 = vector.load %arg2[%c0_32, %c0_33] : memref<1152x128xbf16, #tpu.memory_space<vmem>>, vector<1152x128xbf16>
    %cst = arith.constant dense<0.000000e+00> : vector<256x128xf32>
    %27 = tpu.matmul %25, %26, %cst {dimension_numbers = #tpu.dot_dimension_numbers<[1], [0], [0], [1], [0, 0, 1, 1], [], []>} : vector<256x1152xbf16>, vector<1152x128xbf16>, vector<256x128xf32> -> vector<256x128xf32>
    %28 = vector.shape_cast %27 : vector<256x128xf32> to vector<1x16x16x128xf32>
    %c0_34 = arith.constant 0 : index
    %c0_35 = arith.constant 0 : index
    %c0_36 = arith.constant 0 : index
    %c0_37 = arith.constant 0 : index
    %29 = vector.load %arg3[%c0_34, %c0_35, %c0_36, %c0_37] : memref<1x16x16x128xf32, #tpu.memory_space<vmem>>, vector<1x16x16x128xf32>
    tpu.vector_store %arg3[%c0_34, %c0_35, %c0_36, %c0_37], %28 {strides = array<i32>} : memref<1x16x16x128xf32, #tpu.memory_space<vmem>>, vector<1x16x16x128xf32>,
    %c0_38 = arith.constant 0 : index
    %c0_39 = arith.constant 0 : index
    %30 = vector.load %arg4[%c0_38, %c0_39] : memref<2x128xf32, #tpu.memory_space<vmem>>, vector<2x128xf32>
    %cst_40 = arith.constant dense<0.000000e+00> : vector<128xf32>
    %31 = vector.multi_reduction <add>, %27, %cst_40 [0] : vector<256x128xf32> to vector<128xf32>
    %32 = vector.shape_cast %31 : vector<128xf32> to vector<1x128xf32>
    %33 = arith.mulf %27, %27 : vector<256x128xf32>
    %cst_41 = arith.constant dense<0.000000e+00> : vector<128xf32>
    %34 = vector.multi_reduction <add>, %33, %cst_41 [0] : vector<256x128xf32> to vector<128xf32>
    %35 = vector.shape_cast %34 : vector<128xf32> to vector<1x128xf32>
    %36 = tpu.concatenate %32, %35 in 0 : vector<1x128xf32>, vector<1x128xf32> -> vector<2x128xf32>
    %37 = arith.addf %30, %36 : vector<2x128xf32>
    %c0_42 = arith.constant 0 : index
    %c0_43 = arith.constant 0 : index
    %38 = vector.load %arg4[%c0_42, %c0_43] : memref<2x128xf32, #tpu.memory_space<vmem>>, vector<2x128xf32>
    tpu.vector_store %arg4[%c0_42, %c0_43], %37 {strides = array<i32>} : memref<2x128xf32, #tpu.memory_space<vmem>>, vector<2x128xf32>,
    return
  }
  func.func @transform_0(%arg0: i32) -> (i32, i32, i32, i32) {
    %c0_i32 = arith.constant 0 : i32
    %c0_i32_0 = arith.constant 0 : i32
    %c0_i32_1 = arith.constant 0 : i32
    %c0_i32_2 = arith.constant 0 : i32
    return %arg0, %c0_i32, %c0_i32_0, %c0_i32_1 : i32, i32, i32, i32
  }
  func.func @transform_1(%arg0: i32) -> (i32, i32) {
    %c0_i32 = arith.constant 0 : i32
    %c0_i32_0 = arith.constant 0 : i32
    %c0_i32_1 = arith.constant 0 : i32
    return %c0_i32, %c0_i32_0 : i32, i32
  }
  func.func @transform_2(%arg0: i32) -> (i32, i32, i32, i32) {
    %c0_i32 = arith.constant 0 : i32
    %c0_i32_0 = arith.constant 0 : i32
    %c0_i32_1 = arith.constant 0 : i32
    %c0_i32_2 = arith.constant 0 : i32
    return %arg0, %c0_i32, %c0_i32_0, %c0_i32_1 : i32, i32, i32, i32
  }
  func.func @transform_3(%arg0: i32) -> (i32, i32) {
    %c0_i32 = arith.constant 0 : i32
    %c0_i32_0 = arith.constant 0 : i32
    %c0_i32_1 = arith.constant 0 : i32
    return %c0_i32, %c0_i32_0 : i32, i32
  }
}

module attributes {stable_mosaic.version = 11 : i64} {
  func.func @_bn_add_relu_kernel(%arg0: i32, %arg1: memref<1x16x16x128xf32, #tpu.memory_space<vmem>>, %arg2: memref<1x16x16x128xf32, #tpu.memory_space<vmem>>, %arg3: memref<2x128xf32, #tpu.memory_space<vmem>>, %arg4: memref<1x16x16x128xf32, #tpu.memory_space<vmem>>) attributes {dimension_semantics = [#tpu.dimension_semantics<parallel>], iteration_bounds = array<i64: 2>, scalar_prefetch = 0 : i64, scratch_operands = 0 : i64, tpu.core_type = #tpu.core_type<tc>, window_params = [{transform_indices = @transform_0, window_bounds = array<i64: 1, 16, 16, 128>}, {transform_indices = @transform_1, window_bounds = array<i64: 1, 16, 16, 128>}, {pipeline_mode = #tpu.pipeline_mode<synchronous>, transform_indices = @transform_2, window_bounds = array<i64: 2, 128>}, {transform_indices = @transform_3, window_bounds = array<i64: 1, 16, 16, 128>}]} {
    %c0 = arith.constant 0 : index
    %c0_0 = arith.constant 0 : index
    %c0_1 = arith.constant 0 : index
    %c0_2 = arith.constant 0 : index
    %0 = vector.load %arg1[%c0, %c0_0, %c0_1, %c0_2] : memref<1x16x16x128xf32, #tpu.memory_space<vmem>>, vector<1x16x16x128xf32>
    %1 = vector.shape_cast %0 : vector<1x16x16x128xf32> to vector<256x128xf32>
    %c0_3 = arith.constant 0 : index
    %c0_4 = arith.constant 0 : index
    %c0_5 = arith.constant 0 : index
    %c0_6 = arith.constant 0 : index
    %2 = vector.load %arg2[%c0_3, %c0_4, %c0_5, %c0_6] : memref<1x16x16x128xf32, #tpu.memory_space<vmem>>, vector<1x16x16x128xf32>
    %3 = vector.shape_cast %2 : vector<1x16x16x128xf32> to vector<256x128xf32>
    %c0_7 = arith.constant 0 : index
    %c0_8 = arith.constant 0 : index
    %4 = vector.load %arg3[%c0_7, %c0_8] : memref<2x128xf32, #tpu.memory_space<vmem>>, vector<1x128xf32>
    %c1 = arith.constant 1 : index
    %c0_9 = arith.constant 0 : index
    %5 = vector.load %arg3[%c1, %c0_9] : memref<2x128xf32, #tpu.memory_space<vmem>>, vector<1x128xf32>
    %6 = vector.broadcast %4 : vector<1x128xf32> to vector<256x128xf32>
    %7 = arith.mulf %1, %6 : vector<256x128xf32>
    %8 = vector.broadcast %5 : vector<1x128xf32> to vector<256x128xf32>
    %9 = arith.addf %7, %8 : vector<256x128xf32>
    %10 = arith.addf %9, %3 : vector<256x128xf32>
    %cst = arith.constant 0.000000e+00 : f32
    %11 = vector.broadcast %cst : f32 to vector<256x128xf32>
    %12 = arith.maximumf %10, %11 : vector<256x128xf32>
    %13 = vector.shape_cast %12 : vector<256x128xf32> to vector<1x16x16x128xf32>
    %c0_10 = arith.constant 0 : index
    %c0_11 = arith.constant 0 : index
    %c0_12 = arith.constant 0 : index
    %c0_13 = arith.constant 0 : index
    %14 = vector.load %arg4[%c0_10, %c0_11, %c0_12, %c0_13] : memref<1x16x16x128xf32, #tpu.memory_space<vmem>>, vector<1x16x16x128xf32>
    tpu.vector_store %arg4[%c0_10, %c0_11, %c0_12, %c0_13], %13 {strides = array<i32>} : memref<1x16x16x128xf32, #tpu.memory_space<vmem>>, vector<1x16x16x128xf32>,
    return
  }
  func.func @transform_0(%arg0: i32) -> (i32, i32, i32, i32) {
    %c0_i32 = arith.constant 0 : i32
    %c0_i32_0 = arith.constant 0 : i32
    %c0_i32_1 = arith.constant 0 : i32
    %c0_i32_2 = arith.constant 0 : i32
    return %arg0, %c0_i32, %c0_i32_0, %c0_i32_1 : i32, i32, i32, i32
  }
  func.func @transform_1(%arg0: i32) -> (i32, i32, i32, i32) {
    %c0_i32 = arith.constant 0 : i32
    %c0_i32_0 = arith.constant 0 : i32
    %c0_i32_1 = arith.constant 0 : i32
    %c0_i32_2 = arith.constant 0 : i32
    return %arg0, %c0_i32, %c0_i32_0, %c0_i32_1 : i32, i32, i32, i32
  }
  func.func @transform_2(%arg0: i32) -> (i32, i32) {
    %c0_i32 = arith.constant 0 : i32
    %c0_i32_0 = arith.constant 0 : i32
    %c0_i32_1 = arith.constant 0 : i32
    return %c0_i32, %c0_i32_0 : i32, i32
  }
  func.func @transform_3(%arg0: i32) -> (i32, i32, i32, i32) {
    %c0_i32 = arith.constant 0 : i32
    %c0_i32_0 = arith.constant 0 : i32
    %c0_i32_1 = arith.constant 0 : i32
    %c0_i32_2 = arith.constant 0 : i32
    return %arg0, %c0_i32, %c0_i32_0, %c0_i32_1 : i32, i32, i32, i32
  }
}

</mosaic_0001>

<llo_original>
// kernel: block_forward.5
$region0: #{block_forward.5}
  #allocation0 [shape = 'u32[]', space=smem, size = 0x4, offset = 0x4, fixed_abs, tag = 'smem constant byte address 0x4 - core index']
  #allocation1 [shape = 'u32[144,128]{1,0:T(1,128)}', space=vmem, size = 0x12000, scoped, tag = 'internal scratch']
  %s0 = inlined_call_operand.vmem [shape: f32[2,16,16,128], index: 0, kind: input, shape index: {}]
  %s1 = inlined_call_operand.vmem [shape: f32[2,16,16,128], index: 1, kind: input, shape index: {}]
  %s2 = inlined_call_operand.vmem [shape: f32[2,128], index: 2, kind: input, shape index: {}]
  %s3 = inlined_call_operand.vmem [shape: f32[2,16,16,128], index: 3, kind: output, shape index: {}]
  %s4 = sld [smem:[#allocation0]]
  $region45: #{block_forward.5} parent=0
    _
  %s6 = ssub.s32 1, %s4
  %s7 = scalar_select 0, %s6, %s4
  loop: start=0, step=1, limit=4
  $region2: #{block_forward.5} parent=0 // loop_pre_header
    _
  $region3: #{block_forward.5} parent=0 // loop_header
    %s9 = sphi 0, %s13
    %p10 = scmp.ge.s32.totalorder %s9, 4
    %s19 = sphi 0, %s21
    %s22 = sphi 0, %s19
    %s23 = sphi 0, %s22
    %s39 = sphi 0, %s23
    %s45 = sphi 0, %s47
    %s48 = sphi 0, %s45
    %s49 = sphi 0, %s48
    %s65 = sphi 0, %s49
    %s69 = sphi 0, %s69
    %s71 = sphi 0, %s69
    %s72 = sphi 0, %s71
    %s86 = sphi 0, %s72
    %s92 = sphi 0, %s94
    %s95 = sphi 0, %s92
    %s96 = sphi 0, %s95
    %s112 = sphi 0, %s96
  $region4: #{block_forward.5} parent=0 // loop_header_branch
    %12 = sbr.rel (%p10) target = $region8
  $region5: #{block_forward.5} parent=0 // loop_body
    %s14 = ssub.s32 %s9, 1
    %s15 = ssub.s32 %s9, 2
    %s16 = sadd.s32 %s9, 1
    %s17 = ssub.s32 %s9, %s16
    %p18 = scmp.eq.s32.totalorder %s17, 0
    %s20 = sadd.s32 %s19, 1
    %s21 = scalar_select %p18, %s19, %s20
    %p24 = pneg %p18
    %p25 = scmp.eq.s32.totalorder %s9, 1
    %p26 = por %p24, %p25
    %p27 = scmp.ne.s32.totalorder %s19, %s22
    %p28 = scmp.eq.s32.totalorder %s9, 0
    %p29 = por %p27, %p28
    %p30 = scmp.ne.s32.totalorder %s19, %s22
    %p31 = scmp.eq.s32.totalorder %s14, 1
    %p32 = por %p30, %p31
    %p33 = scmp.ne.s32.totalorder %s22, %s23
    %p34 = scmp.eq.s32.totalorder %s14, 0
    %p35 = por %p33, %p34
    %p36 = scmp.ne.s32.totalorder %s22, %s23
    %p37 = scmp.eq.s32.totalorder %s15, 1
    %p38 = por %p36, %p37
    %p40 = scmp.ne.s32.totalorder %s23, %s39
    %p41 = scmp.eq.s32.totalorder %s15, 0
    %p42 = por %p40, %p41
    %s43 = ssub.s32 %s9, %s16
    %p44 = scmp.eq.s32.totalorder %s43, 0
    %s46 = sadd.s32 %s45, 1
    %s47 = scalar_select %p44, %s45, %s46
    %p50 = pneg %p44
    %p51 = scmp.eq.s32.totalorder %s9, 1
    %p52 = por %p50, %p51
    %p53 = scmp.ne.s32.totalorder %s45, %s48
    %p54 = scmp.eq.s32.totalorder %s9, 0
    %p55 = por %p53, %p54
    %p56 = scmp.ne.s32.totalorder %s45, %s48
    %p57 = scmp.eq.s32.totalorder %s14, 1
    %p58 = por %p56, %p57
    %p59 = scmp.ne.s32.totalorder %s48, %s49
    %p60 = scmp.eq.s32.totalorder %s14, 0
    %p61 = por %p59, %p60
    %p62 = scmp.ne.s32.totalorder %s48, %s49
    %p63 = scmp.eq.s32.totalorder %s15, 1
    %p64 = por %p62, %p63
    %p66 = scmp.ne.s32.totalorder %s49, %s65
    %p67 = scmp.eq.s32.totalorder %s15, 0
    %p68 = por %p66, %p67
    %s70 = sadd.s32 %s69, 1
    %p73 = scmp.eq.s32.totalorder %s9, 1
    %p74 = scmp.ne.s32.totalorder %s69, %s71
    %p75 = scmp.eq.s32.totalorder %s9, 0
    %p76 = por %p74, %p75
    %p77 = scmp.ne.s32.totalorder %s69, %s71
    %p78 = scmp.eq.s32.totalorder %s14, 1
    %p79 = por %p77, %p78
    %p80 = scmp.ne.s32.totalorder %s71, %s72
    %p81 = scmp.eq.s32.totalorder %s14, 0
    %p82 = por %p80, %p81
    %p83 = scmp.ne.s32.totalorder %s71, %s72
    %p84 = scmp.eq.s32.totalorder %s15, 1
    %p85 = por %p83, %p84
    %p87 = scmp.ne.s32.totalorder %s72, %s86
    %p88 = scmp.eq.s32.totalorder %s15, 0
    %p89 = por %p87, %p88
    %s90 = ssub.s32 %s9, %s16
    %p91 = scmp.eq.s32.totalorder %s90, 0
    %s93 = sadd.s32 %s92, 1
    %s94 = scalar_select %p91, %s92, %s93
    %p97 = pneg %p91
    %p98 = scmp.eq.s32.totalorder %s9, 1
    %p99 = por %p97, %p98
    %p100 = scmp.ne.s32.totalorder %s92, %s95
    %p101 = scmp.eq.s32.totalorder %s9, 0
    %p102 = por %p100, %p101
    %p103 = scmp.ne.s32.totalorder %s92, %s95
    %p104 = scmp.eq.s32.totalorder %s14, 1
    %p105 = por %p103, %p104
    %p106 = scmp.ne.s32.totalorder %s95, %s96
    %p107 = scmp.eq.s32.totalorder %s14, 0
    %p108 = por %p106, %p107
    %p109 = scmp.ne.s32.totalorder %s95, %s96
    %p110 = scmp.eq.s32.totalorder %s15, 1
    %p111 = por %p109, %p110
    %p113 = scmp.ne.s32.totalorder %s96, %s112
    %p114 = scmp.eq.s32.totalorder %s15, 0
    %p115 = por %p113, %p114
    %p116 = scmp.le.s32.totalorder 1, %s9
    %p117 = scmp.lt.s32.totalorder %s9, 3
    %p118 = pnand %p116, %p117
    %p119 = pneg %p118
    // Predicated region
    $region9: #{block_forward.5} parent=5 // pred_check
      _
    $region10: #{block_forward.5} parent=5 // pred_check_branch
      %121 = sbr.rel (%p118) target = $region12
    $region11: #{block_forward.5} parent=5 // pred_region
      %s122 = ssub.s32 %s9, 1
      // Predicated region
      $region13: #{block_forward.5} parent=11 // pred_check
        %p123 = pneg %p82
      $region14: #{block_forward.5} parent=11 // pred_check_branch
        %125 = sbr.rel (%p123) target = $region16
      $region15: #{block_forward.5} parent=11 // pred_region
        _
      $region16: #{block_forward.5} parent=11 // pred_fallthru
        _
    $region12: #{block_forward.5} parent=5 // pred_fallthru
      _
    %p126 = scmp.lt.s32.totalorder %s9, 2
    // Predicated region
    $region17: #{block_forward.5} parent=5 // pred_check
      %p127 = pneg %p126
    $region18: #{block_forward.5} parent=5 // pred_check_branch
      %129 = sbr.rel (%p127) target = $region20
    $region19: #{block_forward.5} parent=5 // pred_region
      // Predicated region
      $region21: #{block_forward.5} parent=19 // pred_check
        %p130 = pneg %p29
      $region22: #{block_forward.5} parent=19 // pred_check_branch
        %132 = sbr.rel (%p130) target = $region24
      $region23: #{block_forward.5} parent=19 // pred_region
        %p133 = scmp.lt.s32.totalorder %s9, 1
        %s134 = scalar_select %p133, %s9, 1
        %s135 = smul.addr %s134, 32
        %s136 = smul.addr %s135, 8
        %s137 = scalar_lea.vmem %s0, %s136
      $region24: #{block_forward.5} parent=19 // pred_fallthru
        _
      // Predicated region
      $region25: #{block_forward.5} parent=19 // pred_check
        %p138 = pneg %p55
      $region26: #{block_forward.5} parent=19 // pred_check_branch
        %140 = sbr.rel (%p138) target = $region28
      $region27: #{block_forward.5} parent=19 // pred_region
        %p141 = scmp.lt.s32.totalorder %s9, 1
        %s142 = scalar_select %p141, %s9, 1
        %s143 = smul.addr %s142, 32
        %s144 = smul.addr %s143, 8
        %s145 = scalar_lea.vmem %s1, %s144
      $region28: #{block_forward.5} parent=19 // pred_fallthru
        _
    $region20: #{block_forward.5} parent=5 // pred_fallthru
      _
    %p146 = scmp.le.s32.totalorder 1, %s9
    %p147 = scmp.lt.s32.totalorder %s9, 3
    %p148 = pnand %p146, %p147
    %p149 = pneg %p148
    // Predicated region
    $region29: #{block_forward.5} parent=5 // pred_check
      _
    $region30: #{block_forward.5} parent=5 // pred_check_branch
      %151 = sbr.rel (%p148) target = $region32
    $region31: #{block_forward.5} parent=5 // pred_region
      %s152 = ssub.s32 %s9, 1
      %p153 = scmp.lt.s32.totalorder %s14, 1
      %s154 = scalar_select %p153, %s14, 1
      %s155 = smul.addr %s154, 32
      %s156 = smul.addr %s155, 8
      %s157 = scalar_lea.vmem %s0, %s156
      %p158 = pneg %p35
      %p159 = pneg %p32
      %p160 = scmp.lt.s32.totalorder %s14, 1
      %s161 = scalar_select %p160, %s14, 1
      %s162 = smul.addr %s161, 32
      %s163 = smul.addr %s162, 8
      %s164 = scalar_lea.vmem %s1, %s163
      %p165 = pneg %p61
      %p166 = pneg %p58
      %p167 = pneg %p82
      %p168 = pneg %p79
      %p169 = pneg %p108
      %p170 = pneg %p105
      %p171 = scmp.lt.s32.totalorder %s14, 1
      %s172 = scalar_select %p171, %s14, 1
      %s173 = smul.addr %s172, 32
      %s174 = smul.addr %s173, 8
      %s175 = scalar_lea.vmem %s3, %s174
      %p176 = scmp.lt.s32.totalorder %s14, 1
      %s177 = scalar_select %p176, %s14, 1
      %s178 = smul.addr %s177, 32
      %s179 = smul.addr %s178, 8
      %s180 = scalar_lea.vmem %s0, %s179
      %p181 = scmp.lt.s32.totalorder %s14, 1
      %s182 = scalar_select %p181, %s14, 1
      %s183 = smul.addr %s182, 32
      %s184 = smul.addr %s183, 8
      %s185 = scalar_lea.vmem %s1, %s184
      %p186 = scmp.lt.s32.totalorder %s14, 1
      %s187 = scalar_select %p186, %s14, 1
      %s188 = smul.addr %s187, 32
      %s189 = smul.addr %s188, 8
      %s190 = scalar_lea.vmem %s3, %s189
      %v191 = vld [vmem:[%s180] sm:$0xff]
      %v192 = vld [vmem:[%s180 + $0x8] sm:$0xff]
      %v193 = vld [vmem:[%s180 + $0x10] sm:$0xff]
      %v194 = vld [vmem:[%s180 + $0x18] sm:$0xff]
      %v195 = vld [vmem:[%s180 + $0x20] sm:$0xff]
      %v196 = vld [vmem:[%s180 + $0x28] sm:$0xff]
      %v197 = vld [vmem:[%s180 + $0x30] sm:$0xff]
      %v198 = vld [vmem:[%s180 + $0x38] sm:$0xff]
      %v199 = vld [vmem:[%s180 + $0x40] sm:$0xff]
      %v200 = vld [vmem:[%s180 + $0x48] sm:$0xff]
      %v201 = vld [vmem:[%s180 + $0x50] sm:$0xff]
      %v202 = vld [vmem:[%s180 + $0x58] sm:$0xff]
      %v203 = vld [vmem:[%s180 + $0x60] sm:$0xff]
      %v204 = vld [vmem:[%s180 + $0x68] sm:$0xff]
      %v205 = vld [vmem:[%s180 + $0x70] sm:$0xff]
      %v206 = vld [vmem:[%s180 + $0x78] sm:$0xff]
      %v207 = vld [vmem:[%s180 + $0x80] sm:$0xff]
      %v208 = vld [vmem:[%s180 + $0x88] sm:$0xff]
      %v209 = vld [vmem:[%s180 + $0x90] sm:$0xff]
      %v210 = vld [vmem:[%s180 + $0x98] sm:$0xff]
      %v211 = vld [vmem:[%s180 + $0xa0] sm:$0xff]
      %v212 = vld [vmem:[%s180 + $0xa8] sm:$0xff]
      %v213 = vld [vmem:[%s180 + $0xb0] sm:$0xff]
      %v214 = vld [vmem:[%s180 + $0xb8] sm:$0xff]
      %v215 = vld [vmem:[%s180 + $0xc0] sm:$0xff]
      %v216 = vld [vmem:[%s180 + $0xc8] sm:$0xff]
      %v217 = vld [vmem:[%s180 + $0xd0] sm:$0xff]
      %v218 = vld [vmem:[%s180 + $0xd8] sm:$0xff]
      %v219 = vld [vmem:[%s180 + $0xe0] sm:$0xff]
      %v220 = vld [vmem:[%s180 + $0xe8] sm:$0xff]
      %v221 = vld [vmem:[%s180 + $0xf0] sm:$0xff]
      %v222 = vld [vmem:[%s180 + $0xf8] sm:$0xff]
      %v223 = vld [vmem:[%s185] sm:$0xff]
      %v224 = vld [vmem:[%s185 + $0x8] sm:$0xff]
      %v225 = vld [vmem:[%s185 + $0x10] sm:$0xff]
      %v226 = vld [vmem:[%s185 + $0x18] sm:$0xff]
      %v227 = vld [vmem:[%s185 + $0x20] sm:$0xff]
      %v228 = vld [vmem:[%s185 + $0x28] sm:$0xff]
      %v229 = vld [vmem:[%s185 + $0x30] sm:$0xff]
      %v230 = vld [vmem:[%s185 + $0x38] sm:$0xff]
      %v231 = vld [vmem:[%s185 + $0x40] sm:$0xff]
      %v232 = vld [vmem:[%s185 + $0x48] sm:$0xff]
      %v233 = vld [vmem:[%s185 + $0x50] sm:$0xff]
      %v234 = vld [vmem:[%s185 + $0x58] sm:$0xff]
      %v235 = vld [vmem:[%s185 + $0x60] sm:$0xff]
      %v236 = vld [vmem:[%s185 + $0x68] sm:$0xff]
      %v237 = vld [vmem:[%s185 + $0x70] sm:$0xff]
      %v238 = vld [vmem:[%s185 + $0x78] sm:$0xff]
      %v239 = vld [vmem:[%s185 + $0x80] sm:$0xff]
      %v240 = vld [vmem:[%s185 + $0x88] sm:$0xff]
      %v241 = vld [vmem:[%s185 + $0x90] sm:$0xff]
      %v242 = vld [vmem:[%s185 + $0x98] sm:$0xff]
      %v243 = vld [vmem:[%s185 + $0xa0] sm:$0xff]
      %v244 = vld [vmem:[%s185 + $0xa8] sm:$0xff]
      %v245 = vld [vmem:[%s185 + $0xb0] sm:$0xff]
      %v246 = vld [vmem:[%s185 + $0xb8] sm:$0xff]
      %v247 = vld [vmem:[%s185 + $0xc0] sm:$0xff]
      %v248 = vld [vmem:[%s185 + $0xc8] sm:$0xff]
      %v249 = vld [vmem:[%s185 + $0xd0] sm:$0xff]
      %v250 = vld [vmem:[%s185 + $0xd8] sm:$0xff]
      %v251 = vld [vmem:[%s185 + $0xe0] sm:$0xff]
      %v252 = vld [vmem:[%s185 + $0xe8] sm:$0xff]
      %v253 = vld [vmem:[%s185 + $0xf0] sm:$0xff]
      %v254 = vld [vmem:[%s185 + $0xf8] sm:$0xff]
      %v255 = vld [vmem:[%s2] sm:$0x1]
      %v256 = vld [vmem:[%s2 + $0x1] sm:$0x1]
      %v257 = vlaneseq
      %v258 = vshrl.u32 %v257, 7
      %v259 = vsub.s32 0, %v258
      %v260 = vrot.slane %v255, %v259
      %v261 = vmul.f32 %v191, %v260
      %v262 = vmul.f32 %v192, %v260
      %v263 = vmul.f32 %v193, %v260
      %v264 = vmul.f32 %v194, %v260
      %v265 = vmul.f32 %v195, %v260
      %v266 = vmul.f32 %v196, %v260
      %v267 = vmul.f32 %v197, %v260
      %v268 = vmul.f32 %v198, %v260
      %v269 = vmul.f32 %v199, %v260
      %v270 = vmul.f32 %v200, %v260
      %v271 = vmul.f32 %v201, %v260
      %v272 = vmul.f32 %v202, %v260
      %v273 = vmul.f32 %v203, %v260
      %v274 = vmul.f32 %v204, %v260
      %v275 = vmul.f32 %v205, %v260
      %v276 = vmul.f32 %v206, %v260
      %v277 = vmul.f32 %v207, %v260
      %v278 = vmul.f32 %v208, %v260
      %v279 = vmul.f32 %v209, %v260
      %v280 = vmul.f32 %v210, %v260
      %v281 = vmul.f32 %v211, %v260
      %v282 = vmul.f32 %v212, %v260
      %v283 = vmul.f32 %v213, %v260
      %v284 = vmul.f32 %v214, %v260
      %v285 = vmul.f32 %v215, %v260
      %v286 = vmul.f32 %v216, %v260
      %v287 = vmul.f32 %v217, %v260
      %v288 = vmul.f32 %v218, %v260
      %v289 = vmul.f32 %v219, %v260
      %v290 = vmul.f32 %v220, %v260
      %v291 = vmul.f32 %v221, %v260
      %v292 = vmul.f32 %v222, %v260
      %v293 = vlaneseq
      %v294 = vshrl.u32 %v293, 7
      %v295 = vsub.s32 0, %v294
      %v296 = vrot.slane %v256, %v295
      %v297 = vadd.f32 %v261, %v296
      %v298 = vadd.f32 %v262, %v296
      %v299 = vadd.f32 %v263, %v296
      %v300 = vadd.f32 %v264, %v296
      %v301 = vadd.f32 %v265, %v296
      %v302 = vadd.f32 %v266, %v296
      %v303 = vadd.f32 %v267, %v296
      %v304 = vadd.f32 %v268, %v296
      %v305 = vadd.f32 %v269, %v296
      %v306 = vadd.f32 %v270, %v296
      %v307 = vadd.f32 %v271, %v296
      %v308 = vadd.f32 %v272, %v296
      %v309 = vadd.f32 %v273, %v296
      %v310 = vadd.f32 %v274, %v296
      %v311 = vadd.f32 %v275, %v296
      %v312 = vadd.f32 %v276, %v296
      %v313 = vadd.f32 %v277, %v296
      %v314 = vadd.f32 %v278, %v296
      %v315 = vadd.f32 %v279, %v296
      %v316 = vadd.f32 %v280, %v296
      %v317 = vadd.f32 %v281, %v296
      %v318 = vadd.f32 %v282, %v296
      %v319 = vadd.f32 %v283, %v296
      %v320 = vadd.f32 %v284, %v296
      %v321 = vadd.f32 %v285, %v296
      %v322 = vadd.f32 %v286, %v296
      %v323 = vadd.f32 %v287, %v296
      %v324 = vadd.f32 %v288, %v296
      %v325 = vadd.f32 %v289, %v296
      %v326 = vadd.f32 %v290, %v296
      %v327 = vadd.f32 %v291, %v296
      %v328 = vadd.f32 %v292, %v296
      %v329 = vadd.f32 %v297, %v223
      %v330 = vadd.f32 %v298, %v224
      %v331 = vadd.f32 %v299, %v225
      %v332 = vadd.f32 %v300, %v226
      %v333 = vadd.f32 %v301, %v227
      %v334 = vadd.f32 %v302, %v228
      %v335 = vadd.f32 %v303, %v229
      %v336 = vadd.f32 %v304, %v230
      %v337 = vadd.f32 %v305, %v231
      %v338 = vadd.f32 %v306, %v232
      %v339 = vadd.f32 %v307, %v233
      %v340 = vadd.f32 %v308, %v234
      %v341 = vadd.f32 %v309, %v235
      %v342 = vadd.f32 %v310, %v236
      %v343 = vadd.f32 %v311, %v237
      %v344 = vadd.f32 %v312, %v238
      %v345 = vadd.f32 %v313, %v239
      %v346 = vadd.f32 %v314, %v240
      %v347 = vadd.f32 %v315, %v241
      %v348 = vadd.f32 %v316, %v242
      %v349 = vadd.f32 %v317, %v243
      %v350 = vadd.f32 %v318, %v244
      %v351 = vadd.f32 %v319, %v245
      %v352 = vadd.f32 %v320, %v246
      %v353 = vadd.f32 %v321, %v247
      %v354 = vadd.f32 %v322, %v248
      %v355 = vadd.f32 %v323, %v249
      %v356 = vadd.f32 %v324, %v250
      %v357 = vadd.f32 %v325, %v251
      %v358 = vadd.f32 %v326, %v252
      %v359 = vadd.f32 %v327, %v253
      %v360 = vadd.f32 %v328, %v254
      %v361 = vmax.f32 %v329, 0.0
      %v362 = vmax.f32 %v330, 0.0
      %v363 = vmax.f32 %v331, 0.0
      %v364 = vmax.f32 %v332, 0.0
      %v365 = vmax.f32 %v333, 0.0
      %v366 = vmax.f32 %v334, 0.0
      %v367 = vmax.f32 %v335, 0.0
      %v368 = vmax.f32 %v336, 0.0
      %v369 = vmax.f32 %v337, 0.0
      %v370 = vmax.f32 %v338, 0.0
      %v371 = vmax.f32 %v339, 0.0
      %v372 = vmax.f32 %v340, 0.0
      %v373 = vmax.f32 %v341, 0.0
      %v374 = vmax.f32 %v342, 0.0
      %v375 = vmax.f32 %v343, 0.0
      %v376 = vmax.f32 %v344, 0.0
      %v377 = vmax.f32 %v345, 0.0
      %v378 = vmax.f32 %v346, 0.0
      %v379 = vmax.f32 %v347, 0.0
      %v380 = vmax.f32 %v348, 0.0
      %v381 = vmax.f32 %v349, 0.0
      %v382 = vmax.f32 %v350, 0.0
      %v383 = vmax.f32 %v351, 0.0
      %v384 = vmax.f32 %v352, 0.0
      %v385 = vmax.f32 %v353, 0.0
      %v386 = vmax.f32 %v354, 0.0
      %v387 = vmax.f32 %v355, 0.0
      %v388 = vmax.f32 %v356, 0.0
      %v389 = vmax.f32 %v357, 0.0
      %v390 = vmax.f32 %v358, 0.0
      %v391 = vmax.f32 %v359, 0.0
      %v392 = vmax.f32 %v360, 0.0
      %393 = vst [vmem:[%s190] sm:$0xff] %v361
      %394 = vst [vmem:[%s190 + $0x8] sm:$0xff] %v362
      %395 = vst [vmem:[%s190 + $0x10] sm:$0xff] %v363
      %396 = vst [vmem:[%s190 + $0x18] sm:$0xff] %v364
      %397 = vst [vmem:[%s190 + $0x20] sm:$0xff] %v365
      %398 = vst [vmem:[%s190 + $0x28] sm:$0xff] %v366
      %399 = vst [vmem:[%s190 + $0x30] sm:$0xff] %v367
      %400 = vst [vmem:[%s190 + $0x38] sm:$0xff] %v368
      %401 = vst [vmem:[%s190 + $0x40] sm:$0xff] %v369
      %402 = vst [vmem:[%s190 + $0x48] sm:$0xff] %v370
      %403 = vst [vmem:[%s190 + $0x50] sm:$0xff] %v371
      %404 = vst [vmem:[%s190 + $0x58] sm:$0xff] %v372
      %405 = vst [vmem:[%s190 + $0x60] sm:$0xff] %v373
      %406 = vst [vmem:[%s190 + $0x68] sm:$0xff] %v374
      %407 = vst [vmem:[%s190 + $0x70] sm:$0xff] %v375
      %408 = vst [vmem:[%s190 + $0x78] sm:$0xff] %v376
      %409 = vst [vmem:[%s190 + $0x80] sm:$0xff] %v377
      %410 = vst [vmem:[%s190 + $0x88] sm:$0xff] %v378
      %411 = vst [vmem:[%s190 + $0x90] sm:$0xff] %v379
      %412 = vst [vmem:[%s190 + $0x98] sm:$0xff] %v380
      %413 = vst [vmem:[%s190 + $0xa0] sm:$0xff] %v381
      %414 = vst [vmem:[%s190 + $0xa8] sm:$0xff] %v382
      %415 = vst [vmem:[%s190 + $0xb0] sm:$0xff] %v383
      %416 = vst [vmem:[%s190 + $0xb8] sm:$0xff] %v384
      %417 = vst [vmem:[%s190 + $0xc0] sm:$0xff] %v385
      %418 = vst [vmem:[%s190 + $0xc8] sm:$0xff] %v386
      %419 = vst [vmem:[%s190 + $0xd0] sm:$0xff] %v387
      %420 = vst [vmem:[%s190 + $0xd8] sm:$0xff] %v388
      %421 = vst [vmem:[%s190 + $0xe0] sm:$0xff] %v389
      %422 = vst [vmem:[%s190 + $0xe8] sm:$0xff] %v390
      %423 = vst [vmem:[%s190 + $0xf0] sm:$0xff] %v391
      %424 = vst [vmem:[%s190 + $0xf8] sm:$0xff] %v392
      %p425 = scmp.lt.s32.totalorder %s14, 1
      %s426 = scalar_select %p425, %s14, 1
      %s427 = smul.addr %s426, 32
      %s428 = smul.addr %s427, 8
      %s429 = scalar_lea.vmem %s3, %s428
      // Predicated region
      $region33: #{block_forward.5} parent=31 // pred_check
        %p430 = pneg %p105
      $region34: #{block_forward.5} parent=31 // pred_check_branch
        %432 = sbr.rel (%p430) target = $region36
      $region35: #{block_forward.5} parent=31 // pred_region
        _
      $region36: #{block_forward.5} parent=31 // pred_fallthru
        _
    $region32: #{block_forward.5} parent=5 // pred_fallthru
      _
    %p433 = scmp.le.s32.totalorder 2, %s9
    // Predicated region
    $region37: #{block_forward.5} parent=5 // pred_check
      %p434 = pneg %p433
    $region38: #{block_forward.5} parent=5 // pred_check_branch
      %436 = sbr.rel (%p434) target = $region40
    $region39: #{block_forward.5} parent=5 // pred_region
      %s437 = ssub.s32 %s9, 2
      // Predicated region
      $region41: #{block_forward.5} parent=39 // pred_check
        %p438 = pneg %p111
      $region42: #{block_forward.5} parent=39 // pred_check_branch
        %440 = sbr.rel (%p438) target = $region44
      $region43: #{block_forward.5} parent=39 // pred_region
        %p441 = scmp.lt.s32.totalorder %s15, 1
        %s442 = scalar_select %p441, %s15, 1
        %s443 = smul.addr %s442, 32
        %s444 = smul.addr %s443, 8
        %s445 = scalar_lea.vmem %s3, %s444
      $region44: #{block_forward.5} parent=39 // pred_fallthru
        _
    $region40: #{block_forward.5} parent=5 // pred_fallthru
      _
  $region6: #{block_forward.5} parent=0 // loop_footer
    %s13 = sadd.s32 1, %s9
  $region7: #{block_forward.5} parent=0 // loop_footer_branch
    %8 = sbr.rel target = $region3
  $region8: #{block_forward.5} parent=0 // loop_exit
    _

// kernel: block_forward.3
$region0: #{block_forward.3}
  #allocation0 [shape = 'u32[]', space=smem, size = 0x4, offset = 0x4, fixed_abs, tag = 'smem constant byte address 0x4 - core index']
  #allocation1 [shape = 'u32[144,128]{1,0:T(1,128)}', space=vmem, size = 0x12000, scoped, tag = 'internal scratch']
  #allocation2 [shape = 'f32[18,18,128]{2,1,0:T(8,128)}', space=vmem, size = 0x36000, scoped, tag = 'scratch operand']
  %s0 = inlined_call_operand.vmem [shape: f32[2,16,16,128], index: 0, kind: input, shape index: {}]
  %s1 = inlined_call_operand.vmem [shape: bf16[1152,128], index: 1, kind: input, shape index: {}]
  %s2 = inlined_call_operand.vmem [shape: f32[2,16,16,128], index: 2, kind: output, shape index: {0}]
  %s3 = inlined_call_operand.vmem [shape: f32[2,128], index: 3, kind: output, shape index: {1}]
  %4 = xla_tuple %s2, %s3
  %s5 = sld [smem:[#allocation0]]
  $region53: #{block_forward.3} parent=0
    _
  %s7 = ssub.s32 1, %s5
  %s8 = scalar_select 0, %s7, %s5
  loop: start=0, step=1, limit=4
  $region2: #{block_forward.3} parent=0 // loop_pre_header
    _
  $region3: #{block_forward.3} parent=0 // loop_header
    %s10 = sphi 0, %s14
    %p11 = scmp.ge.s32.totalorder %s10, 4
    %s20 = sphi 0, %s22
    %s23 = sphi 0, %s20
    %s24 = sphi 0, %s23
    %s40 = sphi 0, %s24
    %s44 = sphi 0, %s44
    %s46 = sphi 0, %s44
    %s47 = sphi 0, %s46
    %s61 = sphi 0, %s47
    %s67 = sphi 0, %s69
    %s70 = sphi 0, %s67
    %s71 = sphi 0, %s70
    %s87 = sphi 0, %s71
    %s91 = sphi 0, %s91
    %s93 = sphi 0, %s91
    %s94 = sphi 0, %s93
    %s108 = sphi 0, %s94
  $region4: #{block_forward.3} parent=0 // loop_header_branch
    %13 = sbr.rel (%p11) target = $region8
  $region5: #{block_forward.3} parent=0 // loop_body
    %s15 = ssub.s32 %s10, 1
    %s16 = ssub.s32 %s10, 2
    %s17 = sadd.s32 %s10, 1
    %s18 = ssub.s32 %s10, %s17
    %p19 = scmp.eq.s32.totalorder %s18, 0
    %s21 = sadd.s32 %s20, 1
    %s22 = scalar_select %p19, %s20, %s21
    %p25 = pneg %p19
    %p26 = scmp.eq.s32.totalorder %s10, 1
    %p27 = por %p25, %p26
    %p28 = scmp.ne.s32.totalorder %s20, %s23
    %p29 = scmp.eq.s32.totalorder %s10, 0
    %p30 = por %p28, %p29
    %p31 = scmp.ne.s32.totalorder %s20, %s23
    %p32 = scmp.eq.s32.totalorder %s15, 1
    %p33 = por %p31, %p32
    %p34 = scmp.ne.s32.totalorder %s23, %s24
    %p35 = scmp.eq.s32.totalorder %s15, 0
    %p36 = por %p34, %p35
    %p37 = scmp.ne.s32.totalorder %s23, %s24
    %p38 = scmp.eq.s32.totalorder %s16, 1
    %p39 = por %p37, %p38
    %p41 = scmp.ne.s32.totalorder %s24, %s40
    %p42 = scmp.eq.s32.totalorder %s16, 0
    %p43 = por %p41, %p42
    %s45 = sadd.s32 %s44, 1
    %p48 = scmp.eq.s32.totalorder %s10, 1
    %p49 = scmp.ne.s32.totalorder %s44, %s46
    %p50 = scmp.eq.s32.totalorder %s10, 0
    %p51 = por %p49, %p50
    %p52 = scmp.ne.s32.totalorder %s44, %s46
    %p53 = scmp.eq.s32.totalorder %s15, 1
    %p54 = por %p52, %p53
    %p55 = scmp.ne.s32.totalorder %s46, %s47
    %p56 = scmp.eq.s32.totalorder %s15, 0
    %p57 = por %p55, %p56
    %p58 = scmp.ne.s32.totalorder %s46, %s47
    %p59 = scmp.eq.s32.totalorder %s16, 1
    %p60 = por %p58, %p59
    %p62 = scmp.ne.s32.totalorder %s47, %s61
    %p63 = scmp.eq.s32.totalorder %s16, 0
    %p64 = por %p62, %p63
    %s65 = ssub.s32 %s10, %s17
    %p66 = scmp.eq.s32.totalorder %s65, 0
    %s68 = sadd.s32 %s67, 1
    %s69 = scalar_select %p66, %s67, %s68
    %p72 = pneg %p66
    %p73 = scmp.eq.s32.totalorder %s10, 1
    %p74 = por %p72, %p73
    %p75 = scmp.ne.s32.totalorder %s67, %s70
    %p76 = scmp.eq.s32.totalorder %s10, 0
    %p77 = por %p75, %p76
    %p78 = scmp.ne.s32.totalorder %s67, %s70
    %p79 = scmp.eq.s32.totalorder %s15, 1
    %p80 = por %p78, %p79
    %p81 = scmp.ne.s32.totalorder %s70, %s71
    %p82 = scmp.eq.s32.totalorder %s15, 0
    %p83 = por %p81, %p82
    %p84 = scmp.ne.s32.totalorder %s70, %s71
    %p85 = scmp.eq.s32.totalorder %s16, 1
    %p86 = por %p84, %p85
    %p88 = scmp.ne.s32.totalorder %s71, %s87
    %p89 = scmp.eq.s32.totalorder %s16, 0
    %p90 = por %p88, %p89
    %s92 = sadd.s32 %s91, 1
    %p95 = scmp.eq.s32.totalorder %s10, 1
    %p96 = scmp.ne.s32.totalorder %s91, %s93
    %p97 = scmp.eq.s32.totalorder %s10, 0
    %p98 = por %p96, %p97
    %p99 = scmp.ne.s32.totalorder %s91, %s93
    %p100 = scmp.eq.s32.totalorder %s15, 1
    %p101 = por %p99, %p100
    %p102 = scmp.ne.s32.totalorder %s93, %s94
    %p103 = scmp.eq.s32.totalorder %s15, 0
    %p104 = por %p102, %p103
    %p105 = scmp.ne.s32.totalorder %s93, %s94
    %p106 = scmp.eq.s32.totalorder %s16, 1
    %p107 = por %p105, %p106
    %p109 = scmp.ne.s32.totalorder %s94, %s108
    %p110 = scmp.eq.s32.totalorder %s16, 0
    %p111 = por %p109, %p110
    %p112 = scmp.le.s32.totalorder 1, %s10
    %p113 = scmp.lt.s32.totalorder %s10, 3
    %p114 = pnand %p112, %p113
    %p115 = pneg %p114
    // Predicated region
    $region9: #{block_forward.3} parent=5 // pred_check
      _
    $region10: #{block_forward.3} parent=5 // pred_check_branch
      %117 = sbr.rel (%p114) target = $region12
    $region11: #{block_forward.3} parent=5 // pred_region
      %s118 = ssub.s32 %s10, 1
      // Predicated region
      $region13: #{block_forward.3} parent=11 // pred_check
        %p119 = pneg %p57
      $region14: #{block_forward.3} parent=11 // pred_check_branch
        %121 = sbr.rel (%p119) target = $region16
      $region15: #{block_forward.3} parent=11 // pred_region
        _
      $region16: #{block_forward.3} parent=11 // pred_fallthru
        _
    $region12: #{block_forward.3} parent=5 // pred_fallthru
      _
    %p122 = scmp.lt.s32.totalorder %s10, 2
    // Predicated region
    $region17: #{block_forward.3} parent=5 // pred_check
      %p123 = pneg %p122
    $region18: #{block_forward.3} parent=5 // pred_check_branch
      %125 = sbr.rel (%p123) target = $region20
    $region19: #{block_forward.3} parent=5 // pred_region
      // Predicated region
      $region21: #{block_forward.3} parent=19 // pred_check
        %p126 = pneg %p30
      $region22: #{block_forward.3} parent=19 // pred_check_branch
        %128 = sbr.rel (%p126) target = $region24
      $region23: #{block_forward.3} parent=19 // pred_region
        %p129 = scmp.lt.s32.totalorder %s10, 1
        %s130 = scalar_select %p129, %s10, 1
        %s131 = smul.addr %s130, 32
        %s132 = smul.addr %s131, 8
        %s133 = scalar_lea.vmem %s0, %s132
      $region24: #{block_forward.3} parent=19 // pred_fallthru
        _
    $region20: #{block_forward.3} parent=5 // pred_fallthru
      _
    %p134 = scmp.le.s32.totalorder 1, %s10
    %p135 = scmp.lt.s32.totalorder %s10, 3
    %p136 = pnand %p134, %p135
    %p137 = pneg %p136
    // Predicated region
    $region25: #{block_forward.3} parent=5 // pred_check
      _
    $region26: #{block_forward.3} parent=5 // pred_check_branch
      %139 = sbr.rel (%p136) target = $region28
    $region27: #{block_forward.3} parent=5 // pred_region
      %s140 = ssub.s32 %s10, 1
      %p141 = scmp.lt.s32.totalorder %s15, 1
      %s142 = scalar_select %p141, %s15, 1
      %s143 = smul.addr %s142, 32
      %s144 = smul.addr %s143, 8
      %s145 = scalar_lea.vmem %s0, %s144
      %p146 = pneg %p36
      %p147 = pneg %p33
      %p148 = pneg %p57
      %p149 = pneg %p54
      %p150 = pneg %p83
      %p151 = pneg %p80
      %p152 = scmp.lt.s32.totalorder %s15, 1
      %s153 = scalar_select %p152, %s15, 1
      %s154 = smul.addr %s153, 32
      %s155 = smul.addr %s154, 8
      %s156 = scalar_lea.vmem %s2, %s155
      %p157 = pneg %p104
      %p158 = pneg %p101
      %p159 = scmp.lt.s32.totalorder %s15, 1
      %s160 = scalar_select %p159, %s15, 1
      %s161 = smul.addr %s160, 32
      %s162 = smul.addr %s161, 8
      %s163 = scalar_lea.vmem %s0, %s162
      %p164 = scmp.lt.s32.totalorder %s15, 1
      %s165 = scalar_select %p164, %s15, 1
      %s166 = smul.addr %s165, 32
      %s167 = smul.addr %s166, 8
      %s168 = scalar_lea.vmem %s2, %s167
      %p170 = scmp.eq.s32.totalorder %s15, 0
      // Predicated region
      $region29: #{block_forward.3} parent=27 // pred_check
        %p171 = pneg %p170
      $region30: #{block_forward.3} parent=27 // pred_check_branch
        %173 = sbr.rel (%p171) target = $region32
      $region31: #{block_forward.3} parent=27 // pred_region
        %174 = vst [vmem:[%s3] sm:$0x3] 0.0
        %175 = vst [vmem:[#allocation2] sm:$0xff] 0.0
        %176 = vst [vmem:[#allocation2 + $0x8] sm:$0xff] 0.0
        %177 = vst [vmem:[#allocation2 + $0x10] sm:$0x3] 0.0
        %178 = vst [vmem:[#allocation2 + $0x18] sm:$0xff] 0.0
        %179 = vst [vmem:[#allocation2 + $0x20] sm:$0xff] 0.0
        %180 = vst [vmem:[#allocation2 + $0x28] sm:$0x3] 0.0
        %181 = vst [vmem:[#allocation2 + $0x30] sm:$0xff] 0.0
        %182 = vst [vmem:[#allocation2 + $0x38] sm:$0xff] 0.0
        %183 = vst [vmem:[#allocation2 + $0x40] sm:$0x3] 0.0
        %184 = vst [vmem:[#allocation2 + $0x48] sm:$0xff] 0.0
        %185 = vst [vmem:[#allocation2 + $0x50] sm:$0xff] 0.0
        %186 = vst [vmem:[#allocation2 + $0x58] sm:$0x3] 0.0
        %187 = vst [vmem:[#allocation2 + $0x60] sm:$0xff] 0.0
        %188 = vst [vmem:[#allocation2 + $0x68] sm:$0xff] 0.0
        %189 = vst [vmem:[#allocation2 + $0x70] sm:$0x3] 0.0
        %190 = vst [vmem:[#allocation2 + $0x78] sm:$0xff] 0.0
        %191 = vst [vmem:[#allocation2 + $0x80] sm:$0xff] 0.0
        %192 = vst [vmem:[#allocation2 + $0x88] sm:$0x3] 0.0
        %193 = vst [vmem:[#allocation2 + $0x90] sm:$0xff] 0.0
        %194 = vst [vmem:[#allocation2 + $0x98] sm:$0xff] 0.0
        %195 = vst [vmem:[#allocation2 + $0xa0] sm:$0x3] 0.0
        %196 = vst [vmem:[#allocation2 + $0xa8] sm:$0xff] 0.0
        %197 = vst [vmem:[#allocation2 + $0xb0] sm:$0xff] 0.0
        %198 = vst [vmem:[#allocation2 + $0xb8] sm:$0x3] 0.0
        %199 = vst [vmem:[#allocation2 + $0xc0] sm:$0xff] 0.0
        %200 = vst [vmem:[#allocation2 + $0xc8] sm:$0xff] 0.0
        %201 = vst [vmem:[#allocation2 + $0xd0] sm:$0x3] 0.0
        %202 = vst [vmem:[#allocation2 + $0xd8] sm:$0xff] 0.0
        %203 = vst [vmem:[#allocation2 + $0xe0] sm:$0xff] 0.0
        %204 = vst [vmem:[#allocation2 + $0xe8] sm:$0x3] 0.0
        %205 = vst [vmem:[#allocation2 + $0xf0] sm:$0xff] 0.0
        %206 = vst [vmem:[#allocation2 + $0xf8] sm:$0xff] 0.0
        %207 = vst [vmem:[#allocation2 + $0x100] sm:$0x3] 0.0
        %208 = vst [vmem:[#allocation2 + $0x108] sm:$0xff] 0.0
        %209 = vst [vmem:[#allocation2 + $0x110] sm:$0xff] 0.0
        %210 = vst [vmem:[#allocation2 + $0x118] sm:$0x3] 0.0
        %211 = vst [vmem:[#allocation2 + $0x120] sm:$0xff] 0.0
        %212 = vst [vmem:[#allocation2 + $0x128] sm:$0xff] 0.0
        %213 = vst [vmem:[#allocation2 + $0x130] sm:$0x3] 0.0
        %214 = vst [vmem:[#allocation2 + $0x138] sm:$0xff] 0.0
        %215 = vst [vmem:[#allocation2 + $0x140] sm:$0xff] 0.0
        %216 = vst [vmem:[#allocation2 + $0x148] sm:$0x3] 0.0
        %217 = vst [vmem:[#allocation2 + $0x150] sm:$0xff] 0.0
        %218 = vst [vmem:[#allocation2 + $0x158] sm:$0xff] 0.0
        %219 = vst [vmem:[#allocation2 + $0x160] sm:$0x3] 0.0
        %220 = vst [vmem:[#allocation2 + $0x168] sm:$0xff] 0.0
        %221 = vst [vmem:[#allocation2 + $0x170] sm:$0xff] 0.0
        %222 = vst [vmem:[#allocation2 + $0x178] sm:$0x3] 0.0
        %223 = vst [vmem:[#allocation2 + $0x180] sm:$0xff] 0.0
        %224 = vst [vmem:[#allocation2 + $0x188] sm:$0xff] 0.0
        %225 = vst [vmem:[#allocation2 + $0x190] sm:$0x3] 0.0
        %226 = vst [vmem:[#allocation2 + $0x198] sm:$0xff] 0.0
        %227 = vst [vmem:[#allocation2 + $0x1a0] sm:$0xff] 0.0
        %228 = vst [vmem:[#allocation2 + $0x1a8] sm:$0x3] 0.0
      $region32: #{block_forward.3} parent=27 // pred_fallthru
        _
      %v229 = vld [vmem:[%s163] sm:$0xff]
      %v230 = vld [vmem:[%s163 + $0x8] sm:$0xff]
      %v231 = vld [vmem:[%s163 + $0x10] sm:$0xff]
      %v232 = vld [vmem:[%s163 + $0x18] sm:$0xff]
      %v233 = vld [vmem:[%s163 + $0x20] sm:$0xff]
      %v234 = vld [vmem:[%s163 + $0x28] sm:$0xff]
      %v235 = vld [vmem:[%s163 + $0x30] sm:$0xff]
      %v236 = vld [vmem:[%s163 + $0x38] sm:$0xff]
      %v237 = vld [vmem:[%s163 + $0x40] sm:$0xff]
      %v238 = vld [vmem:[%s163 + $0x48] sm:$0xff]
      %v239 = vld [vmem:[%s163 + $0x50] sm:$0xff]
      %v240 = vld [vmem:[%s163 + $0x58] sm:$0xff]
      %v241 = vld [vmem:[%s163 + $0x60] sm:$0xff]
      %v242 = vld [vmem:[%s163 + $0x68] sm:$0xff]
      %v243 = vld [vmem:[%s163 + $0x70] sm:$0xff]
      %v244 = vld [vmem:[%s163 + $0x78] sm:$0xff]
      %v245 = vld [vmem:[%s163 + $0x80] sm:$0xff]
      %v246 = vld [vmem:[%s163 + $0x88] sm:$0xff]
      %v247 = vld [vmem:[%s163 + $0x90] sm:$0xff]
      %v248 = vld [vmem:[%s163 + $0x98] sm:$0xff]
      %v249 = vld [vmem:[%s163 + $0xa0] sm:$0xff]
      %v250 = vld [vmem:[%s163 + $0xa8] sm:$0xff]
      %v251 = vld [vmem:[%s163 + $0xb0] sm:$0xff]
      %v252 = vld [vmem:[%s163 + $0xb8] sm:$0xff]
      %v253 = vld [vmem:[%s163 + $0xc0] sm:$0xff]
      %v254 = vld [vmem:[%s163 + $0xc8] sm:$0xff]
      %v255 = vld [vmem:[%s163 + $0xd0] sm:$0xff]
      %v256 = vld [vmem:[%s163 + $0xd8] sm:$0xff]
      %v257 = vld [vmem:[%s163 + $0xe0] sm:$0xff]
      %v258 = vld [vmem:[%s163 + $0xe8] sm:$0xff]
      %v259 = vld [vmem:[%s163 + $0xf0] sm:$0xff]
      %v260 = vld [vmem:[%s163 + $0xf8] sm:$0xff]
      %s261 = scalar_lea.vmem [#allocation2], 24
      %262 = vst [vmem:[%s261 + $0x1] sm:$0xff] %v229
      %263 = vst [vmem:[%s261 + $0x9] sm:$0xff] %v230
      %264 = vst [vmem:[%s261 + $0x19] sm:$0xff] %v231
      %265 = vst [vmem:[%s261 + $0x21] sm:$0xff] %v232
      %266 = vst [vmem:[%s261 + $0x31] sm:$0xff] %v233
      %267 = vst [vmem:[%s261 + $0x39] sm:$0xff] %v234
      %268 = vst [vmem:[%s261 + $0x49] sm:$0xff] %v235
      %269 = vst [vmem:[%s261 + $0x51] sm:$0xff] %v236
      %270 = vst [vmem:[%s261 + $0x61] sm:$0xff] %v237
      %271 = vst [vmem:[%s261 + $0x69] sm:$0xff] %v238
      %272 = vst [vmem:[%s261 + $0x79] sm:$0xff] %v239
      %273 = vst [vmem:[%s261 + $0x81] sm:$0xff] %v240
      %274 = vst [vmem:[%s261 + $0x91] sm:$0xff] %v241
      %275 = vst [vmem:[%s261 + $0x99] sm:$0xff] %v242
      %276 = vst [vmem:[%s261 + $0xa9] sm:$0xff] %v243
      %277 = vst [vmem:[%s261 + $0xb1] sm:$0xff] %v244
      %278 = vst [vmem:[%s261 + $0xc1] sm:$0xff] %v245
      %279 = vst [vmem:[%s261 + $0xc9] sm:$0xff] %v246
      %280 = vst [vmem:[%s261 + $0xd9] sm:$0xff] %v247
      %281 = vst [vmem:[%s261 + $0xe1] sm:$0xff] %v248
      %282 = vst [vmem:[%s261 + $0xf1] sm:$0xff] %v249
      %283 = vst [vmem:[%s261 + $0xf9] sm:$0xff] %v250
      %284 = vst [vmem:[%s261 + $0x109] sm:$0xff] %v251
      %285 = vst [vmem:[%s261 + $0x111] sm:$0xff] %v252
      %286 = vst [vmem:[%s261 + $0x121] sm:$0xff] %v253
      %287 = vst [vmem:[%s261 + $0x129] sm:$0xff] %v254
      %288 = vst [vmem:[%s261 + $0x139] sm:$0xff] %v255
      %289 = vst [vmem:[%s261 + $0x141] sm:$0xff] %v256
      %290 = vst [vmem:[%s261 + $0x151] sm:$0xff] %v257
      %291 = vst [vmem:[%s261 + $0x159] sm:$0xff] %v258
      %292 = vst [vmem:[%s261 + $0x169] sm:$0xff] %v259
      %293 = vst [vmem:[%s261 + $0x171] sm:$0xff] %v260
      %v294 = vld [vmem:[#allocation2] sm:$0xff]
      %v295 = vld [vmem:[#allocation2 + $0x8] sm:$0xff]
      %v296 = vld [vmem:[#allocation2 + $0x18] sm:$0xff]
      %v297 = vld [vmem:[#allocation2 + $0x20] sm:$0xff]
      %v298 = vld [vmem:[#allocation2 + $0x30] sm:$0xff]
      %v299 = vld [vmem:[#allocation2 + $0x38] sm:$0xff]
      %v300 = vld [vmem:[#allocation2 + $0x48] sm:$0xff]
      %v301 = vld [vmem:[#allocation2 + $0x50] sm:$0xff]
      %v302 = vld [vmem:[#allocation2 + $0x60] sm:$0xff]
      %v303 = vld [vmem:[#allocation2 + $0x68] sm:$0xff]
      %v304 = vld [vmem:[#allocation2 + $0x78] sm:$0xff]
      %v305 = vld [vmem:[#allocation2 + $0x80] sm:$0xff]
      %v306 = vld [vmem:[#allocation2 + $0x90] sm:$0xff]
      %v307 = vld [vmem:[#allocation2 + $0x98] sm:$0xff]
      %v308 = vld [vmem:[#allocation2 + $0xa8] sm:$0xff]
      %v309 = vld [vmem:[#allocation2 + $0xb0] sm:$0xff]
      %v310 = vld [vmem:[#allocation2 + $0xc0] sm:$0xff]
      %v311 = vld [vmem:[#allocation2 + $0xc8] sm:$0xff]
      %v312 = vld [vmem:[#allocation2 + $0xd8] sm:$0xff]
      %v313 = vld [vmem:[#allocation2 + $0xe0] sm:$0xff]
      %v314 = vld [vmem:[#allocation2 + $0xf0] sm:$0xff]
      %v315 = vld [vmem:[#allocation2 + $0xf8] sm:$0xff]
      %v316 = vld [vmem:[#allocation2 + $0x108] sm:$0xff]
      %v317 = vld [vmem:[#allocation2 + $0x110] sm:$0xff]
      %v318 = vld [vmem:[#allocation2 + $0x120] sm:$0xff]
      %v319 = vld [vmem:[#allocation2 + $0x128] sm:$0xff]
      %v320 = vld [vmem:[#allocation2 + $0x138] sm:$0xff]
      %v321 = vld [vmem:[#allocation2 + $0x140] sm:$0xff]
      %v322 = vld [vmem:[#allocation2 + $0x150] sm:$0xff]
      %v323 = vld [vmem:[#allocation2 + $0x158] sm:$0xff]
      %v324 = vld [vmem:[#allocation2 + $0x168] sm:$0xff]
      %v325 = vld [vmem:[#allocation2 + $0x170] sm:$0xff]
      %v326 = vld [vmem:[#allocation2 + $0x1] sm:$0xff]
      %v327 = vld [vmem:[#allocation2 + $0x9] sm:$0xff]
      %v328 = vld [vmem:[#allocation2 + $0x19] sm:$0xff]
      %v329 = vld [vmem:[#allocation2 + $0x21] sm:$0xff]
      %v330 = vld [vmem:[#allocation2 + $0x31] sm:$0xff]
      %v331 = vld [vmem:[#allocation2 + $0x39] sm:$0xff]
      %v332 = vld [vmem:[#allocation2 + $0x49] sm:$0xff]
      %v333 = vld [vmem:[#allocation2 + $0x51] sm:$0xff]
      %v334 = vld [vmem:[#allocation2 + $0x61] sm:$0xff]
      %v335 = vld [vmem:[#allocation2 + $0x69] sm:$0xff]
      %v336 = vld [vmem:[#allocation2 + $0x79] sm:$0xff]
      %v337 = vld [vmem:[#allocation2 + $0x81] sm:$0xff]
      %v338 = vld [vmem:[#allocation2 + $0x91] sm:$0xff]
      %v339 = vld [vmem:[#allocation2 + $0x99] sm:$0xff]
      %v340 = vld [vmem:[#allocation2 + $0xa9] sm:$0xff]
      %v341 = vld [vmem:[#allocation2 + $0xb1] sm:$0xff]
      %v342 = vld [vmem:[#allocation2 + $0xc1] sm:$0xff]
      %v343 = vld [vmem:[#allocation2 + $0xc9] sm:$0xff]
      %v344 = vld [vmem:[#allocation2 + $0xd9] sm:$0xff]
      %v345 = vld [vmem:[#allocation2 + $0xe1] sm:$0xff]
      %v346 = vld [vmem:[#allocation2 + $0xf1] sm:$0xff]
      %v347 = vld [vmem:[#allocation2 + $0xf9] sm:$0xff]
      %v348 = vld [vmem:[#allocation2 + $0x109] sm:$0xff]
      %v349 = vld [vmem:[#allocation2 + $0x111] sm:$0xff]
      %v350 = vld [vmem:[#allocation2 + $0x121] sm:$0xff]
      %v351 = vld [vmem:[#allocation2 + $0x129] sm:$0xff]
      %v352 = vld [vmem:[#allocation2 + $0x139] sm:$0xff]
      %v353 = vld [vmem:[#allocation2 + $0x141] sm:$0xff]
      %v354 = vld [vmem:[#allocation2 + $0x151] sm:$0xff]
      %v355 = vld [vmem:[#allocation2 + $0x159] sm:$0xff]
      %v356 = vld [vmem:[#allocation2 + $0x169] sm:$0xff]
      %v357 = vld [vmem:[#allocation2 + $0x171] sm:$0xff]
      %v358 = vld [vmem:[#allocation2 + $0x2] sm:$0xff]
      %v359 = vld [vmem:[#allocation2 + $0xa] sm:$0xff]
      %v360 = vld [vmem:[#allocation2 + $0x1a] sm:$0xff]
      %v361 = vld [vmem:[#allocation2 + $0x22] sm:$0xff]
      %v362 = vld [vmem:[#allocation2 + $0x32] sm:$0xff]
      %v363 = vld [vmem:[#allocation2 + $0x3a] sm:$0xff]
      %v364 = vld [vmem:[#allocation2 + $0x4a] sm:$0xff]
      %v365 = vld [vmem:[#allocation2 + $0x52] sm:$0xff]
      %v366 = vld [vmem:[#allocation2 + $0x62] sm:$0xff]
      %v367 = vld [vmem:[#allocation2 + $0x6a] sm:$0xff]
      %v368 = vld [vmem:[#allocation2 + $0x7a] sm:$0xff]
      %v369 = vld [vmem:[#allocation2 + $0x82] sm:$0xff]
      %v370 = vld [vmem:[#allocation2 + $0x92] sm:$0xff]
      %v371 = vld [vmem:[#allocation2 + $0x9a] sm:$0xff]
      %v372 = vld [vmem:[#allocation2 + $0xaa] sm:$0xff]
      %v373 = vld [vmem:[#allocation2 + $0xb2] sm:$0xff]
      %v374 = vld [vmem:[#allocation2 + $0xc2] sm:$0xff]
      %v375 = vld [vmem:[#allocation2 + $0xca] sm:$0xff]
      %v376 = vld [vmem:[#allocation2 + $0xda] sm:$0xff]
      %v377 = vld [vmem:[#allocation2 + $0xe2] sm:$0xff]
      %v378 = vld [vmem:[#allocation2 + $0xf2] sm:$0xff]
      %v379 = vld [vmem:[#allocation2 + $0xfa] sm:$0xff]
      %v380 = vld [vmem:[#allocation2 + $0x10a] sm:$0xff]
      %v381 = vld [vmem:[#allocation2 + $0x112] sm:$0xff]
      %v382 = vld [vmem:[#allocation2 + $0x122] sm:$0xff]
      %v383 = vld [vmem:[#allocation2 + $0x12a] sm:$0xff]
      %v384 = vld [vmem:[#allocation2 + $0x13a] sm:$0xff]
      %v385 = vld [vmem:[#allocation2 + $0x142] sm:$0xff]
      %v386 = vld [vmem:[#allocation2 + $0x152] sm:$0xff]
      %v387 = vld [vmem:[#allocation2 + $0x15a] sm:$0xff]
      %v388 = vld [vmem:[#allocation2 + $0x16a] sm:$0xff]
      %v389 = vld [vmem:[#allocation2 + $0x172] sm:$0xff]
      %v390 = vld [vmem:[%s261] sm:$0xff]
      %v391 = vld [vmem:[%s261 + $0x8] sm:$0xff]
      %v392 = vld [vmem:[%s261 + $0x18] sm:$0xff]
      %v393 = vld [vmem:[%s261 + $0x20] sm:$0xff]
      %v394 = vld [vmem:[%s261 + $0x30] sm:$0xff]
      %v395 = vld [vmem:[%s261 + $0x38] sm:$0xff]
      %v396 = vld [vmem:[%s261 + $0x48] sm:$0xff]
      %v397 = vld [vmem:[%s261 + $0x50] sm:$0xff]
      %v398 = vld [vmem:[%s261 + $0x60] sm:$0xff]
      %v399 = vld [vmem:[%s261 + $0x68] sm:$0xff]
      %v400 = vld [vmem:[%s261 + $0x78] sm:$0xff]
      %v401 = vld [vmem:[%s261 + $0x80] sm:$0xff]
      %v402 = vld [vmem:[%s261 + $0x90] sm:$0xff]
      %v403 = vld [vmem:[%s261 + $0x98] sm:$0xff]
      %v404 = vld [vmem:[%s261 + $0xa8] sm:$0xff]
      %v405 = vld [vmem:[%s261 + $0xb0] sm:$0xff]
      %v406 = vld [vmem:[%s261 + $0xc0] sm:$0xff]
      %v407 = vld [vmem:[%s261 + $0xc8] sm:$0xff]
      %v408 = vld [vmem:[%s261 + $0xd8] sm:$0xff]
      %v409 = vld [vmem:[%s261 + $0xe0] sm:$0xff]
      %v410 = vld [vmem:[%s261 + $0xf0] sm:$0xff]
      %v411 = vld [vmem:[%s261 + $0xf8] sm:$0xff]
      %v412 = vld [vmem:[%s261 + $0x108] sm:$0xff]
      %v413 = vld [vmem:[%s261 + $0x110] sm:$0xff]
      %v414 = vld [vmem:[%s261 + $0x120] sm:$0xff]
      %v415 = vld [vmem:[%s261 + $0x128] sm:$0xff]
      %v416 = vld [vmem:[%s261 + $0x138] sm:$0xff]
      %v417 = vld [vmem:[%s261 + $0x140] sm:$0xff]
      %v418 = vld [vmem:[%s261 + $0x150] sm:$0xff]
      %v419 = vld [vmem:[%s261 + $0x158] sm:$0xff]
      %v420 = vld [vmem:[%s261 + $0x168] sm:$0xff]
      %v421 = vld [vmem:[%s261 + $0x170] sm:$0xff]
      %v422 = vld [vmem:[%s261 + $0x1] sm:$0xff]
      %v423 = vld [vmem:[%s261 + $0x9] sm:$0xff]
      %v424 = vld [vmem:[%s261 + $0x19] sm:$0xff]
      %v425 = vld [vmem:[%s261 + $0x21] sm:$0xff]
      %v426 = vld [vmem:[%s261 + $0x31] sm:$0xff]
      %v427 = vld [vmem:[%s261 + $0x39] sm:$0xff]
      %v428 = vld [vmem:[%s261 + $0x49] sm:$0xff]
      %v429 = vld [vmem:[%s261 + $0x51] sm:$0xff]
      %v430 = vld [vmem:[%s261 + $0x61] sm:$0xff]
      %v431 = vld [vmem:[%s261 + $0x69] sm:$0xff]
      %v432 = vld [vmem:[%s261 + $0x79] sm:$0xff]
      %v433 = vld [vmem:[%s261 + $0x81] sm:$0xff]
      %v434 = vld [vmem:[%s261 + $0x91] sm:$0xff]
      %v435 = vld [vmem:[%s261 + $0x99] sm:$0xff]
      %v436 = vld [vmem:[%s261 + $0xa9] sm:$0xff]
      %v437 = vld [vmem:[%s261 + $0xb1] sm:$0xff]
      %v438 = vld [vmem:[%s261 + $0xc1] sm:$0xff]
      %v439 = vld [vmem:[%s261 + $0xc9] sm:$0xff]
      %v440 = vld [vmem:[%s261 + $0xd9] sm:$0xff]
      %v441 = vld [vmem:[%s261 + $0xe1] sm:$0xff]
      %v442 = vld [vmem:[%s261 + $0xf1] sm:$0xff]
      %v443 = vld [vmem:[%s261 + $0xf9] sm:$0xff]
      %v444 = vld [vmem:[%s261 + $0x109] sm:$0xff]
      %v445 = vld [vmem:[%s261 + $0x111] sm:$0xff]
      %v446 = vld [vmem:[%s261 + $0x121] sm:$0xff]
      %v447 = vld [vmem:[%s261 + $0x129] sm:$0xff]
      %v448 = vld [vmem:[%s261 + $0x139] sm:$0xff]
      %v449 = vld [vmem:[%s261 + $0x141] sm:$0xff]
      %v450 = vld [vmem:[%s261 + $0x151] sm:$0xff]
      %v451 = vld [vmem:[%s261 + $0x159] sm:$0xff]
      %v452 = vld [vmem:[%s261 + $0x169] sm:$0xff]
      %v453 = vld [vmem:[%s261 + $0x171] sm:$0xff]
      %v454 = vld [vmem:[%s261 + $0x2] sm:$0xff]
      %v455 = vld [vmem:[%s261 + $0xa] sm:$0xff]
      %v456 = vld [vmem:[%s261 + $0x1a] sm:$0xff]
      %v457 = vld [vmem:[%s261 + $0x22] sm:$0xff]
      %v458 = vld [vmem:[%s261 + $0x32] sm:$0xff]
      %v459 = vld [vmem:[%s261 + $0x3a] sm:$0xff]
      %v460 = vld [vmem:[%s261 + $0x4a] sm:$0xff]
      %v461 = vld [vmem:[%s261 + $0x52] sm:$0xff]
      %v462 = vld [vmem:[%s261 + $0x62] sm:$0xff]
      %v463 = vld [vmem:[%s261 + $0x6a] sm:$0xff]
      %v464 = vld [vmem:[%s261 + $0x7a] sm:$0xff]
      %v465 = vld [vmem:[%s261 + $0x82] sm:$0xff]
      %v466 = vld [vmem:[%s261 + $0x92] sm:$0xff]
      %v467 = vld [vmem:[%s261 + $0x9a] sm:$0xff]
      %v468 = vld [vmem:[%s261 + $0xaa] sm:$0xff]
      %v469 = vld [vmem:[%s261 + $0xb2] sm:$0xff]
      %v470 = vld [vmem:[%s261 + $0xc2] sm:$0xff]
      %v471 = vld [vmem:[%s261 + $0xca] sm:$0xff]
      %v472 = vld [vmem:[%s261 + $0xda] sm:$0xff]
      %v473 = vld [vmem:[%s261 + $0xe2] sm:$0xff]
      %v474 = vld [vmem:[%s261 + $0xf2] sm:$0xff]
      %v475 = vld [vmem:[%s261 + $0xfa] sm:$0xff]
      %v476 = vld [vmem:[%s261 + $0x10a] sm:$0xff]
      %v477 = vld [vmem:[%s261 + $0x112] sm:$0xff]
      %v478 = vld [vmem:[%s261 + $0x122] sm:$0xff]
      %v479 = vld [vmem:[%s261 + $0x12a] sm:$0xff]
      %v480 = vld [vmem:[%s261 + $0x13a] sm:$0xff]
      %v481 = vld [vmem:[%s261 + $0x142] sm:$0xff]
      %v482 = vld [vmem:[%s261 + $0x152] sm:$0xff]
      %v483 = vld [vmem:[%s261 + $0x15a] sm:$0xff]
      %v484 = vld [vmem:[%s261 + $0x16a] sm:$0xff]
      %v485 = vld [vmem:[%s261 + $0x172] sm:$0xff]
      %s486 = scalar_lea.vmem [#allocation2], 48
      %v487 = vld [vmem:[%s486] sm:$0xff]
      %v488 = vld [vmem:[%s486 + $0x8] sm:$0xff]
      %v489 = vld [vmem:[%s486 + $0x18] sm:$0xff]
      %v490 = vld [vmem:[%s486 + $0x20] sm:$0xff]
      %v491 = vld [vmem:[%s486 + $0x30] sm:$0xff]
      %v492 = vld [vmem:[%s486 + $0x38] sm:$0xff]
      %v493 = vld [vmem:[%s486 + $0x48] sm:$0xff]
      %v494 = vld [vmem:[%s486 + $0x50] sm:$0xff]
      %v495 = vld [vmem:[%s486 + $0x60] sm:$0xff]
      %v496 = vld [vmem:[%s486 + $0x68] sm:$0xff]
      %v497 = vld [vmem:[%s486 + $0x78] sm:$0xff]
      %v498 = vld [vmem:[%s486 + $0x80] sm:$0xff]
      %v499 = vld [vmem:[%s486 + $0x90] sm:$0xff]
      %v500 = vld [vmem:[%s486 + $0x98] sm:$0xff]
      %v501 = vld [vmem:[%s486 + $0xa8] sm:$0xff]
      %v502 = vld [vmem:[%s486 + $0xb0] sm:$0xff]
      %v503 = vld [vmem:[%s486 + $0xc0] sm:$0xff]
      %v504 = vld [vmem:[%s486 + $0xc8] sm:$0xff]
      %v505 = vld [vmem:[%s486 + $0xd8] sm:$0xff]
      %v506 = vld [vmem:[%s486 + $0xe0] sm:$0xff]
      %v507 = vld [vmem:[%s486 + $0xf0] sm:$0xff]
      %v508 = vld [vmem:[%s486 + $0xf8] sm:$0xff]
      %v509 = vld [vmem:[%s486 + $0x108] sm:$0xff]
      %v510 = vld [vmem:[%s486 + $0x110] sm:$0xff]
      %v511 = vld [vmem:[%s486 + $0x120] sm:$0xff]
      %v512 = vld [vmem:[%s486 + $0x128] sm:$0xff]
      %v513 = vld [vmem:[%s486 + $0x138] sm:$0xff]
      %v514 = vld [vmem:[%s486 + $0x140] sm:$0xff]
      %v515 = vld [vmem:[%s486 + $0x150] sm:$0xff]
      %v516 = vld [vmem:[%s486 + $0x158] sm:$0xff]
      %v517 = vld [vmem:[%s486 + $0x168] sm:$0xff]
      %v518 = vld [vmem:[%s486 + $0x170] sm:$0xff]
      %v519 = vld [vmem:[%s486 + $0x1] sm:$0xff]
      %v520 = vld [vmem:[%s486 + $0x9] sm:$0xff]
      %v521 = vld [vmem:[%s486 + $0x19] sm:$0xff]
      %v522 = vld [vmem:[%s486 + $0x21] sm:$0xff]
      %v523 = vld [vmem:[%s486 + $0x31] sm:$0xff]
      %v524 = vld [vmem:[%s486 + $0x39] sm:$0xff]
      %v525 = vld [vmem:[%s486 + $0x49] sm:$0xff]
      %v526 = vld [vmem:[%s486 + $0x51] sm:$0xff]
      %v527 = vld [vmem:[%s486 + $0x61] sm:$0xff]
      %v528 = vld [vmem:[%s486 + $0x69] sm:$0xff]
      %v529 = vld [vmem:[%s486 + $0x79] sm:$0xff]
      %v530 = vld [vmem:[%s486 + $0x81] sm:$0xff]
      %v531 = vld [vmem:[%s486 + $0x91] sm:$0xff]
      %v532 = vld [vmem:[%s486 + $0x99] sm:$0xff]
      %v533 = vld [vmem:[%s486 + $0xa9] sm:$0xff]
      %v534 = vld [vmem:[%s486 + $0xb1] sm:$0xff]
      %v535 = vld [vmem:[%s486 + $0xc1] sm:$0xff]
      %v536 = vld [vmem:[%s486 + $0xc9] sm:$0xff]
      %v537 = vld [vmem:[%s486 + $0xd9] sm:$0xff]
      %v538 = vld [vmem:[%s486 + $0xe1] sm:$0xff]
      %v539 = vld [vmem:[%s486 + $0xf1] sm:$0xff]
      %v540 = vld [vmem:[%s486 + $0xf9] sm:$0xff]
      %v541 = vld [vmem:[%s486 + $0x109] sm:$0xff]
      %v542 = vld [vmem:[%s486 + $0x111] sm:$0xff]
      %v543 = vld [vmem:[%s486 + $0x121] sm:$0xff]
      %v544 = vld [vmem:[%s486 + $0x129] sm:$0xff]
      %v545 = vld [vmem:[%s486 + $0x139] sm:$0xff]
      %v546 = vld [vmem:[%s486 + $0x141] sm:$0xff]
      %v547 = vld [vmem:[%s486 + $0x151] sm:$0xff]
      %v548 = vld [vmem:[%s486 + $0x159] sm:$0xff]
      %v549 = vld [vmem:[%s486 + $0x169] sm:$0xff]
      %v550 = vld [vmem:[%s486 + $0x171] sm:$0xff]
      %v551 = vld [vmem:[%s486 + $0x2] sm:$0xff]
      %v552 = vld [vmem:[%s486 + $0xa] sm:$0xff]
      %v553 = vld [vmem:[%s486 + $0x1a] sm:$0xff]
      %v554 = vld [vmem:[%s486 + $0x22] sm:$0xff]
      %v555 = vld [vmem:[%s486 + $0x32] sm:$0xff]
      %v556 = vld [vmem:[%s486 + $0x3a] sm:$0xff]
      %v557 = vld [vmem:[%s486 + $0x4a] sm:$0xff]
      %v558 = vld [vmem:[%s486 + $0x52] sm:$0xff]
      %v559 = vld [vmem:[%s486 + $0x62] sm:$0xff]
      %v560 = vld [vmem:[%s486 + $0x6a] sm:$0xff]
      %v561 = vld [vmem:[%s486 + $0x7a] sm:$0xff]
      %v562 = vld [vmem:[%s486 + $0x82] sm:$0xff]
      %v563 = vld [vmem:[%s486 + $0x92] sm:$0xff]
      %v564 = vld [vmem:[%s486 + $0x9a] sm:$0xff]
      %v565 = vld [vmem:[%s486 + $0xaa] sm:$0xff]
      %v566 = vld [vmem:[%s486 + $0xb2] sm:$0xff]
      %v567 = vld [vmem:[%s486 + $0xc2] sm:$0xff]
      %v568 = vld [vmem:[%s486 + $0xca] sm:$0xff]
      %v569 = vld [vmem:[%s486 + $0xda] sm:$0xff]
      %v570 = vld [vmem:[%s486 + $0xe2] sm:$0xff]
      %v571 = vld [vmem:[%s486 + $0xf2] sm:$0xff]
      %v572 = vld [vmem:[%s486 + $0xfa] sm:$0xff]
      %v573 = vld [vmem:[%s486 + $0x10a] sm:$0xff]
      %v574 = vld [vmem:[%s486 + $0x112] sm:$0xff]
      %v575 = vld [vmem:[%s486 + $0x122] sm:$0xff]
      %v576 = vld [vmem:[%s486 + $0x12a] sm:$0xff]
      %v577 = vld [vmem:[%s486 + $0x13a] sm:$0xff]
      %v578 = vld [vmem:[%s486 + $0x142] sm:$0xff]
      %v579 = vld [vmem:[%s486 + $0x152] sm:$0xff]
      %v580 = vld [vmem:[%s486 + $0x15a] sm:$0xff]
      %v581 = vld [vmem:[%s486 + $0x16a] sm:$0xff]
      %v582 = vld [vmem:[%s486 + $0x172] sm:$0xff]
      %v583 = vpack.c.bf16 %v295, %v294
      %v584 = vpack.c.bf16 %v327, %v326
      %v585 = vpack.c.bf16 %v359, %v358
      %v586 = vpack.c.bf16 %v391, %v390
      %v587 = vpack.c.bf16 %v423, %v422
      %v588 = vpack.c.bf16 %v455, %v454
      %v589 = vpack.c.bf16 %v488, %v487
      %v590 = vpack.c.bf16 %v520, %v519
      %v591 = vpack.c.bf16 %v552, %v551
      %v592 = vpack.c.bf16 %v297, %v296
      %v593 = vpack.c.bf16 %v329, %v328
      %v594 = vpack.c.bf16 %v361, %v360
      %v595 = vpack.c.bf16 %v393, %v392
      %v596 = vpack.c.bf16 %v425, %v424
      %v597 = vpack.c.bf16 %v457, %v456
      %v598 = vpack.c.bf16 %v490, %v489
      %v599 = vpack.c.bf16 %v522, %v521
      %v600 = vpack.c.bf16 %v554, %v553
      %v601 = vpack.c.bf16 %v299, %v298
      %v602 = vpack.c.bf16 %v331, %v330
      %v603 = vpack.c.bf16 %v363, %v362
      %v604 = vpack.c.bf16 %v395, %v394
      %v605 = vpack.c.bf16 %v427, %v426
      %v606 = vpack.c.bf16 %v459, %v458
      %v607 = vpack.c.bf16 %v492, %v491
      %v608 = vpack.c.bf16 %v524, %v523
      %v609 = vpack.c.bf16 %v556, %v555
      %v610 = vpack.c.bf16 %v301, %v300
      %v611 = vpack.c.bf16 %v333, %v332
      %v612 = vpack.c.bf16 %v365, %v364
      %v613 = vpack.c.bf16 %v397, %v396
      %v614 = vpack.c.bf16 %v429, %v428
      %v615 = vpack.c.bf16 %v461, %v460
      %v616 = vpack.c.bf16 %v494, %v493
      %v617 = vpack.c.bf16 %v526, %v525
      %v618 = vpack.c.bf16 %v558, %v557
      %v619 = vpack.c.bf16 %v303, %v302
      %v620 = vpack.c.bf16 %v335, %v334
      %v621 = vpack.c.bf16 %v367, %v366
      %v622 = vpack.c.bf16 %v399, %v398
      %v623 = vpack.c.bf16 %v431, %v430
      %v624 = vpack.c.bf16 %v463, %v462
      %v625 = vpack.c.bf16 %v496, %v495
      %v626 = vpack.c.bf16 %v528, %v527
      %v627 = vpack.c.bf16 %v560, %v559
      %v628 = vpack.c.bf16 %v305, %v304
      %v629 = vpack.c.bf16 %v337, %v336
      %v630 = vpack.c.bf16 %v369, %v368
      %v631 = vpack.c.bf16 %v401, %v400
      %v632 = vpack.c.bf16 %v433, %v432
      %v633 = vpack.c.bf16 %v465, %v464
      %v634 = vpack.c.bf16 %v498, %v497
      %v635 = vpack.c.bf16 %v530, %v529
      %v636 = vpack.c.bf16 %v562, %v561
      %v637 = vpack.c.bf16 %v307, %v306
      %v638 = vpack.c.bf16 %v339, %v338
      %v639 = vpack.c.bf16 %v371, %v370
      %v640 = vpack.c.bf16 %v403, %v402
      %v641 = vpack.c.bf16 %v435, %v434
      %v642 = vpack.c.bf16 %v467, %v466
      %v643 = vpack.c.bf16 %v500, %v499
      %v644 = vpack.c.bf16 %v532, %v531
      %v645 = vpack.c.bf16 %v564, %v563
      %v646 = vpack.c.bf16 %v309, %v308
      %v647 = vpack.c.bf16 %v341, %v340
      %v648 = vpack.c.bf16 %v373, %v372
      %v649 = vpack.c.bf16 %v405, %v404
      %v650 = vpack.c.bf16 %v437, %v436
      %v651 = vpack.c.bf16 %v469, %v468
      %v652 = vpack.c.bf16 %v502, %v501
      %v653 = vpack.c.bf16 %v534, %v533
      %v654 = vpack.c.bf16 %v566, %v565
      %v655 = vpack.c.bf16 %v311, %v310
      %v656 = vpack.c.bf16 %v343, %v342
      %v657 = vpack.c.bf16 %v375, %v374
      %v658 = vpack.c.bf16 %v407, %v406
      %v659 = vpack.c.bf16 %v439, %v438
      %v660 = vpack.c.bf16 %v471, %v470
      %v661 = vpack.c.bf16 %v504, %v503
      %v662 = vpack.c.bf16 %v536, %v535
      %v663 = vpack.c.bf16 %v568, %v567
      %v664 = vpack.c.bf16 %v313, %v312
      %v665 = vpack.c.bf16 %v345, %v344
      %v666 = vpack.c.bf16 %v377, %v376
      %v667 = vpack.c.bf16 %v409, %v408
      %v668 = vpack.c.bf16 %v441, %v440
      %v669 = vpack.c.bf16 %v473, %v472
      %v670 = vpack.c.bf16 %v506, %v505
      %v671 = vpack.c.bf16 %v538, %v537
      %v672 = vpack.c.bf16 %v570, %v569
      %v673 = vpack.c.bf16 %v315, %v314
      %v674 = vpack.c.bf16 %v347, %v346
      %v675 = vpack.c.bf16 %v379, %v378
      %v676 = vpack.c.bf16 %v411, %v410
      %v677 = vpack.c.bf16 %v443, %v442
      %v678 = vpack.c.bf16 %v475, %v474
      %v679 = vpack.c.bf16 %v508, %v507
      %v680 = vpack.c.bf16 %v540, %v539
      %v681 = vpack.c.bf16 %v572, %v571
      %v682 = vpack.c.bf16 %v317, %v316
      %v683 = vpack.c.bf16 %v349, %v348
      %v684 = vpack.c.bf16 %v381, %v380
      %v685 = vpack.c.bf16 %v413, %v412
      %v686 = vpack.c.bf16 %v445, %v444
      %v687 = vpack.c.bf16 %v477, %v476
      %v688 = vpack.c.bf16 %v510, %v509
      %v689 = vpack.c.bf16 %v542, %v541
      %v690 = vpack.c.bf16 %v574, %v573
      %v691 = vpack.c.bf16 %v319, %v318
      %v692 = vpack.c.bf16 %v351, %v350
      %v693 = vpack.c.bf16 %v383, %v382
      %v694 = vpack.c.bf16 %v415, %v414
      %v695 = vpack.c.bf16 %v447, %v446
      %v696 = vpack.c.bf16 %v479, %v478
      %v697 = vpack.c.bf16 %v512, %v511
      %v698 = vpack.c.bf16 %v544, %v543
      %v699 = vpack.c.bf16 %v576, %v575
      %v700 = vpack.c.bf16 %v321, %v320
      %v701 = vpack.c.bf16 %v353, %v352
      %v702 = vpack.c.bf16 %v385, %v384
      %v703 = vpack.c.bf16 %v417, %v416
      %v704 = vpack.c.bf16 %v449, %v448
      %v705 = vpack.c.bf16 %v481, %v480
      %v706 = vpack.c.bf16 %v514, %v513
      %v707 = vpack.c.bf16 %v546, %v545
      %v708 = vpack.c.bf16 %v578, %v577
      %v709 = vpack.c.bf16 %v323, %v322
      %v710 = vpack.c.bf16 %v355, %v354
      %v711 = vpack.c.bf16 %v387, %v386
      %v712 = vpack.c.bf16 %v419, %v418
      %v713 = vpack.c.bf16 %v451, %v450
      %v714 = vpack.c.bf16 %v483, %v482
      %v715 = vpack.c.bf16 %v516, %v515
      %v716 = vpack.c.bf16 %v548, %v547
      %v717 = vpack.c.bf16 %v580, %v579
      %v718 = vpack.c.bf16 %v325, %v324
      %v719 = vpack.c.bf16 %v357, %v356
      %v720 = vpack.c.bf16 %v389, %v388
      %v721 = vpack.c.bf16 %v421, %v420
      %v722 = vpack.c.bf16 %v453, %v452
      %v723 = vpack.c.bf16 %v485, %v484
      %v724 = vpack.c.bf16 %v518, %v517
      %v725 = vpack.c.bf16 %v550, %v549
      %v726 = vpack.c.bf16 %v582, %v581
      %v727 = vld [vmem:[%s1] sm:$0xf]
      %v728 = vld [vmem:[%s1 + $0x4] sm:$0xf]
      %v729 = vld [vmem:[%s1 + $0x8] sm:$0xf]
      %v730 = vld [vmem:[%s1 + $0xc] sm:$0xf]
      %v731 = vld [vmem:[%s1 + $0x10] sm:$0xf]
      %v732 = vld [vmem:[%s1 + $0x14] sm:$0xf]
      %v733 = vld [vmem:[%s1 + $0x18] sm:$0xf]
      %v734 = vld [vmem:[%s1 + $0x1c] sm:$0xf]
      %v735 = vld [vmem:[%s1 + $0x20] sm:$0xf]
      %v736 = vld [vmem:[%s1 + $0x24] sm:$0xf]
      %v737 = vld [vmem:[%s1 + $0x28] sm:$0xf]
      %v738 = vld [vmem:[%s1 + $0x2c] sm:$0xf]
      %v739 = vld [vmem:[%s1 + $0x30] sm:$0xf]
      %v740 = vld [vmem:[%s1 + $0x34] sm:$0xf]
      %v741 = vld [vmem:[%s1 + $0x38] sm:$0xf]
      %v742 = vld [vmem:[%s1 + $0x3c] sm:$0xf]
      %v743 = vld [vmem:[%s1 + $0x40] sm:$0xf]
      %v744 = vld [vmem:[%s1 + $0x44] sm:$0xf]
      %v745 = vld [vmem:[%s1 + $0x48] sm:$0xf]
      %v746 = vld [vmem:[%s1 + $0x4c] sm:$0xf]
      %v747 = vld [vmem:[%s1 + $0x50] sm:$0xf]
      %v748 = vld [vmem:[%s1 + $0x54] sm:$0xf]
      %v749 = vld [vmem:[%s1 + $0x58] sm:$0xf]
      %v750 = vld [vmem:[%s1 + $0x5c] sm:$0xf]
      %v751 = vld [vmem:[%s1 + $0x60] sm:$0xf]
      %v752 = vld [vmem:[%s1 + $0x64] sm:$0xf]
      %v753 = vld [vmem:[%s1 + $0x68] sm:$0xf]
      %v754 = vld [vmem:[%s1 + $0x6c] sm:$0xf]
      %v755 = vld [vmem:[%s1 + $0x70] sm:$0xf]
      %v756 = vld [vmem:[%s1 + $0x74] sm:$0xf]
      %v757 = vld [vmem:[%s1 + $0x78] sm:$0xf]
      %v758 = vld [vmem:[%s1 + $0x7c] sm:$0xf]
      %v759 = vld [vmem:[%s1 + $0x80] sm:$0xf]
      %v760 = vld [vmem:[%s1 + $0x84] sm:$0xf]
      %v761 = vld [vmem:[%s1 + $0x88] sm:$0xf]
      %v762 = vld [vmem:[%s1 + $0x8c] sm:$0xf]
      %v763 = vld [vmem:[%s1 + $0x90] sm:$0xf]
      %v764 = vld [vmem:[%s1 + $0x94] sm:$0xf]
      %v765 = vld [vmem:[%s1 + $0x98] sm:$0xf]
      %v766 = vld [vmem:[%s1 + $0x9c] sm:$0xf]
      %v767 = vld [vmem:[%s1 + $0xa0] sm:$0xf]
      %v768 = vld [vmem:[%s1 + $0xa4] sm:$0xf]
      %v769 = vld [vmem:[%s1 + $0xa8] sm:$0xf]
      %v770 = vld [vmem:[%s1 + $0xac] sm:$0xf]
      %v771 = vld [vmem:[%s1 + $0xb0] sm:$0xf]
      %v772 = vld [vmem:[%s1 + $0xb4] sm:$0xf]
      %v773 = vld [vmem:[%s1 + $0xb8] sm:$0xf]
      %v774 = vld [vmem:[%s1 + $0xbc] sm:$0xf]
      %v775 = vld [vmem:[%s1 + $0xc0] sm:$0xf]
      %v776 = vld [vmem:[%s1 + $0xc4] sm:$0xf]
      %v777 = vld [vmem:[%s1 + $0xc8] sm:$0xf]
      %v778 = vld [vmem:[%s1 + $0xcc] sm:$0xf]
      %v779 = vld [vmem:[%s1 + $0xd0] sm:$0xf]
      %v780 = vld [vmem:[%s1 + $0xd4] sm:$0xf]
      %v781 = vld [vmem:[%s1 + $0xd8] sm:$0xf]
      %v782 = vld [vmem:[%s1 + $0xdc] sm:$0xf]
      %v783 = vld [vmem:[%s1 + $0xe0] sm:$0xf]
      %v784 = vld [vmem:[%s1 + $0xe4] sm:$0xf]
      %v785 = vld [vmem:[%s1 + $0xe8] sm:$0xf]
      %v786 = vld [vmem:[%s1 + $0xec] sm:$0xf]
      %v787 = vld [vmem:[%s1 + $0xf0] sm:$0xf]
      %v788 = vld [vmem:[%s1 + $0xf4] sm:$0xf]
      %v789 = vld [vmem:[%s1 + $0xf8] sm:$0xf]
      %v790 = vld [vmem:[%s1 + $0xfc] sm:$0xf]
      %v791 = vld [vmem:[%s1 + $0x100] sm:$0xf]
      %v792 = vld [vmem:[%s1 + $0x104] sm:$0xf]
      %v793 = vld [vmem:[%s1 + $0x108] sm:$0xf]
      %v794 = vld [vmem:[%s1 + $0x10c] sm:$0xf]
      %v795 = vld [vmem:[%s1 + $0x110] sm:$0xf]
      %v796 = vld [vmem:[%s1 + $0x114] sm:$0xf]
      %v797 = vld [vmem:[%s1 + $0x118] sm:$0xf]
      %v798 = vld [vmem:[%s1 + $0x11c] sm:$0xf]
      %v799 = vld [vmem:[%s1 + $0x120] sm:$0xf]
      %v800 = vld [vmem:[%s1 + $0x124] sm:$0xf]
      %v801 = vld [vmem:[%s1 + $0x128] sm:$0xf]
      %v802 = vld [vmem:[%s1 + $0x12c] sm:$0xf]
      %v803 = vld [vmem:[%s1 + $0x130] sm:$0xf]
      %v804 = vld [vmem:[%s1 + $0x134] sm:$0xf]
      %v805 = vld [vmem:[%s1 + $0x138] sm:$0xf]
      %v806 = vld [vmem:[%s1 + $0x13c] sm:$0xf]
      %v807 = vld [vmem:[%s1 + $0x140] sm:$0xf]
      %v808 = vld [vmem:[%s1 + $0x144] sm:$0xf]
      %v809 = vld [vmem:[%s1 + $0x148] sm:$0xf]
      %v810 = vld [vmem:[%s1 + $0x14c] sm:$0xf]
      %v811 = vld [vmem:[%s1 + $0x150] sm:$0xf]
      %v812 = vld [vmem:[%s1 + $0x154] sm:$0xf]
      %v813 = vld [vmem:[%s1 + $0x158] sm:$0xf]
      %v814 = vld [vmem:[%s1 + $0x15c] sm:$0xf]
      %v815 = vld [vmem:[%s1 + $0x160] sm:$0xf]
      %v816 = vld [vmem:[%s1 + $0x164] sm:$0xf]
      %v817 = vld [vmem:[%s1 + $0x168] sm:$0xf]
      %v818 = vld [vmem:[%s1 + $0x16c] sm:$0xf]
      %v819 = vld [vmem:[%s1 + $0x170] sm:$0xf]
      %v820 = vld [vmem:[%s1 + $0x174] sm:$0xf]
      %v821 = vld [vmem:[%s1 + $0x178] sm:$0xf]
      %v822 = vld [vmem:[%s1 + $0x17c] sm:$0xf]
      %v823 = vld [vmem:[%s1 + $0x180] sm:$0xf]
      %v824 = vld [vmem:[%s1 + $0x184] sm:$0xf]
      %v825 = vld [vmem:[%s1 + $0x188] sm:$0xf]
      %v826 = vld [vmem:[%s1 + $0x18c] sm:$0xf]
      %v827 = vld [vmem:[%s1 + $0x190] sm:$0xf]
      %v828 = vld [vmem:[%s1 + $0x194] sm:$0xf]
      %v829 = vld [vmem:[%s1 + $0x198] sm:$0xf]
      %v830 = vld [vmem:[%s1 + $0x19c] sm:$0xf]
      %v831 = vld [vmem:[%s1 + $0x1a0] sm:$0xf]
      %v832 = vld [vmem:[%s1 + $0x1a4] sm:$0xf]
      %v833 = vld [vmem:[%s1 + $0x1a8] sm:$0xf]
      %v834 = vld [vmem:[%s1 + $0x1ac] sm:$0xf]
      %v835 = vld [vmem:[%s1 + $0x1b0] sm:$0xf]
      %v836 = vld [vmem:[%s1 + $0x1b4] sm:$0xf]
      %v837 = vld [vmem:[%s1 + $0x1b8] sm:$0xf]
      %v838 = vld [vmem:[%s1 + $0x1bc] sm:$0xf]
      %v839 = vld [vmem:[%s1 + $0x1c0] sm:$0xf]
      %v840 = vld [vmem:[%s1 + $0x1c4] sm:$0xf]
      %v841 = vld [vmem:[%s1 + $0x1c8] sm:$0xf]
      %v842 = vld [vmem:[%s1 + $0x1cc] sm:$0xf]
      %v843 = vld [vmem:[%s1 + $0x1d0] sm:$0xf]
      %v844 = vld [vmem:[%s1 + $0x1d4] sm:$0xf]
      %v845 = vld [vmem:[%s1 + $0x1d8] sm:$0xf]
      %v846 = vld [vmem:[%s1 + $0x1dc] sm:$0xf]
      %v847 = vld [vmem:[%s1 + $0x1e0] sm:$0xf]
      %v848 = vld [vmem:[%s1 + $0x1e4] sm:$0xf]
      %v849 = vld [vmem:[%s1 + $0x1e8] sm:$0xf]
      %v850 = vld [vmem:[%s1 + $0x1ec] sm:$0xf]
      %v851 = vld [vmem:[%s1 + $0x1f0] sm:$0xf]
      %v852 = vld [vmem:[%s1 + $0x1f4] sm:$0xf]
      %v853 = vld [vmem:[%s1 + $0x1f8] sm:$0xf]
      %v854 = vld [vmem:[%s1 + $0x1fc] sm:$0xf]
      %v855 = vld [vmem:[%s1 + $0x200] sm:$0xf]
      %v856 = vld [vmem:[%s1 + $0x204] sm:$0xf]
      %v857 = vld [vmem:[%s1 + $0x208] sm:$0xf]
      %v858 = vld [vmem:[%s1 + $0x20c] sm:$0xf]
      %v859 = vld [vmem:[%s1 + $0x210] sm:$0xf]
      %v860 = vld [vmem:[%s1 + $0x214] sm:$0xf]
      %v861 = vld [vmem:[%s1 + $0x218] sm:$0xf]
      %v862 = vld [vmem:[%s1 + $0x21c] sm:$0xf]
      %v863 = vld [vmem:[%s1 + $0x220] sm:$0xf]
      %v864 = vld [vmem:[%s1 + $0x224] sm:$0xf]
      %v865 = vld [vmem:[%s1 + $0x228] sm:$0xf]
      %v866 = vld [vmem:[%s1 + $0x22c] sm:$0xf]
      %v867 = vld [vmem:[%s1 + $0x230] sm:$0xf]
      %v868 = vld [vmem:[%s1 + $0x234] sm:$0xf]
      %v869 = vld [vmem:[%s1 + $0x238] sm:$0xf]
      %v870 = vld [vmem:[%s1 + $0x23c] sm:$0xf]
      %v1015 = vunpack.c.l.b16 %v727
      %v1016 = vunpack.c.l.b16 %v728
      %v1017 = vunpack.c.l.b16 %v729
      %v1018 = vunpack.c.l.b16 %v730
      %v1019 = vunpack.c.l.b16 %v731
      %v1020 = vunpack.c.l.b16 %v732
      %v1021 = vunpack.c.l.b16 %v733
      %v1022 = vunpack.c.l.b16 %v734
      %v1023 = vunpack.c.l.b16 %v735
      %v1024 = vunpack.c.l.b16 %v736
      %v1025 = vunpack.c.l.b16 %v737
      %v1026 = vunpack.c.l.b16 %v738
      %v1027 = vunpack.c.l.b16 %v739
      %v1028 = vunpack.c.l.b16 %v740
      %v1029 = vunpack.c.l.b16 %v741
      %v1030 = vunpack.c.l.b16 %v742
      %v1031 = vunpack.c.l.b16 %v743
      %v1032 = vunpack.c.l.b16 %v744
      %v1033 = vunpack.c.l.b16 %v745
      %v1034 = vunpack.c.l.b16 %v746
      %v1035 = vunpack.c.l.b16 %v747
      %v1036 = vunpack.c.l.b16 %v748
      %v1037 = vunpack.c.l.b16 %v749
      %v1038 = vunpack.c.l.b16 %v750
      %v1039 = vunpack.c.l.b16 %v751
      %v1040 = vunpack.c.l.b16 %v752
      %v1041 = vunpack.c.l.b16 %v753
      %v1042 = vunpack.c.l.b16 %v754
      %v1043 = vunpack.c.l.b16 %v755
      %v1044 = vunpack.c.l.b16 %v756
      %v1045 = vunpack.c.l.b16 %v757
      %v1046 = vunpack.c.l.b16 %v758
      %v1047 = vunpack.c.l.b16 %v759
      %v1048 = vunpack.c.l.b16 %v760
      %v1049 = vunpack.c.l.b16 %v761
      %v1050 = vunpack.c.l.b16 %v762
      %v1051 = vunpack.c.l.b16 %v763
      %v1052 = vunpack.c.l.b16 %v764
      %v1053 = vunpack.c.l.b16 %v765
      %v1054 = vunpack.c.l.b16 %v766
      %v1055 = vunpack.c.l.b16 %v767
      %v1056 = vunpack.c.l.b16 %v768
      %v1057 = vunpack.c.l.b16 %v769
      %v1058 = vunpack.c.l.b16 %v770
      %v1059 = vunpack.c.l.b16 %v771
      %v1060 = vunpack.c.l.b16 %v772
      %v1061 = vunpack.c.l.b16 %v773
      %v1062 = vunpack.c.l.b16 %v774
      %v1063 = vunpack.c.l.b16 %v775
      %v1064 = vunpack.c.l.b16 %v776
      %v1065 = vunpack.c.l.b16 %v777
      %v1066 = vunpack.c.l.b16 %v778
      %v1067 = vunpack.c.l.b16 %v779
      %v1068 = vunpack.c.l.b16 %v780
      %v1069 = vunpack.c.l.b16 %v781
      %v1070 = vunpack.c.l.b16 %v782
      %v1071 = vunpack.c.l.b16 %v783
      %v1072 = vunpack.c.l.b16 %v784
      %v1073 = vunpack.c.l.b16 %v785
      %v1074 = vunpack.c.l.b16 %v786
      %v1075 = vunpack.c.l.b16 %v787
      %v1076 = vunpack.c.l.b16 %v788
      %v1077 = vunpack.c.l.b16 %v789
      %v1078 = vunpack.c.l.b16 %v790
      %v1079 = vunpack.c.l.b16 %v791
      %v1080 = vunpack.c.l.b16 %v792
      %v1081 = vunpack.c.l.b16 %v793
      %v1082 = vunpack.c.l.b16 %v794
      %v1083 = vunpack.c.l.b16 %v795
      %v1084 = vunpack.c.l.b16 %v796
      %v1085 = vunpack.c.l.b16 %v797
      %v1086 = vunpack.c.l.b16 %v798
      %v1087 = vunpack.c.l.b16 %v799
      %v1088 = vunpack.c.l.b16 %v800
      %v1089 = vunpack.c.l.b16 %v801
      %v1090 = vunpack.c.l.b16 %v802
      %v1091 = vunpack.c.l.b16 %v803
      %v1092 = vunpack.c.l.b16 %v804
      %v1093 = vunpack.c.l.b16 %v805
      %v1094 = vunpack.c.l.b16 %v806
      %v1095 = vunpack.c.l.b16 %v807
      %v1096 = vunpack.c.l.b16 %v808
      %v1097 = vunpack.c.l.b16 %v809
      %v1098 = vunpack.c.l.b16 %v810
      %v1099 = vunpack.c.l.b16 %v811
      %v1100 = vunpack.c.l.b16 %v812
      %v1101 = vunpack.c.l.b16 %v813
      %v1102 = vunpack.c.l.b16 %v814
      %v1103 = vunpack.c.l.b16 %v815
      %v1104 = vunpack.c.l.b16 %v816
      %v1105 = vunpack.c.l.b16 %v817
      %v1106 = vunpack.c.l.b16 %v818
      %v1107 = vunpack.c.l.b16 %v819
      %v1108 = vunpack.c.l.b16 %v820
      %v1109 = vunpack.c.l.b16 %v821
      %v1110 = vunpack.c.l.b16 %v822
      %v1111 = vunpack.c.l.b16 %v823
      %v1112 = vunpack.c.l.b16 %v824
      %v1113 = vunpack.c.l.b16 %v825
      %v1114 = vunpack.c.l.b16 %v826
      %v1115 = vunpack.c.l.b16 %v827
      %v1116 = vunpack.c.l.b16 %v828
      %v1117 = vunpack.c.l.b16 %v829
      %v1118 = vunpack.c.l.b16 %v830
      %v1119 = vunpack.c.l.b16 %v831
      %v1120 = vunpack.c.l.b16 %v832
      %v1121 = vunpack.c.l.b16 %v833
      %v1122 = vunpack.c.l.b16 %v834
      %v1123 = vunpack.c.l.b16 %v835
      %v1124 = vunpack.c.l.b16 %v836
      %v1125 = vunpack.c.l.b16 %v837
      %v1126 = vunpack.c.l.b16 %v838
      %v1127 = vunpack.c.l.b16 %v839
      %v1128 = vunpack.c.l.b16 %v840
      %v1129 = vunpack.c.l.b16 %v841
      %v1130 = vunpack.c.l.b16 %v842
      %v1131 = vunpack.c.l.b16 %v843
      %v1132 = vunpack.c.l.b16 %v844
      %v1133 = vunpack.c.l.b16 %v845
      %v1134 = vunpack.c.l.b16 %v846
      %v1135 = vunpack.c.l.b16 %v847
      %v1136 = vunpack.c.l.b16 %v848
      %v1137 = vunpack.c.l.b16 %v849
      %v1138 = vunpack.c.l.b16 %v850
      %v1139 = vunpack.c.l.b16 %v851
      %v1140 = vunpack.c.l.b16 %v852
      %v1141 = vunpack.c.l.b16 %v853
      %v1142 = vunpack.c.l.b16 %v854
      %v1143 = vunpack.c.l.b16 %v855
      %v1144 = vunpack.c.l.b16 %v856
      %v1145 = vunpack.c.l.b16 %v857
      %v1146 = vunpack.c.l.b16 %v858
      %v1147 = vunpack.c.l.b16 %v859
      %v1148 = vunpack.c.l.b16 %v860
      %v1149 = vunpack.c.l.b16 %v861
      %v1150 = vunpack.c.l.b16 %v862
      %v1151 = vunpack.c.l.b16 %v863
      %v1152 = vunpack.c.l.b16 %v864
      %v1153 = vunpack.c.l.b16 %v865
      %v1154 = vunpack.c.l.b16 %v866
      %v1155 = vunpack.c.l.b16 %v867
      %v1156 = vunpack.c.l.b16 %v868
      %v1157 = vunpack.c.l.b16 %v869
      %v1158 = vunpack.c.l.b16 %v870
      %v1159 = vpack.c.b16 %v1016, %v1015
      %v1160 = vpack.c.b16 %v1018, %v1017
      %v1161 = vpack.c.b16 %v1020, %v1019
      %v1162 = vpack.c.b16 %v1022, %v1021
      %v1163 = vpack.c.b16 %v1024, %v1023
      %v1164 = vpack.c.b16 %v1026, %v1025
      %v1165 = vpack.c.b16 %v1028, %v1027
      %v1166 = vpack.c.b16 %v1030, %v1029
      %v1167 = vpack.c.b16 %v1032, %v1031
      %v1168 = vpack.c.b16 %v1034, %v1033
      %v1169 = vpack.c.b16 %v1036, %v1035
      %v1170 = vpack.c.b16 %v1038, %v1037
      %v1171 = vpack.c.b16 %v1040, %v1039
      %v1172 = vpack.c.b16 %v1042, %v1041
      %v1173 = vpack.c.b16 %v1044, %v1043
      %v1174 = vpack.c.b16 %v1046, %v1045
      %v1175 = vpack.c.b16 %v1048, %v1047
      %v1176 = vpack.c.b16 %v1050, %v1049
      %v1177 = vpack.c.b16 %v1052, %v1051
      %v1178 = vpack.c.b16 %v1054, %v1053
      %v1179 = vpack.c.b16 %v1056, %v1055
      %v1180 = vpack.c.b16 %v1058, %v1057
      %v1181 = vpack.c.b16 %v1060, %v1059
      %v1182 = vpack.c.b16 %v1062, %v1061
      %v1183 = vpack.c.b16 %v1064, %v1063
      %v1184 = vpack.c.b16 %v1066, %v1065
      %v1185 = vpack.c.b16 %v1068, %v1067
      %v1186 = vpack.c.b16 %v1070, %v1069
      %v1187 = vpack.c.b16 %v1072, %v1071
      %v1188 = vpack.c.b16 %v1074, %v1073
      %v1189 = vpack.c.b16 %v1076, %v1075
      %v1190 = vpack.c.b16 %v1078, %v1077
      %v1191 = vpack.c.b16 %v1080, %v1079
      %v1192 = vpack.c.b16 %v1082, %v1081
      %v1193 = vpack.c.b16 %v1084, %v1083
      %v1194 = vpack.c.b16 %v1086, %v1085
      %v1195 = vpack.c.b16 %v1088, %v1087
      %v1196 = vpack.c.b16 %v1090, %v1089
      %v1197 = vpack.c.b16 %v1092, %v1091
      %v1198 = vpack.c.b16 %v1094, %v1093
      %v1199 = vpack.c.b16 %v1096, %v1095
      %v1200 = vpack.c.b16 %v1098, %v1097
      %v1201 = vpack.c.b16 %v1100, %v1099
      %v1202 = vpack.c.b16 %v1102, %v1101
      %v1203 = vpack.c.b16 %v1104, %v1103
      %v1204 = vpack.c.b16 %v1106, %v1105
      %v1205 = vpack.c.b16 %v1108, %v1107
      %v1206 = vpack.c.b16 %v1110, %v1109
      %v1207 = vpack.c.b16 %v1112, %v1111
      %v1208 = vpack.c.b16 %v1114, %v1113
      %v1209 = vpack.c.b16 %v1116, %v1115
      %v1210 = vpack.c.b16 %v1118, %v1117
      %v1211 = vpack.c.b16 %v1120, %v1119
      %v1212 = vpack.c.b16 %v1122, %v1121
      %v1213 = vpack.c.b16 %v1124, %v1123
      %v1214 = vpack.c.b16 %v1126, %v1125
      %v1215 = vpack.c.b16 %v1128, %v1127
      %v1216 = vpack.c.b16 %v1130, %v1129
      %v1217 = vpack.c.b16 %v1132, %v1131
      %v1218 = vpack.c.b16 %v1134, %v1133
      %v1219 = vpack.c.b16 %v1136, %v1135
      %v1220 = vpack.c.b16 %v1138, %v1137
      %v1221 = vpack.c.b16 %v1140, %v1139
      %v1222 = vpack.c.b16 %v1142, %v1141
      %v1223 = vpack.c.b16 %v1144, %v1143
      %v1224 = vpack.c.b16 %v1146, %v1145
      %v1225 = vpack.c.b16 %v1148, %v1147
      %v1226 = vpack.c.b16 %v1150, %v1149
      %v1227 = vpack.c.b16 %v1152, %v1151
      %v1228 = vpack.c.b16 %v1154, %v1153
      %v1229 = vpack.c.b16 %v1156, %v1155
      %v1230 = vpack.c.b16 %v1158, %v1157
      %1303 = vmatprep.subr.bf16.mxu0 0
      %1304 = vmatpush1.bf16.msra.mxu0 %v1159
      %1305 = vmatprep.subr.bf16.mxu0 0
      %1306 = vmatpush1.bf16.msra.mxu0 %v1160
      %1307 = vmatprep.subr.bf16.mxu0 0
      %1308 = vmatpush1.bf16.msra.mxu0 %v1161
      %1309 = vmatprep.subr.bf16.mxu0 0
      %1310 = vmatpush1.bf16.msra.mxu0 %v1162
      %1311 = vmatprep.subr.bf16.mxu0 0
      %1312 = vmatpush1.bf16.msra.mxu0 %v1163
      %1313 = vmatprep.subr.bf16.mxu0 0
      %1314 = vmatpush1.bf16.msra.mxu0 %v1164
      %1315 = vmatprep.subr.bf16.mxu0 0
      %1316 = vmatpush1.bf16.msra.mxu0 %v1165
      %1317 = vmatprep.subr.bf16.mxu0 0
      %1318 = vmatpush1.bf16.msra.mxu0 %v1166
      %1319 = vmatprep.subr.bf16.mxu0 0
      %1320 = vmatpush1.bf16.msra.mxu0 %v1167
      %1321 = vmatprep.subr.bf16.mxu0 0
      %1322 = vmatpush1.bf16.msra.mxu0 %v1168
      %1323 = vmatprep.subr.bf16.mxu0 0
      %1324 = vmatpush1.bf16.msra.mxu0 %v1169
      %1325 = vmatprep.subr.bf16.mxu0 0
      %1326 = vmatpush1.bf16.msra.mxu0 %v1170
      %1327 = vmatprep.subr.bf16.mxu0 0
      %1328 = vmatpush1.bf16.msra.mxu0 %v1171
      %1329 = vmatprep.subr.bf16.mxu0 0
      %1330 = vmatpush1.bf16.msra.mxu0 %v1172
      %1331 = vmatprep.subr.bf16.mxu0 0
      %1332 = vmatpush1.bf16.msra.mxu0 %v1173
      %1333 = vmatprep.subr.bf16.mxu0 0
      %1334 = vmatpush1.bf16.msra.mxu0 %v1174
      %1335 = vmatprep.mubr.bf16.mxu0 %v584
      %1336 = vmatmul.mubr.bf16.gmra.mrb[0].mxu0 %v583
      %v1337 = vpop.f32.mrb[0].mxu0
      %v1338 = vadd.f32 0.0, %v1337
      %v1339 = vpop.f32.mrb[0].mxu0
      %v1340 = vpop.f32.mrb[0].mxu0
      %v1341 = vadd.f32 0.0, %v1340
      %v1342 = vpop.f32.mrb[0].mxu0
      %1343 = vmatprep.mubr.bf16.mxu0 %v593
      %1344 = vmatmul.mubr.bf16.gmra.mrb[0].mxu0 %v592
      %v1345 = vpop.f32.mrb[0].mxu0
      %v1346 = vadd.f32 0.0, %v1345
      %v1347 = vpop.f32.mrb[0].mxu0
      %v1348 = vpop.f32.mrb[0].mxu0
      %v1349 = vadd.f32 0.0, %v1348
      %v1350 = vpop.f32.mrb[0].mxu0
      %1351 = vmatprep.mubr.bf16.mxu0 %v602
      %1352 = vmatmul.mubr.bf16.gmra.mrb[0].mxu0 %v601
      %v1353 = vpop.f32.mrb[0].mxu0
      %v1354 = vadd.f32 0.0, %v1353
      %v1355 = vpop.f32.mrb[0].mxu0
      %v1356 = vpop.f32.mrb[0].mxu0
      %v1357 = vadd.f32 0.0, %v1356
      %v1358 = vpop.f32.mrb[0].mxu0
      %1359 = vmatprep.mubr.bf16.mxu0 %v611
      %1360 = vmatmul.mubr.bf16.gmra.mrb[0].mxu0 %v610
      %v1361 = vpop.f32.mrb[0].mxu0
      %v1362 = vadd.f32 0.0, %v1361
      %v1363 = vpop.f32.mrb[0].mxu0
      %v1364 = vpop.f32.mrb[0].mxu0
      %v1365 = vadd.f32 0.0, %v1364
      %v1366 = vpop.f32.mrb[0].mxu0
      %1367 = vmatprep.mubr.bf16.mxu0 %v620
      %1368 = vmatmul.mubr.bf16.gmra.mrb[0].mxu0 %v619
      %v1369 = vpop.f32.mrb[0].mxu0
      %v1370 = vadd.f32 0.0, %v1369
      %v1371 = vpop.f32.mrb[0].mxu0
      %v1372 = vpop.f32.mrb[0].mxu0
      %v1373 = vadd.f32 0.0, %v1372
      %v1374 = vpop.f32.mrb[0].mxu0
      %1375 = vmatprep.mubr.bf16.mxu0 %v629
      %1376 = vmatmul.mubr.bf16.gmra.mrb[0].mxu0 %v628
      %v1377 = vpop.f32.mrb[0].mxu0
      %v1378 = vadd.f32 0.0, %v1377
      %v1379 = vpop.f32.mrb[0].mxu0
      %v1380 = vpop.f32.mrb[0].mxu0
      %v1381 = vadd.f32 0.0, %v1380
      %v1382 = vpop.f32.mrb[0].mxu0
      %1383 = vmatprep.mubr.bf16.mxu0 %v638
      %1384 = vmatmul.mubr.bf16.gmra.mrb[0].mxu0 %v637
      %v1385 = vpop.f32.mrb[0].mxu0
      %v1386 = vadd.f32 0.0, %v1385
      %v1387 = vpop.f32.mrb[0].mxu0
      %v1388 = vpop.f32.mrb[0].mxu0
      %v1389 = vadd.f32 0.0, %v1388
      %v1390 = vpop.f32.mrb[0].mxu0
      %1391 = vmatprep.mubr.bf16.mxu0 %v647
      %1392 = vmatmul.mubr.bf16.gmra.mrb[0].mxu0 %v646
      %v1393 = vpop.f32.mrb[0].mxu0
      %v1394 = vadd.f32 0.0, %v1393
      %v1395 = vpop.f32.mrb[0].mxu0
      %v1396 = vpop.f32.mrb[0].mxu0
      %v1397 = vadd.f32 0.0, %v1396
      %v1398 = vpop.f32.mrb[0].mxu0
      %1399 = vmatprep.mubr.bf16.mxu0 %v656
      %1400 = vmatmul.mubr.bf16.gmra.mrb[0].mxu0 %v655
      %v1401 = vpop.f32.mrb[0].mxu0
      %v1402 = vadd.f32 0.0, %v1401
      %v1403 = vpop.f32.mrb[0].mxu0
      %v1404 = vpop.f32.mrb[0].mxu0
      %v1405 = vadd.f32 0.0, %v1404
      %v1406 = vpop.f32.mrb[0].mxu0
      %1407 = vmatprep.mubr.bf16.mxu0 %v665
      %1408 = vmatmul.mubr.bf16.gmra.mrb[0].mxu0 %v664
      %v1409 = vpop.f32.mrb[0].mxu0
      %v1410 = vadd.f32 0.0, %v1409
      %v1411 = vpop.f32.mrb[0].mxu0
      %v1412 = vpop.f32.mrb[0].mxu0
      %v1413 = vadd.f32 0.0, %v1412
      %v1414 = vpop.f32.mrb[0].mxu0
      %1415 = vmatprep.mubr.bf16.mxu0 %v674
      %1416 = vmatmul.mubr.bf16.gmra.mrb[0].mxu0 %v673
      %v1417 = vpop.f32.mrb[0].mxu0
      %v1418 = vadd.f32 0.0, %v1417
      %v1419 = vpop.f32.mrb[0].mxu0
      %v1420 = vpop.f32.mrb[0].mxu0
      %v1421 = vadd.f32 0.0, %v1420
      %v1422 = vpop.f32.mrb[0].mxu0
      %1423 = vmatprep.mubr.bf16.mxu0 %v683
      %1424 = vmatmul.mubr.bf16.gmra.mrb[0].mxu0 %v682
      %v1425 = vpop.f32.mrb[0].mxu0
      %v1426 = vadd.f32 0.0, %v1425
      %v1427 = vpop.f32.mrb[0].mxu0
      %v1428 = vpop.f32.mrb[0].mxu0
      %v1429 = vadd.f32 0.0, %v1428
      %v1430 = vpop.f32.mrb[0].mxu0
      %1431 = vmatprep.mubr.bf16.mxu0 %v692
      %1432 = vmatmul.mubr.bf16.gmra.mrb[0].mxu0 %v691
      %v1433 = vpop.f32.mrb[0].mxu0
      %v1434 = vadd.f32 0.0, %v1433
      %v1435 = vpop.f32.mrb[0].mxu0
      %v1436 = vpop.f32.mrb[0].mxu0
      %v1437 = vadd.f32 0.0, %v1436
      %v1438 = vpop.f32.mrb[0].mxu0
      %1439 = vmatprep.mubr.bf16.mxu0 %v701
      %1440 = vmatmul.mubr.bf16.gmra.mrb[0].mxu0 %v700
      %v1441 = vpop.f32.mrb[0].mxu0
      %v1442 = vadd.f32 0.0, %v1441
      %v1443 = vpop.f32.mrb[0].mxu0
      %v1444 = vpop.f32.mrb[0].mxu0
      %v1445 = vadd.f32 0.0, %v1444
      %v1446 = vpop.f32.mrb[0].mxu0
      %1447 = vmatprep.mubr.bf16.mxu0 %v710
      %1448 = vmatmul.mubr.bf16.gmra.mrb[0].mxu0 %v709
      %v1449 = vpop.f32.mrb[0].mxu0
      %v1450 = vadd.f32 0.0, %v1449
      %v1451 = vpop.f32.mrb[0].mxu0
      %v1452 = vpop.f32.mrb[0].mxu0
      %v1453 = vadd.f32 0.0, %v1452
      %v1454 = vpop.f32.mrb[0].mxu0
      %1455 = vmatprep.mubr.bf16.mxu0 %v719
      %1456 = vmatmul.mubr.bf16.gmra.mrb[0].mxu0 %v718
      %v1457 = vpop.f32.mrb[0].mxu0
      %v1458 = vadd.f32 0.0, %v1457
      %v1459 = vpop.f32.mrb[0].mxu0
      %v1460 = vpop.f32.mrb[0].mxu0
      %v1461 = vadd.f32 0.0, %v1460
      %v1462 = vpop.f32.mrb[0].mxu0
      %1463 = vdwg.mxu0
      %1464 = vmatprep.subr.bf16.mxu0 0
      %1465 = vmatpush1.bf16.msra.mxu0 %v1175
      %1466 = vmatprep.subr.bf16.mxu0 0
      %1467 = vmatpush1.bf16.msra.mxu0 %v1176
      %1468 = vmatprep.subr.bf16.mxu0 0
      %1469 = vmatpush1.bf16.msra.mxu0 %v1177
      %1470 = vmatprep.subr.bf16.mxu0 0
      %1471 = vmatpush1.bf16.msra.mxu0 %v1178
      %1472 = vmatprep.subr.bf16.mxu0 0
      %1473 = vmatpush1.bf16.msra.mxu0 %v1179
      %1474 = vmatprep.subr.bf16.mxu0 0
      %1475 = vmatpush1.bf16.msra.mxu0 %v1180
      %1476 = vmatprep.subr.bf16.mxu0 0
      %1477 = vmatpush1.bf16.msra.mxu0 %v1181
      %1478 = vmatprep.subr.bf16.mxu0 0
      %1479 = vmatpush1.bf16.msra.mxu0 %v1182
      %1480 = vmatprep.subr.bf16.mxu0 0
      %1481 = vmatpush1.bf16.msra.mxu0 %v1183
      %1482 = vmatprep.subr.bf16.mxu0 0
      %1483 = vmatpush1.bf16.msra.mxu0 %v1184
      %1484 = vmatprep.subr.bf16.mxu0 0
      %1485 = vmatpush1.bf16.msra.mxu0 %v1185
      %1486 = vmatprep.subr.bf16.mxu0 0
      %1487 = vmatpush1.bf16.msra.mxu0 %v1186
      %1488 = vmatprep.subr.bf16.mxu0 0
      %1489 = vmatpush1.bf16.msra.mxu0 %v1187
      %1490 = vmatprep.subr.bf16.mxu0 0
      %1491 = vmatpush1.bf16.msra.mxu0 %v1188
      %1492 = vmatprep.subr.bf16.mxu0 0
      %1493 = vmatpush1.bf16.msra.mxu0 %v1189
      %1494 = vmatprep.subr.bf16.mxu0 0
      %1495 = vmatpush1.bf16.msra.mxu0 %v1190
      %1496 = vmatprep.mubr.bf16.mxu0 %v586
      %1497 = vmatmul.mubr.bf16.gmra.mrb[0].mxu0 %v585
      %v1498 = vpop.f32.mrb[0].mxu0
      %v1499 = vadd.f32 %v1338, %v1498
      %v1500 = vpop.f32.mrb[0].mxu0
      %v1501 = vpop.f32.mrb[0].mxu0
      %v1502 = vadd.f32 %v1341, %v1501
      %v1503 = vpop.f32.mrb[0].mxu0
      %1504 = vmatprep.mubr.bf16.mxu0 %v595
      %1505 = vmatmul.mubr.bf16.gmra.mrb[0].mxu0 %v594
      %v1506 = vpop.f32.mrb[0].mxu0
      %v1507 = vadd.f32 %v1346, %v1506
      %v1508 = vpop.f32.mrb[0].mxu0
      %v1509 = vpop.f32.mrb[0].mxu0
      %v1510 = vadd.f32 %v1349, %v1509
      %v1511 = vpop.f32.mrb[0].mxu0
      %1512 = vmatprep.mubr.bf16.mxu0 %v604
      %1513 = vmatmul.mubr.bf16.gmra.mrb[0].mxu0 %v603
      %v1514 = vpop.f32.mrb[0].mxu0
      %v1515 = vadd.f32 %v1354, %v1514
      %v1516 = vpop.f32.mrb[0].mxu0
      %v1517 = vpop.f32.mrb[0].mxu0
      %v1518 = vadd.f32 %v1357, %v1517
      %v1519 = vpop.f32.mrb[0].mxu0
      %1520 = vmatprep.mubr.bf16.mxu0 %v613
      %1521 = vmatmul.mubr.bf16.gmra.mrb[0].mxu0 %v612
      %v1522 = vpop.f32.mrb[0].mxu0
      %v1523 = vadd.f32 %v1362, %v1522
      %v1524 = vpop.f32.mrb[0].mxu0
      %v1525 = vpop.f32.mrb[0].mxu0
      %v1526 = vadd.f32 %v1365, %v1525
      %v1527 = vpop.f32.mrb[0].mxu0
      %1528 = vmatprep.mubr.bf16.mxu0 %v622
      %1529 = vmatmul.mubr.bf16.gmra.mrb[0].mxu0 %v621
      %v1530 = vpop.f32.mrb[0].mxu0
      %v1531 = vadd.f32 %v1370, %v1530
      %v1532 = vpop.f32.mrb[0].mxu0
      %v1533 = vpop.f32.mrb[0].mxu0
      %v1534 = vadd.f32 %v1373, %v1533
      %v1535 = vpop.f32.mrb[0].mxu0
      %1536 = vmatprep.mubr.bf16.mxu0 %v631
      %1537 = vmatmul.mubr.bf16.gmra.mrb[0].mxu0 %v630
      %v1538 = vpop.f32.mrb[0].mxu0
      %v1539 = vadd.f32 %v1378, %v1538
      %v1540 = vpop.f32.mrb[0].mxu0
      %v1541 = vpop.f32.mrb[0].mxu0
      %v1542 = vadd.f32 %v1381, %v1541
      %v1543 = vpop.f32.mrb[0].mxu0
      %1544 = vmatprep.mubr.bf16.mxu0 %v640
      %1545 = vmatmul.mubr.bf16.gmra.mrb[0].mxu0 %v639
      %v1546 = vpop.f32.mrb[0].mxu0
      %v1547 = vadd.f32 %v1386, %v1546
      %v1548 = vpop.f32.mrb[0].mxu0
      %v1549 = vpop.f32.mrb[0].mxu0
      %v1550 = vadd.f32 %v1389, %v1549
      %v1551 = vpop.f32.mrb[0].mxu0
      %1552 = vmatprep.mubr.bf16.mxu0 %v649
      %1553 = vmatmul.mubr.bf16.gmra.mrb[0].mxu0 %v648
      %v1554 = vpop.f32.mrb[0].mxu0
      %v1555 = vadd.f32 %v1394, %v1554
      %v1556 = vpop.f32.mrb[0].mxu0
      %v1557 = vpop.f32.mrb[0].mxu0
      %v1558 = vadd.f32 %v1397, %v1557
      %v1559 = vpop.f32.mrb[0].mxu0
      %1560 = vmatprep.mubr.bf16.mxu0 %v658
      %1561 = vmatmul.mubr.bf16.gmra.mrb[0].mxu0 %v657
      %v1562 = vpop.f32.mrb[0].mxu0
      %v1563 = vadd.f32 %v1402, %v1562
      %v1564 = vpop.f32.mrb[0].mxu0
      %v1565 = vpop.f32.mrb[0].mxu0
      %v1566 = vadd.f32 %v1405, %v1565
      %v1567 = vpop.f32.mrb[0].mxu0
      %1568 = vmatprep.mubr.bf16.mxu0 %v667
      %1569 = vmatmul.mubr.bf16.gmra.mrb[0].mxu0 %v666
      %v1570 = vpop.f32.mrb[0].mxu0
      %v1571 = vadd.f32 %v1410, %v1570
      %v1572 = vpop.f32.mrb[0].mxu0
      %v1573 = vpop.f32.mrb[0].mxu0
      %v1574 = vadd.f32 %v1413, %v1573
      %v1575 = vpop.f32.mrb[0].mxu0
      %1576 = vmatprep.mubr.bf16.mxu0 %v676
      %1577 = vmatmul.mubr.bf16.gmra.mrb[0].mxu0 %v675
      %v1578 = vpop.f32.mrb[0].mxu0
      %v1579 = vadd.f32 %v1418, %v1578
      %v1580 = vpop.f32.mrb[0].mxu0
      %v1581 = vpop.f32.mrb[0].mxu0
      %v1582 = vadd.f32 %v1421, %v1581
      %v1583 = vpop.f32.mrb[0].mxu0
      %1584 = vmatprep.mubr.bf16.mxu0 %v685
      %1585 = vmatmul.mubr.bf16.gmra.mrb[0].mxu0 %v684
      %v1586 = vpop.f32.mrb[0].mxu0
      %v1587 = vadd.f32 %v1426, %v1586
      %v1588 = vpop.f32.mrb[0].mxu0
      %v1589 = vpop.f32.mrb[0].mxu0
      %v1590 = vadd.f32 %v1429, %v1589
      %v1591 = vpop.f32.mrb[0].mxu0
      %1592 = vmatprep.mubr.bf16.mxu0 %v694
      %1593 = vmatmul.mubr.bf16.gmra.mrb[0].mxu0 %v693
      %v1594 = vpop.f32.mrb[0].mxu0
      %v1595 = vadd.f32 %v1434, %v1594
      %v1596 = vpop.f32.mrb[0].mxu0
      %v1597 = vpop.f32.mrb[0].mxu0
      %v1598 = vadd.f32 %v1437, %v1597
      %v1599 = vpop.f32.mrb[0].mxu0
      %1600 = vmatprep.mubr.bf16.mxu0 %v703
      %1601 = vmatmul.mubr.bf16.gmra.mrb[0].mxu0 %v702
      %v1602 = vpop.f32.mrb[0].mxu0
      %v1603 = vadd.f32 %v1442, %v1602
      %v1604 = vpop.f32.mrb[0].mxu0
      %v1605 = vpop.f32.mrb[0].mxu0
      %v1606 = vadd.f32 %v1445, %v1605
      %v1607 = vpop.f32.mrb[0].mxu0
      %1608 = vmatprep.mubr.bf16.mxu0 %v712
      %1609 = vmatmul.mubr.bf16.gmra.mrb[0].mxu0 %v711
      %v1610 = vpop.f32.mrb[0].mxu0
      %v1611 = vadd.f32 %v1450, %v1610
      %v1612 = vpop.f32.mrb[0].mxu0
      %v1613 = vpop.f32.mrb[0].mxu0
      %v1614 = vadd.f32 %v1453, %v1613
      %v1615 = vpop.f32.mrb[0].mxu0
      %1616 = vmatprep.mubr.bf16.mxu0 %v721
      %1617 = vmatmul.mubr.bf16.gmra.mrb[0].mxu0 %v720
      %v1618 = vpop.f32.mrb[0].mxu0
      %v1619 = vadd.f32 %v1458, %v1618
      %v1620 = vpop.f32.mrb[0].mxu0
      %v1621 = vpop.f32.mrb[0].mxu0
      %v1622 = vadd.f32 %v1461, %v1621
      %v1623 = vpop.f32.mrb[0].mxu0
      %1624 = vdwg.mxu0
      %1625 = vmatprep.subr.bf16.mxu0 0
      %1626 = vmatpush1.bf16.msra.mxu0 %v1191
      %1627 = vmatprep.subr.bf16.mxu0 0
      %1628 = vmatpush1.bf16.msra.mxu0 %v1192
      %1629 = vmatprep.subr.bf16.mxu0 0
      %1630 = vmatpush1.bf16.msra.mxu0 %v1193
      %1631 = vmatprep.subr.bf16.mxu0 0
      %1632 = vmatpush1.bf16.msra.mxu0 %v1194
      %1633 = vmatprep.subr.bf16.mxu0 0
      %1634 = vmatpush1.bf16.msra.mxu0 %v1195
      %1635 = vmatprep.subr.bf16.mxu0 0
      %1636 = vmatpush1.bf16.msra.mxu0 %v1196
      %1637 = vmatprep.subr.bf16.mxu0 0
      %1638 = vmatpush1.bf16.msra.mxu0 %v1197
      %1639 = vmatprep.subr.bf16.mxu0 0
      %1640 = vmatpush1.bf16.msra.mxu0 %v1198
      %1641 = vmatprep.subr.bf16.mxu0 0
      %1642 = vmatpush1.bf16.msra.mxu0 %v1199
      %1643 = vmatprep.subr.bf16.mxu0 0
      %1644 = vmatpush1.bf16.msra.mxu0 %v1200
      %1645 = vmatprep.subr.bf16.mxu0 0
      %1646 = vmatpush1.bf16.msra.mxu0 %v1201
      %1647 = vmatprep.subr.bf16.mxu0 0
      %1648 = vmatpush1.bf16.msra.mxu0 %v1202
      %1649 = vmatprep.subr.bf16.mxu0 0
      %1650 = vmatpush1.bf16.msra.mxu0 %v1203
      %1651 = vmatprep.subr.bf16.mxu0 0
      %1652 = vmatpush1.bf16.msra.mxu0 %v1204
      %1653 = vmatprep.subr.bf16.mxu0 0
      %1654 = vmatpush1.bf16.msra.mxu0 %v1205
      %1655 = vmatprep.subr.bf16.mxu0 0
      %1656 = vmatpush1.bf16.msra.mxu0 %v1206
      %1657 = vmatprep.mubr.bf16.mxu0 %v588
      %1658 = vmatmul.mubr.bf16.gmra.mrb[0].mxu0 %v587
      %v1659 = vpop.f32.mrb[0].mxu0
      %v1660 = vadd.f32 %v1499, %v1659
      %v1661 = vpop.f32.mrb[0].mxu0
      %v1662 = vpop.f32.mrb[0].mxu0
      %v1663 = vadd.f32 %v1502, %v1662
      %v1664 = vpop.f32.mrb[0].mxu0
      %1665 = vmatprep.mubr.bf16.mxu0 %v597
      %1666 = vmatmul.mubr.bf16.gmra.mrb[0].mxu0 %v596
      %v1667 = vpop.f32.mrb[0].mxu0
      %v1668 = vadd.f32 %v1507, %v1667
      %v1669 = vpop.f32.mrb[0].mxu0
      %v1670 = vpop.f32.mrb[0].mxu0
      %v1671 = vadd.f32 %v1510, %v1670
      %v1672 = vpop.f32.mrb[0].mxu0
      %1673 = vmatprep.mubr.bf16.mxu0 %v606
      %1674 = vmatmul.mubr.bf16.gmra.mrb[0].mxu0 %v605
      %v1675 = vpop.f32.mrb[0].mxu0
      %v1676 = vadd.f32 %v1515, %v1675
      %v1677 = vpop.f32.mrb[0].mxu0
      %v1678 = vpop.f32.mrb[0].mxu0
      %v1679 = vadd.f32 %v1518, %v1678
      %v1680 = vpop.f32.mrb[0].mxu0
      %1681 = vmatprep.mubr.bf16.mxu0 %v615
      %1682 = vmatmul.mubr.bf16.gmra.mrb[0].mxu0 %v614
      %v1683 = vpop.f32.mrb[0].mxu0
      %v1684 = vadd.f32 %v1523, %v1683
      %v1685 = vpop.f32.mrb[0].mxu0
      %v1686 = vpop.f32.mrb[0].mxu0
      %v1687 = vadd.f32 %v1526, %v1686
      %v1688 = vpop.f32.mrb[0].mxu0
      %1689 = vmatprep.mubr.bf16.mxu0 %v624
      %1690 = vmatmul.mubr.bf16.gmra.mrb[0].mxu0 %v623
      %v1691 = vpop.f32.mrb[0].mxu0
      %v1692 = vadd.f32 %v1531, %v1691
      %v1693 = vpop.f32.mrb[0].mxu0
      %v1694 = vpop.f32.mrb[0].mxu0
      %v1695 = vadd.f32 %v1534, %v1694
      %v1696 = vpop.f32.mrb[0].mxu0
      %1697 = vmatprep.mubr.bf16.mxu0 %v633
      %1698 = vmatmul.mubr.bf16.gmra.mrb[0].mxu0 %v632
      %v1699 = vpop.f32.mrb[0].mxu0
      %v1700 = vadd.f32 %v1539, %v1699
      %v1701 = vpop.f32.mrb[0].mxu0
      %v1702 = vpop.f32.mrb[0].mxu0
      %v1703 = vadd.f32 %v1542, %v1702
      %v1704 = vpop.f32.mrb[0].mxu0
      %1705 = vmatprep.mubr.bf16.mxu0 %v642
      %1706 = vmatmul.mubr.bf16.gmra.mrb[0].mxu0 %v641
      %v1707 = vpop.f32.mrb[0].mxu0
      %v1708 = vadd.f32 %v1547, %v1707
      %v1709 = vpop.f32.mrb[0].mxu0
      %v1710 = vpop.f32.mrb[0].mxu0
      %v1711 = vadd.f32 %v1550, %v1710
      %v1712 = vpop.f32.mrb[0].mxu0
      %1713 = vmatprep.mubr.bf16.mxu0 %v651
      %1714 = vmatmul.mubr.bf16.gmra.mrb[0].mxu0 %v650
      %v1715 = vpop.f32.mrb[0].mxu0
      %v1716 = vadd.f32 %v1555, %v1715
      %v1717 = vpop.f32.mrb[0].mxu0
      %v1718 = vpop.f32.mrb[0].mxu0
      %v1719 = vadd.f32 %v1558, %v1718
      %v1720 = vpop.f32.mrb[0].mxu0
      %1721 = vmatprep.mubr.bf16.mxu0 %v660
      %1722 = vmatmul.mubr.bf16.gmra.mrb[0].mxu0 %v659
      %v1723 = vpop.f32.mrb[0].mxu0
      %v1724 = vadd.f32 %v1563, %v1723
      %v1725 = vpop.f32.mrb[0].mxu0
      %v1726 = vpop.f32.mrb[0].mxu0
      %v1727 = vadd.f32 %v1566, %v1726
      %v1728 = vpop.f32.mrb[0].mxu0
      %1729 = vmatprep.mubr.bf16.mxu0 %v669
      %1730 = vmatmul.mubr.bf16.gmra.mrb[0].mxu0 %v668
      %v1731 = vpop.f32.mrb[0].mxu0
      %v1732 = vadd.f32 %v1571, %v1731
      %v1733 = vpop.f32.mrb[0].mxu0
      %v1734 = vpop.f32.mrb[0].mxu0
      %v1735 = vadd.f32 %v1574, %v1734
      %v1736 = vpop.f32.mrb[0].mxu0
      %1737 = vmatprep.mubr.bf16.mxu0 %v678
      %1738 = vmatmul.mubr.bf16.gmra.mrb[0].mxu0 %v677
      %v1739 = vpop.f32.mrb[0].mxu0
      %v1740 = vadd.f32 %v1579, %v1739
      %v1741 = vpop.f32.mrb[0].mxu0
      %v1742 = vpop.f32.mrb[0].mxu0
      %v1743 = vadd.f32 %v1582, %v1742
      %v1744 = vpop.f32.mrb[0].mxu0
      %1745 = vmatprep.mubr.bf16.mxu0 %v687
      %1746 = vmatmul.mubr.bf16.gmra.mrb[0].mxu0 %v686
      %v1747 = vpop.f32.mrb[0].mxu0
      %v1748 = vadd.f32 %v1587, %v1747
      %v1749 = vpop.f32.mrb[0].mxu0
      %v1750 = vpop.f32.mrb[0].mxu0
      %v1751 = vadd.f32 %v1590, %v1750
      %v1752 = vpop.f32.mrb[0].mxu0
      %1753 = vmatprep.mubr.bf16.mxu0 %v696
      %1754 = vmatmul.mubr.bf16.gmra.mrb[0].mxu0 %v695
      %v1755 = vpop.f32.mrb[0].mxu0
      %v1756 = vadd.f32 %v1595, %v1755
      %v1757 = vpop.f32.mrb[0].mxu0
      %v1758 = vpop.f32.mrb[0].mxu0
      %v1759 = vadd.f32 %v1598, %v1758
      %v1760 = vpop.f32.mrb[0].mxu0
      %1761 = vmatprep.mubr.bf16.mxu0 %v705
      %1762 = vmatmul.mubr.bf16.gmra.mrb[0].mxu0 %v704
      %v1763 = vpop.f32.mrb[0].mxu0
      %v1764 = vadd.f32 %v1603, %v1763
      %v1765 = vpop.f32.mrb[0].mxu0
      %v1766 = vpop.f32.mrb[0].mxu0
      %v1767 = vadd.f32 %v1606, %v1766
      %v1768 = vpop.f32.mrb[0].mxu0
      %1769 = vmatprep.mubr.bf16.mxu0 %v714
      %1770 = vmatmul.mubr.bf16.gmra.mrb[0].mxu0 %v713
      %v1771 = vpop.f32.mrb[0].mxu0
      %v1772 = vadd.f32 %v1611, %v1771
      %v1773 = vpop.f32.mrb[0].mxu0
      %v1774 = vpop.f32.mrb[0].mxu0
      %v1775 = vadd.f32 %v1614, %v1774
      %v1776 = vpop.f32.mrb[0].mxu0
      %1777 = vmatprep.mubr.bf16.mxu0 %v723
      %1778 = vmatmul.mubr.bf16.gmra.mrb[0].mxu0 %v722
      %v1779 = vpop.f32.mrb[0].mxu0
      %v1780 = vadd.f32 %v1619, %v1779
      %v1781 = vpop.f32.mrb[0].mxu0
      %v1782 = vpop.f32.mrb[0].mxu0
      %v1783 = vadd.f32 %v1622, %v1782
      %v1784 = vpop.f32.mrb[0].mxu0
      %1785 = vdwg.mxu0
      %1786 = vmatprep.subr.bf16.mxu0 0
      %1787 = vmatpush1.bf16.msra.mxu0 %v1207
      %1788 = vmatprep.subr.bf16.mxu0 0
      %1789 = vmatpush1.bf16.msra.mxu0 %v1208
      %1790 = vmatprep.subr.bf16.mxu0 0
      %1791 = vmatpush1.bf16.msra.mxu0 %v1209
      %1792 = vmatprep.subr.bf16.mxu0 0
      %1793 = vmatpush1.bf16.msra.mxu0 %v1210
      %1794 = vmatprep.subr.bf16.mxu0 0
      %1795 = vmatpush1.bf16.msra.mxu0 %v1211
      %1796 = vmatprep.subr.bf16.mxu0 0
      %1797 = vmatpush1.bf16.msra.mxu0 %v1212
      %1798 = vmatprep.subr.bf16.mxu0 0
      %1799 = vmatpush1.bf16.msra.mxu0 %v1213
      %1800 = vmatprep.subr.bf16.mxu0 0
      %1801 = vmatpush1.bf16.msra.mxu0 %v1214
      %1802 = vmatprep.subr.bf16.mxu0 0
      %1803 = vmatpush1.bf16.msra.mxu0 %v1215
      %1804 = vmatprep.subr.bf16.mxu0 0
      %1805 = vmatpush1.bf16.msra.mxu0 %v1216
      %1806 = vmatprep.subr.bf16.mxu0 0
      %1807 = vmatpush1.bf16.msra.mxu0 %v1217
      %1808 = vmatprep.subr.bf16.mxu0 0
      %1809 = vmatpush1.bf16.msra.mxu0 %v1218
      %1810 = vmatprep.subr.bf16.mxu0 0
      %1811 = vmatpush1.bf16.msra.mxu0 %v1219
      %1812 = vmatprep.subr.bf16.mxu0 0
      %1813 = vmatpush1.bf16.msra.mxu0 %v1220
      %1814 = vmatprep.subr.bf16.mxu0 0
      %1815 = vmatpush1.bf16.msra.mxu0 %v1221
      %1816 = vmatprep.subr.bf16.mxu0 0
      %1817 = vmatpush1.bf16.msra.mxu0 %v1222
      %1818 = vmatprep.mubr.bf16.mxu0 %v590
      %1819 = vmatmul.mubr.bf16.gmra.mrb[0].mxu0 %v589
      %v1820 = vpop.f32.mrb[0].mxu0
      %v1821 = vadd.f32 %v1660, %v1820
      %v1822 = vpop.f32.mrb[0].mxu0
      %v1823 = vpop.f32.mrb[0].mxu0
      %v1824 = vadd.f32 %v1663, %v1823
      %v1825 = vpop.f32.mrb[0].mxu0
      %1826 = vmatprep.mubr.bf16.mxu0 %v599
      %1827 = vmatmul.mubr.bf16.gmra.mrb[0].mxu0 %v598
      %v1828 = vpop.f32.mrb[0].mxu0
      %v1829 = vadd.f32 %v1668, %v1828
      %v1830 = vpop.f32.mrb[0].mxu0
      %v1831 = vpop.f32.mrb[0].mxu0
      %v1832 = vadd.f32 %v1671, %v1831
      %v1833 = vpop.f32.mrb[0].mxu0
      %1834 = vmatprep.mubr.bf16.mxu0 %v608
      %1835 = vmatmul.mubr.bf16.gmra.mrb[0].mxu0 %v607
      %v1836 = vpop.f32.mrb[0].mxu0
      %v1837 = vadd.f32 %v1676, %v1836
      %v1838 = vpop.f32.mrb[0].mxu0
      %v1839 = vpop.f32.mrb[0].mxu0
      %v1840 = vadd.f32 %v1679, %v1839
      %v1841 = vpop.f32.mrb[0].mxu0
      %1842 = vmatprep.mubr.bf16.mxu0 %v617
      %1843 = vmatmul.mubr.bf16.gmra.mrb[0].mxu0 %v616
      %v1844 = vpop.f32.mrb[0].mxu0
      %v1845 = vadd.f32 %v1684, %v1844
      %v1846 = vpop.f32.mrb[0].mxu0
      %v1847 = vpop.f32.mrb[0].mxu0
      %v1848 = vadd.f32 %v1687, %v1847
      %v1849 = vpop.f32.mrb[0].mxu0
      %1850 = vmatprep.mubr.bf16.mxu0 %v626
      %1851 = vmatmul.mubr.bf16.gmra.mrb[0].mxu0 %v625
      %v1852 = vpop.f32.mrb[0].mxu0
      %v1853 = vadd.f32 %v1692, %v1852
      %v1854 = vpop.f32.mrb[0].mxu0
      %v1855 = vpop.f32.mrb[0].mxu0
      %v1856 = vadd.f32 %v1695, %v1855
      %v1857 = vpop.f32.mrb[0].mxu0
      %1858 = vmatprep.mubr.bf16.mxu0 %v635
      %1859 = vmatmul.mubr.bf16.gmra.mrb[0].mxu0 %v634
      %v1860 = vpop.f32.mrb[0].mxu0
      %v1861 = vadd.f32 %v1700, %v1860
      %v1862 = vpop.f32.mrb[0].mxu0
      %v1863 = vpop.f32.mrb[0].mxu0
      %v1864 = vadd.f32 %v1703, %v1863
      %v1865 = vpop.f32.mrb[0].mxu0
      %1866 = vmatprep.mubr.bf16.mxu0 %v644
      %1867 = vmatmul.mubr.bf16.gmra.mrb[0].mxu0 %v643
      %v1868 = vpop.f32.mrb[0].mxu0
      %v1869 = vadd.f32 %v1708, %v1868
      %v1870 = vpop.f32.mrb[0].mxu0
      %v1871 = vpop.f32.mrb[0].mxu0
      %v1872 = vadd.f32 %v1711, %v1871
      %v1873 = vpop.f32.mrb[0].mxu0
      %1874 = vmatprep.mubr.bf16.mxu0 %v653
      %1875 = vmatmul.mubr.bf16.gmra.mrb[0].mxu0 %v652
      %v1876 = vpop.f32.mrb[0].mxu0
      %v1877 = vadd.f32 %v1716, %v1876
      %v1878 = vpop.f32.mrb[0].mxu0
      %v1879 = vpop.f32.mrb[0].mxu0
      %v1880 = vadd.f32 %v1719, %v1879
      %v1881 = vpop.f32.mrb[0].mxu0
      %1882 = vmatprep.mubr.bf16.mxu0 %v662
      %1883 = vmatmul.mubr.bf16.gmra.mrb[0].mxu0 %v661
      %v1884 = vpop.f32.mrb[0].mxu0
      %v1885 = vadd.f32 %v1724, %v1884
      %v1886 = vpop.f32.mrb[0].mxu0
      %v1887 = vpop.f32.mrb[0].mxu0
      %v1888 = vadd.f32 %v1727, %v1887
      %v1889 = vpop.f32.mrb[0].mxu0
      %1890 = vmatprep.mubr.bf16.mxu0 %v671
      %1891 = vmatmul.mubr.bf16.gmra.mrb[0].mxu0 %v670
      %v1892 = vpop.f32.mrb[0].mxu0
      %v1893 = vadd.f32 %v1732, %v1892
      %v1894 = vpop.f32.mrb[0].mxu0
      %v1895 = vpop.f32.mrb[0].mxu0
      %v1896 = vadd.f32 %v1735, %v1895
      %v1897 = vpop.f32.mrb[0].mxu0
      %1898 = vmatprep.mubr.bf16.mxu0 %v680
      %1899 = vmatmul.mubr.bf16.gmra.mrb[0].mxu0 %v679
      %v1900 = vpop.f32.mrb[0].mxu0
      %v1901 = vadd.f32 %v1740, %v1900
      %v1902 = vpop.f32.mrb[0].mxu0
      %v1903 = vpop.f32.mrb[0].mxu0
      %v1904 = vadd.f32 %v1743, %v1903
      %v1905 = vpop.f32.mrb[0].mxu0
      %1906 = vmatprep.mubr.bf16.mxu0 %v689
      %1907 = vmatmul.mubr.bf16.gmra.mrb[0].mxu0 %v688
      %v1908 = vpop.f32.mrb[0].mxu0
      %v1909 = vadd.f32 %v1748, %v1908
      %v1910 = vpop.f32.mrb[0].mxu0
      %v1911 = vpop.f32.mrb[0].mxu0
      %v1912 = vadd.f32 %v1751, %v1911
      %v1913 = vpop.f32.mrb[0].mxu0
      %1914 = vmatprep.mubr.bf16.mxu0 %v698
      %1915 = vmatmul.mubr.bf16.gmra.mrb[0].mxu0 %v697
      %v1916 = vpop.f32.mrb[0].mxu0
      %v1917 = vadd.f32 %v1756, %v1916
      %v1918 = vpop.f32.mrb[0].mxu0
      %v1919 = vpop.f32.mrb[0].mxu0
      %v1920 = vadd.f32 %v1759, %v1919
      %v1921 = vpop.f32.mrb[0].mxu0
      %1922 = vmatprep.mubr.bf16.mxu0 %v707
      %1923 = vmatmul.mubr.bf16.gmra.mrb[0].mxu0 %v706
      %v1924 = vpop.f32.mrb[0].mxu0
      %v1925 = vadd.f32 %v1764, %v1924
      %v1926 = vpop.f32.mrb[0].mxu0
      %v1927 = vpop.f32.mrb[0].mxu0
      %v1928 = vadd.f32 %v1767, %v1927
      %v1929 = vpop.f32.mrb[0].mxu0
      %1930 = vmatprep.mubr.bf16.mxu0 %v716
      %1931 = vmatmul.mubr.bf16.gmra.mrb[0].mxu0 %v715
      %v1932 = vpop.f32.mrb[0].mxu0
      %v1933 = vadd.f32 %v1772, %v1932
      %v1934 = vpop.f32.mrb[0].mxu0
      %v1935 = vpop.f32.mrb[0].mxu0
      %v1936 = vadd.f32 %v1775, %v1935
      %v1937 = vpop.f32.mrb[0].mxu0
      %1938 = vmatprep.mubr.bf16.mxu0 %v725
      %1939 = vmatmul.mubr.bf16.gmra.mrb[0].mxu0 %v724
      %v1940 = vpop.f32.mrb[0].mxu0
      %v1941 = vadd.f32 %v1780, %v1940
      %v1942 = vpop.f32.mrb[0].mxu0
      %v1943 = vpop.f32.mrb[0].mxu0
      %v1944 = vadd.f32 %v1783, %v1943
      %v1945 = vpop.f32.mrb[0].mxu0
      %1946 = vdwg.mxu0
      %1947 = vmatprep.subr.bf16.mxu0 0
      %1948 = vmatpush1.bf16.msra.mxu0 %v1223
      %1949 = vmatprep.subr.bf16.mxu0 0
      %1950 = vmatpush1.bf16.msra.mxu0 %v1224
      %1951 = vmatprep.subr.bf16.mxu0 0
      %1952 = vmatpush1.bf16.msra.mxu0 %v1225
      %1953 = vmatprep.subr.bf16.mxu0 0
      %1954 = vmatpush1.bf16.msra.mxu0 %v1226
      %1955 = vmatprep.subr.bf16.mxu0 0
      %1956 = vmatpush1.bf16.msra.mxu0 %v1227
      %1957 = vmatprep.subr.bf16.mxu0 0
      %1958 = vmatpush1.bf16.msra.mxu0 %v1228
      %1959 = vmatprep.subr.bf16.mxu0 0
      %1960 = vmatpush1.bf16.msra.mxu0 %v1229
      %1961 = vmatprep.subr.bf16.mxu0 0
      %1962 = vmatpush1.bf16.msra.mxu0 %v1230
      %1963 = vmatprep.subr.bf16.mxu0 0
      %1964 = vmatpush1.bf16.msra.mxu0 0
      %1965 = vmatprep.subr.bf16.mxu0 0
      %1966 = vmatpush1.bf16.msra.mxu0 0
      %1967 = vmatprep.subr.bf16.mxu0 0
      %1968 = vmatpush1.bf16.msra.mxu0 0
      %1969 = vmatprep.subr.bf16.mxu0 0
      %1970 = vmatpush1.bf16.msra.mxu0 0
      %1971 = vmatprep.subr.bf16.mxu0 0
      %1972 = vmatpush1.bf16.msra.mxu0 0
      %1973 = vmatprep.subr.bf16.mxu0 0
      %1974 = vmatpush1.bf16.msra.mxu0 0
      %1975 = vmatprep.subr.bf16.mxu0 0
      %1976 = vmatpush1.bf16.msra.mxu0 0
      %1977 = vmatprep.subr.bf16.mxu0 0
      %1978 = vmatpush1.bf16.msra.mxu0 0
      %1979 = vmatprep.mubr.bf16.mxu0 0
      %1980 = vmatmul.mubr.bf16.gmra.mrb[0].mxu0 %v591
      %v1981 = vpop.f32.mrb[0].mxu0
      %v1982 = vadd.f32 %v1821, %v1981
      %v1983 = vpop.f32.mrb[0].mxu0
      %v1984 = vpop.f32.mrb[0].mxu0
      %v1985 = vadd.f32 %v1824, %v1984
      %v1986 = vpop.f32.mrb[0].mxu0
      %1987 = vmatprep.mubr.bf16.mxu0 0
      %1988 = vmatmul.mubr.bf16.gmra.mrb[0].mxu0 %v600
      %v1989 = vpop.f32.mrb[0].mxu0
      %v1990 = vadd.f32 %v1829, %v1989
      %v1991 = vpop.f32.mrb[0].mxu0
      %v1992 = vpop.f32.mrb[0].mxu0
      %v1993 = vadd.f32 %v1832, %v1992
      %v1994 = vpop.f32.mrb[0].mxu0
      %1995 = vmatprep.mubr.bf16.mxu0 0
      %1996 = vmatmul.mubr.bf16.gmra.mrb[0].mxu0 %v609
      %v1997 = vpop.f32.mrb[0].mxu0
      %v1998 = vadd.f32 %v1837, %v1997
      %v1999 = vpop.f32.mrb[0].mxu0
      %v2000 = vpop.f32.mrb[0].mxu0
      %v2001 = vadd.f32 %v1840, %v2000
      %v2002 = vpop.f32.mrb[0].mxu0
      %2003 = vmatprep.mubr.bf16.mxu0 0
      %2004 = vmatmul.mubr.bf16.gmra.mrb[0].mxu0 %v618
      %v2005 = vpop.f32.mrb[0].mxu0
      %v2006 = vadd.f32 %v1845, %v2005
      %v2007 = vpop.f32.mrb[0].mxu0
      %v2008 = vpop.f32.mrb[0].mxu0
      %v2009 = vadd.f32 %v1848, %v2008
      %v2010 = vpop.f32.mrb[0].mxu0
      %2011 = vmatprep.mubr.bf16.mxu0 0
      %2012 = vmatmul.mubr.bf16.gmra.mrb[0].mxu0 %v627
      %v2013 = vpop.f32.mrb[0].mxu0
      %v2014 = vadd.f32 %v1853, %v2013
      %v2015 = vpop.f32.mrb[0].mxu0
      %v2016 = vpop.f32.mrb[0].mxu0
      %v2017 = vadd.f32 %v1856, %v2016
      %v2018 = vpop.f32.mrb[0].mxu0
      %2019 = vmatprep.mubr.bf16.mxu0 0
      %2020 = vmatmul.mubr.bf16.gmra.mrb[0].mxu0 %v636
      %v2021 = vpop.f32.mrb[0].mxu0
      %v2022 = vadd.f32 %v1861, %v2021
      %v2023 = vpop.f32.mrb[0].mxu0
      %v2024 = vpop.f32.mrb[0].mxu0
      %v2025 = vadd.f32 %v1864, %v2024
      %v2026 = vpop.f32.mrb[0].mxu0
      %2027 = vmatprep.mubr.bf16.mxu0 0
      %2028 = vmatmul.mubr.bf16.gmra.mrb[0].mxu0 %v645
      %v2029 = vpop.f32.mrb[0].mxu0
      %v2030 = vadd.f32 %v1869, %v2029
      %v2031 = vpop.f32.mrb[0].mxu0
      %v2032 = vpop.f32.mrb[0].mxu0
      %v2033 = vadd.f32 %v1872, %v2032
      %v2034 = vpop.f32.mrb[0].mxu0
      %2035 = vmatprep.mubr.bf16.mxu0 0
      %2036 = vmatmul.mubr.bf16.gmra.mrb[0].mxu0 %v654
      %v2037 = vpop.f32.mrb[0].mxu0
      %v2038 = vadd.f32 %v1877, %v2037
      %v2039 = vpop.f32.mrb[0].mxu0
      %v2040 = vpop.f32.mrb[0].mxu0
      %v2041 = vadd.f32 %v1880, %v2040
      %v2042 = vpop.f32.mrb[0].mxu0
      %2043 = vmatprep.mubr.bf16.mxu0 0
      %2044 = vmatmul.mubr.bf16.gmra.mrb[0].mxu0 %v663
      %v2045 = vpop.f32.mrb[0].mxu0
      %v2046 = vadd.f32 %v1885, %v2045
      %v2047 = vpop.f32.mrb[0].mxu0
      %v2048 = vpop.f32.mrb[0].mxu0
      %v2049 = vadd.f32 %v1888, %v2048
      %v2050 = vpop.f32.mrb[0].mxu0
      %2051 = vmatprep.mubr.bf16.mxu0 0
      %2052 = vmatmul.mubr.bf16.gmra.mrb[0].mxu0 %v672
      %v2053 = vpop.f32.mrb[0].mxu0
      %v2054 = vadd.f32 %v1893, %v2053
      %v2055 = vpop.f32.mrb[0].mxu0
      %v2056 = vpop.f32.mrb[0].mxu0
      %v2057 = vadd.f32 %v1896, %v2056
      %v2058 = vpop.f32.mrb[0].mxu0
      %2059 = vmatprep.mubr.bf16.mxu0 0
      %2060 = vmatmul.mubr.bf16.gmra.mrb[0].mxu0 %v681
      %v2061 = vpop.f32.mrb[0].mxu0
      %v2062 = vadd.f32 %v1901, %v2061
      %v2063 = vpop.f32.mrb[0].mxu0
      %v2064 = vpop.f32.mrb[0].mxu0
      %v2065 = vadd.f32 %v1904, %v2064
      %v2066 = vpop.f32.mrb[0].mxu0
      %2067 = vmatprep.mubr.bf16.mxu0 0
      %2068 = vmatmul.mubr.bf16.gmra.mrb[0].mxu0 %v690
      %v2069 = vpop.f32.mrb[0].mxu0
      %v2070 = vadd.f32 %v1909, %v2069
      %v2071 = vpop.f32.mrb[0].mxu0
      %v2072 = vpop.f32.mrb[0].mxu0
      %v2073 = vadd.f32 %v1912, %v2072
      %v2074 = vpop.f32.mrb[0].mxu0
      %2075 = vmatprep.mubr.bf16.mxu0 0
      %2076 = vmatmul.mubr.bf16.gmra.mrb[0].mxu0 %v699
      %v2077 = vpop.f32.mrb[0].mxu0
      %v2078 = vadd.f32 %v1917, %v2077
      %v2079 = vpop.f32.mrb[0].mxu0
      %v2080 = vpop.f32.mrb[0].mxu0
      %v2081 = vadd.f32 %v1920, %v2080
      %v2082 = vpop.f32.mrb[0].mxu0
      %2083 = vmatprep.mubr.bf16.mxu0 0
      %2084 = vmatmul.mubr.bf16.gmra.mrb[0].mxu0 %v708
      %v2085 = vpop.f32.mrb[0].mxu0
      %v2086 = vadd.f32 %v1925, %v2085
      %v2087 = vpop.f32.mrb[0].mxu0
      %v2088 = vpop.f32.mrb[0].mxu0
      %v2089 = vadd.f32 %v1928, %v2088
      %v2090 = vpop.f32.mrb[0].mxu0
      %2091 = vmatprep.mubr.bf16.mxu0 0
      %2092 = vmatmul.mubr.bf16.gmra.mrb[0].mxu0 %v717
      %v2093 = vpop.f32.mrb[0].mxu0
      %v2094 = vadd.f32 %v1933, %v2093
      %v2095 = vpop.f32.mrb[0].mxu0
      %v2096 = vpop.f32.mrb[0].mxu0
      %v2097 = vadd.f32 %v1936, %v2096
      %v2098 = vpop.f32.mrb[0].mxu0
      %2099 = vmatprep.mubr.bf16.mxu0 0
      %2100 = vmatmul.mubr.bf16.gmra.mrb[0].mxu0 %v726
      %v2101 = vpop.f32.mrb[0].mxu0
      %v2102 = vadd.f32 %v1941, %v2101
      %v2103 = vpop.f32.mrb[0].mxu0
      %v2104 = vpop.f32.mrb[0].mxu0
      %v2105 = vadd.f32 %v1944, %v2104
      %v2106 = vpop.f32.mrb[0].mxu0
      %2107 = vdwg.mxu0
      %2108 = vst [vmem:[%s168] sm:$0xff] %v1982
      %2109 = vst [vmem:[%s168 + $0x8] sm:$0xff] %v1985
      %2110 = vst [vmem:[%s168 + $0x10] sm:$0xff] %v1990
      %2111 = vst [vmem:[%s168 + $0x18] sm:$0xff] %v1993
      %2112 = vst [vmem:[%s168 + $0x20] sm:$0xff] %v1998
      %2113 = vst [vmem:[%s168 + $0x28] sm:$0xff] %v2001
      %2114 = vst [vmem:[%s168 + $0x30] sm:$0xff] %v2006
      %2115 = vst [vmem:[%s168 + $0x38] sm:$0xff] %v2009
      %2116 = vst [vmem:[%s168 + $0x40] sm:$0xff] %v2014
      %2117 = vst [vmem:[%s168 + $0x48] sm:$0xff] %v2017
      %2118 = vst [vmem:[%s168 + $0x50] sm:$0xff] %v2022
      %2119 = vst [vmem:[%s168 + $0x58] sm:$0xff] %v2025
      %2120 = vst [vmem:[%s168 + $0x60] sm:$0xff] %v2030
      %2121 = vst [vmem:[%s168 + $0x68] sm:$0xff] %v2033
      %2122 = vst [vmem:[%s168 + $0x70] sm:$0xff] %v2038
      %2123 = vst [vmem:[%s168 + $0x78] sm:$0xff] %v2041
      %2124 = vst [vmem:[%s168 + $0x80] sm:$0xff] %v2046
      %2125 = vst [vmem:[%s168 + $0x88] sm:$0xff] %v2049
      %2126 = vst [vmem:[%s168 + $0x90] sm:$0xff] %v2054
      %2127 = vst [vmem:[%s168 + $0x98] sm:$0xff] %v2057
      %2128 = vst [vmem:[%s168 + $0xa0] sm:$0xff] %v2062
      %2129 = vst [vmem:[%s168 + $0xa8] sm:$0xff] %v2065
      %2130 = vst [vmem:[%s168 + $0xb0] sm:$0xff] %v2070
      %2131 = vst [vmem:[%s168 + $0xb8] sm:$0xff] %v2073
      %2132 = vst [vmem:[%s168 + $0xc0] sm:$0xff] %v2078
      %2133 = vst [vmem:[%s168 + $0xc8] sm:$0xff] %v2081
      %2134 = vst [vmem:[%s168 + $0xd0] sm:$0xff] %v2086
      %2135 = vst [vmem:[%s168 + $0xd8] sm:$0xff] %v2089
      %2136 = vst [vmem:[%s168 + $0xe0] sm:$0xff] %v2094
      %2137 = vst [vmem:[%s168 + $0xe8] sm:$0xff] %v2097
      %2138 = vst [vmem:[%s168 + $0xf0] sm:$0xff] %v2102
      %2139 = vst [vmem:[%s168 + $0xf8] sm:$0xff] %v2105
      %v2140 = vld [vmem:[%s3] sm:$0x3]
      %v2141 = vadd.f32 %v1982, %v1985
      %v2142 = vadd.f32 %v2141, %v1990
      %v2143 = vadd.f32 %v2142, %v1993
      %v2144 = vadd.f32 %v2143, %v1998
      %v2145 = vadd.f32 %v2144, %v2001
      %v2146 = vadd.f32 %v2145, %v2006
      %v2147 = vadd.f32 %v2146, %v2009
      %v2148 = vadd.f32 %v2147, %v2014
      %v2149 = vadd.f32 %v2148, %v2017
      %v2150 = vadd.f32 %v2149, %v2022
      %v2151 = vadd.f32 %v2150, %v2025
      %v2152 = vadd.f32 %v2151, %v2030
      %v2153 = vadd.f32 %v2152, %v2033
      %v2154 = vadd.f32 %v2153, %v2038
      %v2155 = vadd.f32 %v2154, %v2041
      %v2156 = vadd.f32 %v2155, %v2046
      %v2157 = vadd.f32 %v2156, %v2049
      %v2158 = vadd.f32 %v2157, %v2054
      %v2159 = vadd.f32 %v2158, %v2057
      %v2160 = vadd.f32 %v2159, %v2062
      %v2161 = vadd.f32 %v2160, %v2065
      %v2162 = vadd.f32 %v2161, %v2070
      %v2163 = vadd.f32 %v2162, %v2073
      %v2164 = vadd.f32 %v2163, %v2078
      %v2165 = vadd.f32 %v2164, %v2081
      %v2166 = vadd.f32 %v2165, %v2086
      %v2167 = vadd.f32 %v2166, %v2089
      %v2168 = vadd.f32 %v2167, %v2094
      %v2169 = vadd.f32 %v2168, %v2097
      %v2170 = vadd.f32 %v2169, %v2102
      %v2171 = vadd.f32 %v2170, %v2105
      %v2172 = vrot.slane %v2171, 4
      %v2173 = vadd.f32 %v2171, %v2172
      %v2174 = vrot.slane %v2173, 2
      %v2175 = vadd.f32 %v2173, %v2174
      %v2176 = vrot.slane %v2175, 1
      %v2177 = vadd.f32 %v2175, %v2176
      %v2178 = vmul.f32 %v1982, %v1982
      %v2179 = vmul.f32 %v1985, %v1985
      %v2180 = vmul.f32 %v1990, %v1990
      %v2181 = vmul.f32 %v1993, %v1993
      %v2182 = vmul.f32 %v1998, %v1998
      %v2183 = vmul.f32 %v2001, %v2001
      %v2184 = vmul.f32 %v2006, %v2006
      %v2185 = vmul.f32 %v2009, %v2009
      %v2186 = vmul.f32 %v2014, %v2014
      %v2187 = vmul.f32 %v2017, %v2017
      %v2188 = vmul.f32 %v2022, %v2022
      %v2189 = vmul.f32 %v2025, %v2025
      %v2190 = vmul.f32 %v2030, %v2030
      %v2191 = vmul.f32 %v2033, %v2033
      %v2192 = vmul.f32 %v2038, %v2038
      %v2193 = vmul.f32 %v2041, %v2041
      %v2194 = vmul.f32 %v2046, %v2046
      %v2195 = vmul.f32 %v2049, %v2049
      %v2196 = vmul.f32 %v2054, %v2054
      %v2197 = vmul.f32 %v2057, %v2057
      %v2198 = vmul.f32 %v2062, %v2062
      %v2199 = vmul.f32 %v2065, %v2065
      %v2200 = vmul.f32 %v2070, %v2070
      %v2201 = vmul.f32 %v2073, %v2073
      %v2202 = vmul.f32 %v2078, %v2078
      %v2203 = vmul.f32 %v2081, %v2081
      %v2204 = vmul.f32 %v2086, %v2086
      %v2205 = vmul.f32 %v2089, %v2089
      %v2206 = vmul.f32 %v2094, %v2094
      %v2207 = vmul.f32 %v2097, %v2097
      %v2208 = vmul.f32 %v2102, %v2102
      %v2209 = vmul.f32 %v2105, %v2105
      %v2210 = vadd.f32 %v2178, %v2179
      %v2211 = vadd.f32 %v2210, %v2180
      %v2212 = vadd.f32 %v2211, %v2181
      %v2213 = vadd.f32 %v2212, %v2182
      %v2214 = vadd.f32 %v2213, %v2183
      %v2215 = vadd.f32 %v2214, %v2184
      %v2216 = vadd.f32 %v2215, %v2185
      %v2217 = vadd.f32 %v2216, %v2186
      %v2218 = vadd.f32 %v2217, %v2187
      %v2219 = vadd.f32 %v2218, %v2188
      %v2220 = vadd.f32 %v2219, %v2189
      %v2221 = vadd.f32 %v2220, %v2190
      %v2222 = vadd.f32 %v2221, %v2191
      %v2223 = vadd.f32 %v2222, %v2192
      %v2224 = vadd.f32 %v2223, %v2193
      %v2225 = vadd.f32 %v2224, %v2194
      %v2226 = vadd.f32 %v2225, %v2195
      %v2227 = vadd.f32 %v2226, %v2196
      %v2228 = vadd.f32 %v2227, %v2197
      %v2229 = vadd.f32 %v2228, %v2198
      %v2230 = vadd.f32 %v2229, %v2199
      %v2231 = vadd.f32 %v2230, %v2200
      %v2232 = vadd.f32 %v2231, %v2201
      %v2233 = vadd.f32 %v2232, %v2202
      %v2234 = vadd.f32 %v2233, %v2203
      %v2235 = vadd.f32 %v2234, %v2204
      %v2236 = vadd.f32 %v2235, %v2205
      %v2237 = vadd.f32 %v2236, %v2206
      %v2238 = vadd.f32 %v2237, %v2207
      %v2239 = vadd.f32 %v2238, %v2208
      %v2240 = vadd.f32 %v2239, %v2209
      %v2241 = vrot.slane %v2240, 4
      %v2242 = vadd.f32 %v2240, %v2241
      %v2243 = vrot.slane %v2242, 2
      %v2244 = vadd.f32 %v2242, %v2243
      %v2245 = vrot.slane %v2244, 1
      %v2246 = vadd.f32 %v2244, %v2245
      %vm2247 = vcmask 1040384
      %v2248 = vsel %vm2247, %v2177, %v2246
      %v2249 = vadd.f32 %v2140, %v2248
      %2250 = vst [vmem:[%s3] sm:$0x3] %v2249
      %p2251 = scmp.lt.s32.totalorder %s15, 1
      %s2252 = scalar_select %p2251, %s15, 1
      %s2253 = smul.addr %s2252, 32
      %s2254 = smul.addr %s2253, 8
      %s2255 = scalar_lea.vmem %s2, %s2254
      // Predicated region
      $region33: #{block_forward.3} parent=27 // pred_check
        %p2256 = pneg %p80
      $region34: #{block_forward.3} parent=27 // pred_check_branch
        %2258 = sbr.rel (%p2256) target = $region36
      $region35: #{block_forward.3} parent=27 // pred_region
        _
      $region36: #{block_forward.3} parent=27 // pred_fallthru
        _
      // Predicated region
      $region37: #{block_forward.3} parent=27 // pred_check
        %p2259 = pneg %p101
      $region38: #{block_forward.3} parent=27 // pred_check_branch
        %2261 = sbr.rel (%p2259) target = $region40
      $region39: #{block_forward.3} parent=27 // pred_region
        _
      $region40: #{block_forward.3} parent=27 // pred_fallthru
        _
      // Predicated region
      $region41: #{block_forward.3} parent=27 // pred_check
        %p2262 = pneg %p101
      $region42: #{block_forward.3} parent=27 // pred_check_branch
        %2264 = sbr.rel (%p2262) target = $region44
      $region43: #{block_forward.3} parent=27 // pred_region
        _
      $region44: #{block_forward.3} parent=27 // pred_fallthru
        _
    $region28: #{block_forward.3} parent=5 // pred_fallthru
      _
    %p2265 = scmp.le.s32.totalorder 2, %s10
    // Predicated region
    $region45: #{block_forward.3} parent=5 // pred_check
      %p2266 = pneg %p2265
    $region46: #{block_forward.3} parent=5 // pred_check_branch
      %2268 = sbr.rel (%p2266) target = $region48
    $region47: #{block_forward.3} parent=5 // pred_region
      %s2269 = ssub.s32 %s10, 2
      // Predicated region
      $region49: #{block_forward.3} parent=47 // pred_check
        %p2270 = pneg %p86
      $region50: #{block_forward.3} parent=47 // pred_check_branch
        %2272 = sbr.rel (%p2270) target = $region52
      $region51: #{block_forward.3} parent=47 // pred_region
        %p2273 = scmp.lt.s32.totalorder %s16, 1
        %s2274 = scalar_select %p2273, %s16, 1
        %s2275 = smul.addr %s2274, 32
        %s2276 = smul.addr %s2275, 8
        %s2277 = scalar_lea.vmem %s2, %s2276
      $region52: #{block_forward.3} parent=47 // pred_fallthru
        _
    $region48: #{block_forward.3} parent=5 // pred_fallthru
      _
  $region6: #{block_forward.3} parent=0 // loop_footer
    %s14 = sadd.s32 1, %s10
  $region7: #{block_forward.3} parent=0 // loop_footer_branch
    %9 = sbr.rel target = $region3
  $region8: #{block_forward.3} parent=0 // loop_exit
    _

// kernel: block_forward.4
$region0: #{block_forward.4}
  #allocation0 [shape = 'u32[]', space=smem, size = 0x4, offset = 0x4, fixed_abs, tag = 'smem constant byte address 0x4 - core index']
  #allocation1 [shape = 'u32[144,128]{1,0:T(1,128)}', space=vmem, size = 0x12000, scoped, tag = 'internal scratch']
  #allocation2 [shape = 'f32[18,18,128]{2,1,0:T(8,128)}', space=vmem, size = 0x36000, scoped, tag = 'scratch operand']
  %s0 = inlined_call_operand.vmem [shape: f32[2,16,16,128], index: 0, kind: input, shape index: {}]
  %s1 = inlined_call_operand.vmem [shape: f32[2,128], index: 1, kind: input, shape index: {}]
  %s2 = inlined_call_operand.vmem [shape: bf16[1152,128], index: 2, kind: input, shape index: {}]
  %s3 = inlined_call_operand.vmem [shape: f32[2,16,16,128], index: 3, kind: output, shape index: {0}]
  %s4 = inlined_call_operand.vmem [shape: f32[2,128], index: 4, kind: output, shape index: {1}]
  %5 = xla_tuple %s3, %s4
  %s6 = sld [smem:[#allocation0]]
  $region57: #{block_forward.4} parent=0
    _
  %s8 = ssub.s32 1, %s6
  %s9 = scalar_select 0, %s8, %s6
  loop: start=0, step=1, limit=4
  $region2: #{block_forward.4} parent=0 // loop_pre_header
    _
  $region3: #{block_forward.4} parent=0 // loop_header
    %s11 = sphi 0, %s15
    %p12 = scmp.ge.s32.totalorder %s11, 4
    %s21 = sphi 0, %s23
    %s24 = sphi 0, %s21
    %s25 = sphi 0, %s24
    %s41 = sphi 0, %s25
    %s45 = sphi 0, %s45
    %s47 = sphi 0, %s45
    %s48 = sphi 0, %s47
    %s62 = sphi 0, %s48
    %s66 = sphi 0, %s66
    %s68 = sphi 0, %s66
    %s69 = sphi 0, %s68
    %s83 = sphi 0, %s69
    %s89 = sphi 0, %s91
    %s92 = sphi 0, %s89
    %s93 = sphi 0, %s92
    %s109 = sphi 0, %s93
    %s113 = sphi 0, %s113
    %s115 = sphi 0, %s113
    %s116 = sphi 0, %s115
    %s130 = sphi 0, %s116
  $region4: #{block_forward.4} parent=0 // loop_header_branch
    %14 = sbr.rel (%p12) target = $region8
  $region5: #{block_forward.4} parent=0 // loop_body
    %s16 = ssub.s32 %s11, 1
    %s17 = ssub.s32 %s11, 2
    %s18 = sadd.s32 %s11, 1
    %s19 = ssub.s32 %s11, %s18
    %p20 = scmp.eq.s32.totalorder %s19, 0
    %s22 = sadd.s32 %s21, 1
    %s23 = scalar_select %p20, %s21, %s22
    %p26 = pneg %p20
    %p27 = scmp.eq.s32.totalorder %s11, 1
    %p28 = por %p26, %p27
    %p29 = scmp.ne.s32.totalorder %s21, %s24
    %p30 = scmp.eq.s32.totalorder %s11, 0
    %p31 = por %p29, %p30
    %p32 = scmp.ne.s32.totalorder %s21, %s24
    %p33 = scmp.eq.s32.totalorder %s16, 1
    %p34 = por %p32, %p33
    %p35 = scmp.ne.s32.totalorder %s24, %s25
    %p36 = scmp.eq.s32.totalorder %s16, 0
    %p37 = por %p35, %p36
    %p38 = scmp.ne.s32.totalorder %s24, %s25
    %p39 = scmp.eq.s32.totalorder %s17, 1
    %p40 = por %p38, %p39
    %p42 = scmp.ne.s32.totalorder %s25, %s41
    %p43 = scmp.eq.s32.totalorder %s17, 0
    %p44 = por %p42, %p43
    %s46 = sadd.s32 %s45, 1
    %p49 = scmp.eq.s32.totalorder %s11, 1
    %p50 = scmp.ne.s32.totalorder %s45, %s47
    %p51 = scmp.eq.s32.totalorder %s11, 0
    %p52 = por %p50, %p51
    %p53 = scmp.ne.s32.totalorder %s45, %s47
    %p54 = scmp.eq.s32.totalorder %s16, 1
    %p55 = por %p53, %p54
    %p56 = scmp.ne.s32.totalorder %s47, %s48
    %p57 = scmp.eq.s32.totalorder %s16, 0
    %p58 = por %p56, %p57
    %p59 = scmp.ne.s32.totalorder %s47, %s48
    %p60 = scmp.eq.s32.totalorder %s17, 1
    %p61 = por %p59, %p60
    %p63 = scmp.ne.s32.totalorder %s48, %s62
    %p64 = scmp.eq.s32.totalorder %s17, 0
    %p65 = por %p63, %p64
    %s67 = sadd.s32 %s66, 1
    %p70 = scmp.eq.s32.totalorder %s11, 1
    %p71 = scmp.ne.s32.totalorder %s66, %s68
    %p72 = scmp.eq.s32.totalorder %s11, 0
    %p73 = por %p71, %p72
    %p74 = scmp.ne.s32.totalorder %s66, %s68
    %p75 = scmp.eq.s32.totalorder %s16, 1
    %p76 = por %p74, %p75
    %p77 = scmp.ne.s32.totalorder %s68, %s69
    %p78 = scmp.eq.s32.totalorder %s16, 0
    %p79 = por %p77, %p78
    %p80 = scmp.ne.s32.totalorder %s68, %s69
    %p81 = scmp.eq.s32.totalorder %s17, 1
    %p82 = por %p80, %p81
    %p84 = scmp.ne.s32.totalorder %s69, %s83
    %p85 = scmp.eq.s32.totalorder %s17, 0
    %p86 = por %p84, %p85
    %s87 = ssub.s32 %s11, %s18
    %p88 = scmp.eq.s32.totalorder %s87, 0
    %s90 = sadd.s32 %s89, 1
    %s91 = scalar_select %p88, %s89, %s90
    %p94 = pneg %p88
    %p95 = scmp.eq.s32.totalorder %s11, 1
    %p96 = por %p94, %p95
    %p97 = scmp.ne.s32.totalorder %s89, %s92
    %p98 = scmp.eq.s32.totalorder %s11, 0
    %p99 = por %p97, %p98
    %p100 = scmp.ne.s32.totalorder %s89, %s92
    %p101 = scmp.eq.s32.totalorder %s16, 1
    %p102 = por %p100, %p101
    %p103 = scmp.ne.s32.totalorder %s92, %s93
    %p104 = scmp.eq.s32.totalorder %s16, 0
    %p105 = por %p103, %p104
    %p106 = scmp.ne.s32.totalorder %s92, %s93
    %p107 = scmp.eq.s32.totalorder %s17, 1
    %p108 = por %p106, %p107
    %p110 = scmp.ne.s32.totalorder %s93, %s109
    %p111 = scmp.eq.s32.totalorder %s17, 0
    %p112 = por %p110, %p111
    %s114 = sadd.s32 %s113, 1
    %p117 = scmp.eq.s32.totalorder %s11, 1
    %p118 = scmp.ne.s32.totalorder %s113, %s115
    %p119 = scmp.eq.s32.totalorder %s11, 0
    %p120 = por %p118, %p119
    %p121 = scmp.ne.s32.totalorder %s113, %s115
    %p122 = scmp.eq.s32.totalorder %s16, 1
    %p123 = por %p121, %p122
    %p124 = scmp.ne.s32.totalorder %s115, %s116
    %p125 = scmp.eq.s32.totalorder %s16, 0
    %p126 = por %p124, %p125
    %p127 = scmp.ne.s32.totalorder %s115, %s116
    %p128 = scmp.eq.s32.totalorder %s17, 1
    %p129 = por %p127, %p128
    %p131 = scmp.ne.s32.totalorder %s116, %s130
    %p132 = scmp.eq.s32.totalorder %s17, 0
    %p133 = por %p131, %p132
    %p134 = scmp.le.s32.totalorder 1, %s11
    %p135 = scmp.lt.s32.totalorder %s11, 3
    %p136 = pnand %p134, %p135
    %p137 = pneg %p136
    // Predicated region
    $region9: #{block_forward.4} parent=5 // pred_check
      _
    $region10: #{block_forward.4} parent=5 // pred_check_branch
      %139 = sbr.rel (%p136) target = $region12
    $region11: #{block_forward.4} parent=5 // pred_region
      %s140 = ssub.s32 %s11, 1
      // Predicated region
      $region13: #{block_forward.4} parent=11 // pred_check
        %p141 = pneg %p58
      $region14: #{block_forward.4} parent=11 // pred_check_branch
        %143 = sbr.rel (%p141) target = $region16
      $region15: #{block_forward.4} parent=11 // pred_region
        _
      $region16: #{block_forward.4} parent=11 // pred_fallthru
        _
      // Predicated region
      $region17: #{block_forward.4} parent=11 // pred_check
        %p144 = pneg %p79
      $region18: #{block_forward.4} parent=11 // pred_check_branch
        %146 = sbr.rel (%p144) target = $region20
      $region19: #{block_forward.4} parent=11 // pred_region
        _
      $region20: #{block_forward.4} parent=11 // pred_fallthru
        _
    $region12: #{block_forward.4} parent=5 // pred_fallthru
      _
    %p147 = scmp.lt.s32.totalorder %s11, 2
    // Predicated region
    $region21: #{block_forward.4} parent=5 // pred_check
      %p148 = pneg %p147
    $region22: #{block_forward.4} parent=5 // pred_check_branch
      %150 = sbr.rel (%p148) target = $region24
    $region23: #{block_forward.4} parent=5 // pred_region
      // Predicated region
      $region25: #{block_forward.4} parent=23 // pred_check
        %p151 = pneg %p31
      $region26: #{block_forward.4} parent=23 // pred_check_branch
        %153 = sbr.rel (%p151) target = $region28
      $region27: #{block_forward.4} parent=23 // pred_region
        %p154 = scmp.lt.s32.totalorder %s11, 1
        %s155 = scalar_select %p154, %s11, 1
        %s156 = smul.addr %s155, 32
        %s157 = smul.addr %s156, 8
        %s158 = scalar_lea.vmem %s0, %s157
      $region28: #{block_forward.4} parent=23 // pred_fallthru
        _
    $region24: #{block_forward.4} parent=5 // pred_fallthru
      _
    %p159 = scmp.le.s32.totalorder 1, %s11
    %p160 = scmp.lt.s32.totalorder %s11, 3
    %p161 = pnand %p159, %p160
    %p162 = pneg %p161
    // Predicated region
    $region29: #{block_forward.4} parent=5 // pred_check
      _
    $region30: #{block_forward.4} parent=5 // pred_check_branch
      %164 = sbr.rel (%p161) target = $region32
    $region31: #{block_forward.4} parent=5 // pred_region
      %s165 = ssub.s32 %s11, 1
      %p166 = scmp.lt.s32.totalorder %s16, 1
      %s167 = scalar_select %p166, %s16, 1
      %s168 = smul.addr %s167, 32
      %s169 = smul.addr %s168, 8
      %s170 = scalar_lea.vmem %s0, %s169
      %p171 = pneg %p37
      %p172 = pneg %p34
      %p173 = pneg %p58
      %p174 = pneg %p55
      %p175 = pneg %p79
      %p176 = pneg %p76
      %p177 = pneg %p105
      %p178 = pneg %p102
      %p179 = scmp.lt.s32.totalorder %s16, 1
      %s180 = scalar_select %p179, %s16, 1
      %s181 = smul.addr %s180, 32
      %s182 = smul.addr %s181, 8
      %s183 = scalar_lea.vmem %s3, %s182
      %p184 = pneg %p126
      %p185 = pneg %p123
      %p186 = scmp.lt.s32.totalorder %s16, 1
      %s187 = scalar_select %p186, %s16, 1
      %s188 = smul.addr %s187, 32
      %s189 = smul.addr %s188, 8
      %s190 = scalar_lea.vmem %s0, %s189
      %p191 = scmp.lt.s32.totalorder %s16, 1
      %s192 = scalar_select %p191, %s16, 1
      %s193 = smul.addr %s192, 32
      %s194 = smul.addr %s193, 8
      %s195 = scalar_lea.vmem %s3, %s194
      %p197 = scmp.eq.s32.totalorder %s16, 0
      // Predicated region
      $region33: #{block_forward.4} parent=31 // pred_check
        %p198 = pneg %p197
      $region34: #{block_forward.4} parent=31 // pred_check_branch
        %200 = sbr.rel (%p198) target = $region36
      $region35: #{block_forward.4} parent=31 // pred_region
        %201 = vst [vmem:[%s4] sm:$0x3] 0.0
        %202 = vst [vmem:[#allocation2] sm:$0xff] 0.0
        %203 = vst [vmem:[#allocation2 + $0x8] sm:$0xff] 0.0
        %204 = vst [vmem:[#allocation2 + $0x10] sm:$0x3] 0.0
        %205 = vst [vmem:[#allocation2 + $0x18] sm:$0xff] 0.0
        %206 = vst [vmem:[#allocation2 + $0x20] sm:$0xff] 0.0
        %207 = vst [vmem:[#allocation2 + $0x28] sm:$0x3] 0.0
        %208 = vst [vmem:[#allocation2 + $0x30] sm:$0xff] 0.0
        %209 = vst [vmem:[#allocation2 + $0x38] sm:$0xff] 0.0
        %210 = vst [vmem:[#allocation2 + $0x40] sm:$0x3] 0.0
        %211 = vst [vmem:[#allocation2 + $0x48] sm:$0xff] 0.0
        %212 = vst [vmem:[#allocation2 + $0x50] sm:$0xff] 0.0
        %213 = vst [vmem:[#allocation2 + $0x58] sm:$0x3] 0.0
        %214 = vst [vmem:[#allocation2 + $0x60] sm:$0xff] 0.0
        %215 = vst [vmem:[#allocation2 + $0x68] sm:$0xff] 0.0
        %216 = vst [vmem:[#allocation2 + $0x70] sm:$0x3] 0.0
        %217 = vst [vmem:[#allocation2 + $0x78] sm:$0xff] 0.0
        %218 = vst [vmem:[#allocation2 + $0x80] sm:$0xff] 0.0
        %219 = vst [vmem:[#allocation2 + $0x88] sm:$0x3] 0.0
        %220 = vst [vmem:[#allocation2 + $0x90] sm:$0xff] 0.0
        %221 = vst [vmem:[#allocation2 + $0x98] sm:$0xff] 0.0
        %222 = vst [vmem:[#allocation2 + $0xa0] sm:$0x3] 0.0
        %223 = vst [vmem:[#allocation2 + $0xa8] sm:$0xff] 0.0
        %224 = vst [vmem:[#allocation2 + $0xb0] sm:$0xff] 0.0
        %225 = vst [vmem:[#allocation2 + $0xb8] sm:$0x3] 0.0
        %226 = vst [vmem:[#allocation2 + $0xc0] sm:$0xff] 0.0
        %227 = vst [vmem:[#allocation2 + $0xc8] sm:$0xff] 0.0
        %228 = vst [vmem:[#allocation2 + $0xd0] sm:$0x3] 0.0
        %229 = vst [vmem:[#allocation2 + $0xd8] sm:$0xff] 0.0
        %230 = vst [vmem:[#allocation2 + $0xe0] sm:$0xff] 0.0
        %231 = vst [vmem:[#allocation2 + $0xe8] sm:$0x3] 0.0
        %232 = vst [vmem:[#allocation2 + $0xf0] sm:$0xff] 0.0
        %233 = vst [vmem:[#allocation2 + $0xf8] sm:$0xff] 0.0
        %234 = vst [vmem:[#allocation2 + $0x100] sm:$0x3] 0.0
        %235 = vst [vmem:[#allocation2 + $0x108] sm:$0xff] 0.0
        %236 = vst [vmem:[#allocation2 + $0x110] sm:$0xff] 0.0
        %237 = vst [vmem:[#allocation2 + $0x118] sm:$0x3] 0.0
        %238 = vst [vmem:[#allocation2 + $0x120] sm:$0xff] 0.0
        %239 = vst [vmem:[#allocation2 + $0x128] sm:$0xff] 0.0
        %240 = vst [vmem:[#allocation2 + $0x130] sm:$0x3] 0.0
        %241 = vst [vmem:[#allocation2 + $0x138] sm:$0xff] 0.0
        %242 = vst [vmem:[#allocation2 + $0x140] sm:$0xff] 0.0
        %243 = vst [vmem:[#allocation2 + $0x148] sm:$0x3] 0.0
        %244 = vst [vmem:[#allocation2 + $0x150] sm:$0xff] 0.0
        %245 = vst [vmem:[#allocation2 + $0x158] sm:$0xff] 0.0
        %246 = vst [vmem:[#allocation2 + $0x160] sm:$0x3] 0.0
        %247 = vst [vmem:[#allocation2 + $0x168] sm:$0xff] 0.0
        %248 = vst [vmem:[#allocation2 + $0x170] sm:$0xff] 0.0
        %249 = vst [vmem:[#allocation2 + $0x178] sm:$0x3] 0.0
        %250 = vst [vmem:[#allocation2 + $0x180] sm:$0xff] 0.0
        %251 = vst [vmem:[#allocation2 + $0x188] sm:$0xff] 0.0
        %252 = vst [vmem:[#allocation2 + $0x190] sm:$0x3] 0.0
        %253 = vst [vmem:[#allocation2 + $0x198] sm:$0xff] 0.0
        %254 = vst [vmem:[#allocation2 + $0x1a0] sm:$0xff] 0.0
        %255 = vst [vmem:[#allocation2 + $0x1a8] sm:$0x3] 0.0
      $region36: #{block_forward.4} parent=31 // pred_fallthru
        _
      %v256 = vld [vmem:[%s190] sm:$0xff]
      %v257 = vld [vmem:[%s190 + $0x8] sm:$0xff]
      %v258 = vld [vmem:[%s190 + $0x10] sm:$0xff]
      %v259 = vld [vmem:[%s190 + $0x18] sm:$0xff]
      %v260 = vld [vmem:[%s190 + $0x20] sm:$0xff]
      %v261 = vld [vmem:[%s190 + $0x28] sm:$0xff]
      %v262 = vld [vmem:[%s190 + $0x30] sm:$0xff]
      %v263 = vld [vmem:[%s190 + $0x38] sm:$0xff]
      %v264 = vld [vmem:[%s190 + $0x40] sm:$0xff]
      %v265 = vld [vmem:[%s190 + $0x48] sm:$0xff]
      %v266 = vld [vmem:[%s190 + $0x50] sm:$0xff]
      %v267 = vld [vmem:[%s190 + $0x58] sm:$0xff]
      %v268 = vld [vmem:[%s190 + $0x60] sm:$0xff]
      %v269 = vld [vmem:[%s190 + $0x68] sm:$0xff]
      %v270 = vld [vmem:[%s190 + $0x70] sm:$0xff]
      %v271 = vld [vmem:[%s190 + $0x78] sm:$0xff]
      %v272 = vld [vmem:[%s190 + $0x80] sm:$0xff]
      %v273 = vld [vmem:[%s190 + $0x88] sm:$0xff]
      %v274 = vld [vmem:[%s190 + $0x90] sm:$0xff]
      %v275 = vld [vmem:[%s190 + $0x98] sm:$0xff]
      %v276 = vld [vmem:[%s190 + $0xa0] sm:$0xff]
      %v277 = vld [vmem:[%s190 + $0xa8] sm:$0xff]
      %v278 = vld [vmem:[%s190 + $0xb0] sm:$0xff]
      %v279 = vld [vmem:[%s190 + $0xb8] sm:$0xff]
      %v280 = vld [vmem:[%s190 + $0xc0] sm:$0xff]
      %v281 = vld [vmem:[%s190 + $0xc8] sm:$0xff]
      %v282 = vld [vmem:[%s190 + $0xd0] sm:$0xff]
      %v283 = vld [vmem:[%s190 + $0xd8] sm:$0xff]
      %v284 = vld [vmem:[%s190 + $0xe0] sm:$0xff]
      %v285 = vld [vmem:[%s190 + $0xe8] sm:$0xff]
      %v286 = vld [vmem:[%s190 + $0xf0] sm:$0xff]
      %v287 = vld [vmem:[%s190 + $0xf8] sm:$0xff]
      %v288 = vld [vmem:[%s1] sm:$0x1]
      %v289 = vld [vmem:[%s1 + $0x1] sm:$0x1]
      %v290 = vlaneseq
      %v291 = vshrl.u32 %v290, 7
      %v292 = vsub.s32 0, %v291
      %v293 = vrot.slane %v288, %v292
      %v294 = vmul.f32 %v256, %v293
      %v295 = vmul.f32 %v257, %v293
      %v296 = vmul.f32 %v258, %v293
      %v297 = vmul.f32 %v259, %v293
      %v298 = vmul.f32 %v260, %v293
      %v299 = vmul.f32 %v261, %v293
      %v300 = vmul.f32 %v262, %v293
      %v301 = vmul.f32 %v263, %v293
      %v302 = vmul.f32 %v264, %v293
      %v303 = vmul.f32 %v265, %v293
      %v304 = vmul.f32 %v266, %v293
      %v305 = vmul.f32 %v267, %v293
      %v306 = vmul.f32 %v268, %v293
      %v307 = vmul.f32 %v269, %v293
      %v308 = vmul.f32 %v270, %v293
      %v309 = vmul.f32 %v271, %v293
      %v310 = vmul.f32 %v272, %v293
      %v311 = vmul.f32 %v273, %v293
      %v312 = vmul.f32 %v274, %v293
      %v313 = vmul.f32 %v275, %v293
      %v314 = vmul.f32 %v276, %v293
      %v315 = vmul.f32 %v277, %v293
      %v316 = vmul.f32 %v278, %v293
      %v317 = vmul.f32 %v279, %v293
      %v318 = vmul.f32 %v280, %v293
      %v319 = vmul.f32 %v281, %v293
      %v320 = vmul.f32 %v282, %v293
      %v321 = vmul.f32 %v283, %v293
      %v322 = vmul.f32 %v284, %v293
      %v323 = vmul.f32 %v285, %v293
      %v324 = vmul.f32 %v286, %v293
      %v325 = vmul.f32 %v287, %v293
      %v326 = vlaneseq
      %v327 = vshrl.u32 %v326, 7
      %v328 = vsub.s32 0, %v327
      %v329 = vrot.slane %v289, %v328
      %v330 = vadd.f32 %v294, %v329
      %v331 = vadd.f32 %v295, %v329
      %v332 = vadd.f32 %v296, %v329
      %v333 = vadd.f32 %v297, %v329
      %v334 = vadd.f32 %v298, %v329
      %v335 = vadd.f32 %v299, %v329
      %v336 = vadd.f32 %v300, %v329
      %v337 = vadd.f32 %v301, %v329
      %v338 = vadd.f32 %v302, %v329
      %v339 = vadd.f32 %v303, %v329
      %v340 = vadd.f32 %v304, %v329
      %v341 = vadd.f32 %v305, %v329
      %v342 = vadd.f32 %v306, %v329
      %v343 = vadd.f32 %v307, %v329
      %v344 = vadd.f32 %v308, %v329
      %v345 = vadd.f32 %v309, %v329
      %v346 = vadd.f32 %v310, %v329
      %v347 = vadd.f32 %v311, %v329
      %v348 = vadd.f32 %v312, %v329
      %v349 = vadd.f32 %v313, %v329
      %v350 = vadd.f32 %v314, %v329
      %v351 = vadd.f32 %v315, %v329
      %v352 = vadd.f32 %v316, %v329
      %v353 = vadd.f32 %v317, %v329
      %v354 = vadd.f32 %v318, %v329
      %v355 = vadd.f32 %v319, %v329
      %v356 = vadd.f32 %v320, %v329
      %v357 = vadd.f32 %v321, %v329
      %v358 = vadd.f32 %v322, %v329
      %v359 = vadd.f32 %v323, %v329
      %v360 = vadd.f32 %v324, %v329
      %v361 = vadd.f32 %v325, %v329
      %v362 = vmax.f32 %v330, 0.0
      %v363 = vmax.f32 %v331, 0.0
      %v364 = vmax.f32 %v332, 0.0
      %v365 = vmax.f32 %v333, 0.0
      %v366 = vmax.f32 %v334, 0.0
      %v367 = vmax.f32 %v335, 0.0
      %v368 = vmax.f32 %v336, 0.0
      %v369 = vmax.f32 %v337, 0.0
      %v370 = vmax.f32 %v338, 0.0
      %v371 = vmax.f32 %v339, 0.0
      %v372 = vmax.f32 %v340, 0.0
      %v373 = vmax.f32 %v341, 0.0
      %v374 = vmax.f32 %v342, 0.0
      %v375 = vmax.f32 %v343, 0.0
      %v376 = vmax.f32 %v344, 0.0
      %v377 = vmax.f32 %v345, 0.0
      %v378 = vmax.f32 %v346, 0.0
      %v379 = vmax.f32 %v347, 0.0
      %v380 = vmax.f32 %v348, 0.0
      %v381 = vmax.f32 %v349, 0.0
      %v382 = vmax.f32 %v350, 0.0
      %v383 = vmax.f32 %v351, 0.0
      %v384 = vmax.f32 %v352, 0.0
      %v385 = vmax.f32 %v353, 0.0
      %v386 = vmax.f32 %v354, 0.0
      %v387 = vmax.f32 %v355, 0.0
      %v388 = vmax.f32 %v356, 0.0
      %v389 = vmax.f32 %v357, 0.0
      %v390 = vmax.f32 %v358, 0.0
      %v391 = vmax.f32 %v359, 0.0
      %v392 = vmax.f32 %v360, 0.0
      %v393 = vmax.f32 %v361, 0.0
      %s394 = scalar_lea.vmem [#allocation2], 24
      %395 = vst [vmem:[%s394 + $0x1] sm:$0xff] %v362
      %396 = vst [vmem:[%s394 + $0x9] sm:$0xff] %v363
      %397 = vst [vmem:[%s394 + $0x19] sm:$0xff] %v364
      %398 = vst [vmem:[%s394 + $0x21] sm:$0xff] %v365
      %399 = vst [vmem:[%s394 + $0x31] sm:$0xff] %v366
      %400 = vst [vmem:[%s394 + $0x39] sm:$0xff] %v367
      %401 = vst [vmem:[%s394 + $0x49] sm:$0xff] %v368
      %402 = vst [vmem:[%s394 + $0x51] sm:$0xff] %v369
      %403 = vst [vmem:[%s394 + $0x61] sm:$0xff] %v370
      %404 = vst [vmem:[%s394 + $0x69] sm:$0xff] %v371
      %405 = vst [vmem:[%s394 + $0x79] sm:$0xff] %v372
      %406 = vst [vmem:[%s394 + $0x81] sm:$0xff] %v373
      %407 = vst [vmem:[%s394 + $0x91] sm:$0xff] %v374
      %408 = vst [vmem:[%s394 + $0x99] sm:$0xff] %v375
      %409 = vst [vmem:[%s394 + $0xa9] sm:$0xff] %v376
      %410 = vst [vmem:[%s394 + $0xb1] sm:$0xff] %v377
      %411 = vst [vmem:[%s394 + $0xc1] sm:$0xff] %v378
      %412 = vst [vmem:[%s394 + $0xc9] sm:$0xff] %v379
      %413 = vst [vmem:[%s394 + $0xd9] sm:$0xff] %v380
      %414 = vst [vmem:[%s394 + $0xe1] sm:$0xff] %v381
      %415 = vst [vmem:[%s394 + $0xf1] sm:$0xff] %v382
      %416 = vst [vmem:[%s394 + $0xf9] sm:$0xff] %v383
      %417 = vst [vmem:[%s394 + $0x109] sm:$0xff] %v384
      %418 = vst [vmem:[%s394 + $0x111] sm:$0xff] %v385
      %419 = vst [vmem:[%s394 + $0x121] sm:$0xff] %v386
      %420 = vst [vmem:[%s394 + $0x129] sm:$0xff] %v387
      %421 = vst [vmem:[%s394 + $0x139] sm:$0xff] %v388
      %422 = vst [vmem:[%s394 + $0x141] sm:$0xff] %v389
      %423 = vst [vmem:[%s394 + $0x151] sm:$0xff] %v390
      %424 = vst [vmem:[%s394 + $0x159] sm:$0xff] %v391
      %425 = vst [vmem:[%s394 + $0x169] sm:$0xff] %v392
      %426 = vst [vmem:[%s394 + $0x171] sm:$0xff] %v393
      %v427 = vld [vmem:[#allocation2] sm:$0xff]
      %v428 = vld [vmem:[#allocation2 + $0x8] sm:$0xff]
      %v429 = vld [vmem:[#allocation2 + $0x18] sm:$0xff]
      %v430 = vld [vmem:[#allocation2 + $0x20] sm:$0xff]
      %v431 = vld [vmem:[#allocation2 + $0x30] sm:$0xff]
      %v432 = vld [vmem:[#allocation2 + $0x38] sm:$0xff]
      %v433 = vld [vmem:[#allocation2 + $0x48] sm:$0xff]
      %v434 = vld [vmem:[#allocation2 + $0x50] sm:$0xff]
      %v435 = vld [vmem:[#allocation2 + $0x60] sm:$0xff]
      %v436 = vld [vmem:[#allocation2 + $0x68] sm:$0xff]
      %v437 = vld [vmem:[#allocation2 + $0x78] sm:$0xff]
      %v438 = vld [vmem:[#allocation2 + $0x80] sm:$0xff]
      %v439 = vld [vmem:[#allocation2 + $0x90] sm:$0xff]
      %v440 = vld [vmem:[#allocation2 + $0x98] sm:$0xff]
      %v441 = vld [vmem:[#allocation2 + $0xa8] sm:$0xff]
      %v442 = vld [vmem:[#allocation2 + $0xb0] sm:$0xff]
      %v443 = vld [vmem:[#allocation2 + $0xc0] sm:$0xff]
      %v444 = vld [vmem:[#allocation2 + $0xc8] sm:$0xff]
      %v445 = vld [vmem:[#allocation2 + $0xd8] sm:$0xff]
      %v446 = vld [vmem:[#allocation2 + $0xe0] sm:$0xff]
      %v447 = vld [vmem:[#allocation2 + $0xf0] sm:$0xff]
      %v448 = vld [vmem:[#allocation2 + $0xf8] sm:$0xff]
      %v449 = vld [vmem:[#allocation2 + $0x108] sm:$0xff]
      %v450 = vld [vmem:[#allocation2 + $0x110] sm:$0xff]
      %v451 = vld [vmem:[#allocation2 + $0x120] sm:$0xff]
      %v452 = vld [vmem:[#allocation2 + $0x128] sm:$0xff]
      %v453 = vld [vmem:[#allocation2 + $0x138] sm:$0xff]
      %v454 = vld [vmem:[#allocation2 + $0x140] sm:$0xff]
      %v455 = vld [vmem:[#allocation2 + $0x150] sm:$0xff]
      %v456 = vld [vmem:[#allocation2 + $0x158] sm:$0xff]
      %v457 = vld [vmem:[#allocation2 + $0x168] sm:$0xff]
      %v458 = vld [vmem:[#allocation2 + $0x170] sm:$0xff]
      %v459 = vld [vmem:[#allocation2 + $0x1] sm:$0xff]
      %v460 = vld [vmem:[#allocation2 + $0x9] sm:$0xff]
      %v461 = vld [vmem:[#allocation2 + $0x19] sm:$0xff]
      %v462 = vld [vmem:[#allocation2 + $0x21] sm:$0xff]
      %v463 = vld [vmem:[#allocation2 + $0x31] sm:$0xff]
      %v464 = vld [vmem:[#allocation2 + $0x39] sm:$0xff]
      %v465 = vld [vmem:[#allocation2 + $0x49] sm:$0xff]
      %v466 = vld [vmem:[#allocation2 + $0x51] sm:$0xff]
      %v467 = vld [vmem:[#allocation2 + $0x61] sm:$0xff]
      %v468 = vld [vmem:[#allocation2 + $0x69] sm:$0xff]
      %v469 = vld [vmem:[#allocation2 + $0x79] sm:$0xff]
      %v470 = vld [vmem:[#allocation2 + $0x81] sm:$0xff]
      %v471 = vld [vmem:[#allocation2 + $0x91] sm:$0xff]
      %v472 = vld [vmem:[#allocation2 + $0x99] sm:$0xff]
      %v473 = vld [vmem:[#allocation2 + $0xa9] sm:$0xff]
      %v474 = vld [vmem:[#allocation2 + $0xb1] sm:$0xff]
      %v475 = vld [vmem:[#allocation2 + $0xc1] sm:$0xff]
      %v476 = vld [vmem:[#allocation2 + $0xc9] sm:$0xff]
      %v477 = vld [vmem:[#allocation2 + $0xd9] sm:$0xff]
      %v478 = vld [vmem:[#allocation2 + $0xe1] sm:$0xff]
      %v479 = vld [vmem:[#allocation2 + $0xf1] sm:$0xff]
      %v480 = vld [vmem:[#allocation2 + $0xf9] sm:$0xff]
      %v481 = vld [vmem:[#allocation2 + $0x109] sm:$0xff]
      %v482 = vld [vmem:[#allocation2 + $0x111] sm:$0xff]
      %v483 = vld [vmem:[#allocation2 + $0x121] sm:$0xff]
      %v484 = vld [vmem:[#allocation2 + $0x129] sm:$0xff]
      %v485 = vld [vmem:[#allocation2 + $0x139] sm:$0xff]
      %v486 = vld [vmem:[#allocation2 + $0x141] sm:$0xff]
      %v487 = vld [vmem:[#allocation2 + $0x151] sm:$0xff]
      %v488 = vld [vmem:[#allocation2 + $0x159] sm:$0xff]
      %v489 = vld [vmem:[#allocation2 + $0x169] sm:$0xff]
      %v490 = vld [vmem:[#allocation2 + $0x171] sm:$0xff]
      %v491 = vld [vmem:[#allocation2 + $0x2] sm:$0xff]
      %v492 = vld [vmem:[#allocation2 + $0xa] sm:$0xff]
      %v493 = vld [vmem:[#allocation2 + $0x1a] sm:$0xff]
      %v494 = vld [vmem:[#allocation2 + $0x22] sm:$0xff]
      %v495 = vld [vmem:[#allocation2 + $0x32] sm:$0xff]
      %v496 = vld [vmem:[#allocation2 + $0x3a] sm:$0xff]
      %v497 = vld [vmem:[#allocation2 + $0x4a] sm:$0xff]
      %v498 = vld [vmem:[#allocation2 + $0x52] sm:$0xff]
      %v499 = vld [vmem:[#allocation2 + $0x62] sm:$0xff]
      %v500 = vld [vmem:[#allocation2 + $0x6a] sm:$0xff]
      %v501 = vld [vmem:[#allocation2 + $0x7a] sm:$0xff]
      %v502 = vld [vmem:[#allocation2 + $0x82] sm:$0xff]
      %v503 = vld [vmem:[#allocation2 + $0x92] sm:$0xff]
      %v504 = vld [vmem:[#allocation2 + $0x9a] sm:$0xff]
      %v505 = vld [vmem:[#allocation2 + $0xaa] sm:$0xff]
      %v506 = vld [vmem:[#allocation2 + $0xb2] sm:$0xff]
      %v507 = vld [vmem:[#allocation2 + $0xc2] sm:$0xff]
      %v508 = vld [vmem:[#allocation2 + $0xca] sm:$0xff]
      %v509 = vld [vmem:[#allocation2 + $0xda] sm:$0xff]
      %v510 = vld [vmem:[#allocation2 + $0xe2] sm:$0xff]
      %v511 = vld [vmem:[#allocation2 + $0xf2] sm:$0xff]
      %v512 = vld [vmem:[#allocation2 + $0xfa] sm:$0xff]
      %v513 = vld [vmem:[#allocation2 + $0x10a] sm:$0xff]
      %v514 = vld [vmem:[#allocation2 + $0x112] sm:$0xff]
      %v515 = vld [vmem:[#allocation2 + $0x122] sm:$0xff]
      %v516 = vld [vmem:[#allocation2 + $0x12a] sm:$0xff]
      %v517 = vld [vmem:[#allocation2 + $0x13a] sm:$0xff]
      %v518 = vld [vmem:[#allocation2 + $0x142] sm:$0xff]
      %v519 = vld [vmem:[#allocation2 + $0x152] sm:$0xff]
      %v520 = vld [vmem:[#allocation2 + $0x15a] sm:$0xff]
      %v521 = vld [vmem:[#allocation2 + $0x16a] sm:$0xff]
      %v522 = vld [vmem:[#allocation2 + $0x172] sm:$0xff]
      %v523 = vld [vmem:[%s394] sm:$0xff]
      %v524 = vld [vmem:[%s394 + $0x8] sm:$0xff]
      %v525 = vld [vmem:[%s394 + $0x18] sm:$0xff]
      %v526 = vld [vmem:[%s394 + $0x20] sm:$0xff]
      %v527 = vld [vmem:[%s394 + $0x30] sm:$0xff]
      %v528 = vld [vmem:[%s394 + $0x38] sm:$0xff]
      %v529 = vld [vmem:[%s394 + $0x48] sm:$0xff]
      %v530 = vld [vmem:[%s394 + $0x50] sm:$0xff]
      %v531 = vld [vmem:[%s394 + $0x60] sm:$0xff]
      %v532 = vld [vmem:[%s394 + $0x68] sm:$0xff]
      %v533 = vld [vmem:[%s394 + $0x78] sm:$0xff]
      %v534 = vld [vmem:[%s394 + $0x80] sm:$0xff]
      %v535 = vld [vmem:[%s394 + $0x90] sm:$0xff]
      %v536 = vld [vmem:[%s394 + $0x98] sm:$0xff]
      %v537 = vld [vmem:[%s394 + $0xa8] sm:$0xff]
      %v538 = vld [vmem:[%s394 + $0xb0] sm:$0xff]
      %v539 = vld [vmem:[%s394 + $0xc0] sm:$0xff]
      %v540 = vld [vmem:[%s394 + $0xc8] sm:$0xff]
      %v541 = vld [vmem:[%s394 + $0xd8] sm:$0xff]
      %v542 = vld [vmem:[%s394 + $0xe0] sm:$0xff]
      %v543 = vld [vmem:[%s394 + $0xf0] sm:$0xff]
      %v544 = vld [vmem:[%s394 + $0xf8] sm:$0xff]
      %v545 = vld [vmem:[%s394 + $0x108] sm:$0xff]
      %v546 = vld [vmem:[%s394 + $0x110] sm:$0xff]
      %v547 = vld [vmem:[%s394 + $0x120] sm:$0xff]
      %v548 = vld [vmem:[%s394 + $0x128] sm:$0xff]
      %v549 = vld [vmem:[%s394 + $0x138] sm:$0xff]
      %v550 = vld [vmem:[%s394 + $0x140] sm:$0xff]
      %v551 = vld [vmem:[%s394 + $0x150] sm:$0xff]
      %v552 = vld [vmem:[%s394 + $0x158] sm:$0xff]
      %v553 = vld [vmem:[%s394 + $0x168] sm:$0xff]
      %v554 = vld [vmem:[%s394 + $0x170] sm:$0xff]
      %v555 = vld [vmem:[%s394 + $0x1] sm:$0xff]
      %v556 = vld [vmem:[%s394 + $0x9] sm:$0xff]
      %v557 = vld [vmem:[%s394 + $0x19] sm:$0xff]
      %v558 = vld [vmem:[%s394 + $0x21] sm:$0xff]
      %v559 = vld [vmem:[%s394 + $0x31] sm:$0xff]
      %v560 = vld [vmem:[%s394 + $0x39] sm:$0xff]
      %v561 = vld [vmem:[%s394 + $0x49] sm:$0xff]
      %v562 = vld [vmem:[%s394 + $0x51] sm:$0xff]
      %v563 = vld [vmem:[%s394 + $0x61] sm:$0xff]
      %v564 = vld [vmem:[%s394 + $0x69] sm:$0xff]
      %v565 = vld [vmem:[%s394 + $0x79] sm:$0xff]
      %v566 = vld [vmem:[%s394 + $0x81] sm:$0xff]
      %v567 = vld [vmem:[%s394 + $0x91] sm:$0xff]
      %v568 = vld [vmem:[%s394 + $0x99] sm:$0xff]
      %v569 = vld [vmem:[%s394 + $0xa9] sm:$0xff]
      %v570 = vld [vmem:[%s394 + $0xb1] sm:$0xff]
      %v571 = vld [vmem:[%s394 + $0xc1] sm:$0xff]
      %v572 = vld [vmem:[%s394 + $0xc9] sm:$0xff]
      %v573 = vld [vmem:[%s394 + $0xd9] sm:$0xff]
      %v574 = vld [vmem:[%s394 + $0xe1] sm:$0xff]
      %v575 = vld [vmem:[%s394 + $0xf1] sm:$0xff]
      %v576 = vld [vmem:[%s394 + $0xf9] sm:$0xff]
      %v577 = vld [vmem:[%s394 + $0x109] sm:$0xff]
      %v578 = vld [vmem:[%s394 + $0x111] sm:$0xff]
      %v579 = vld [vmem:[%s394 + $0x121] sm:$0xff]
      %v580 = vld [vmem:[%s394 + $0x129] sm:$0xff]
      %v581 = vld [vmem:[%s394 + $0x139] sm:$0xff]
      %v582 = vld [vmem:[%s394 + $0x141] sm:$0xff]
      %v583 = vld [vmem:[%s394 + $0x151] sm:$0xff]
      %v584 = vld [vmem:[%s394 + $0x159] sm:$0xff]
      %v585 = vld [vmem:[%s394 + $0x169] sm:$0xff]
      %v586 = vld [vmem:[%s394 + $0x171] sm:$0xff]
      %v587 = vld [vmem:[%s394 + $0x2] sm:$0xff]
      %v588 = vld [vmem:[%s394 + $0xa] sm:$0xff]
      %v589 = vld [vmem:[%s394 + $0x1a] sm:$0xff]
      %v590 = vld [vmem:[%s394 + $0x22] sm:$0xff]
      %v591 = vld [vmem:[%s394 + $0x32] sm:$0xff]
      %v592 = vld [vmem:[%s394 + $0x3a] sm:$0xff]
      %v593 = vld [vmem:[%s394 + $0x4a] sm:$0xff]
      %v594 = vld [vmem:[%s394 + $0x52] sm:$0xff]
      %v595 = vld [vmem:[%s394 + $0x62] sm:$0xff]
      %v596 = vld [vmem:[%s394 + $0x6a] sm:$0xff]
      %v597 = vld [vmem:[%s394 + $0x7a] sm:$0xff]
      %v598 = vld [vmem:[%s394 + $0x82] sm:$0xff]
      %v599 = vld [vmem:[%s394 + $0x92] sm:$0xff]
      %v600 = vld [vmem:[%s394 + $0x9a] sm:$0xff]
      %v601 = vld [vmem:[%s394 + $0xaa] sm:$0xff]
      %v602 = vld [vmem:[%s394 + $0xb2] sm:$0xff]
      %v603 = vld [vmem:[%s394 + $0xc2] sm:$0xff]
      %v604 = vld [vmem:[%s394 + $0xca] sm:$0xff]
      %v605 = vld [vmem:[%s394 + $0xda] sm:$0xff]
      %v606 = vld [vmem:[%s394 + $0xe2] sm:$0xff]
      %v607 = vld [vmem:[%s394 + $0xf2] sm:$0xff]
      %v608 = vld [vmem:[%s394 + $0xfa] sm:$0xff]
      %v609 = vld [vmem:[%s394 + $0x10a] sm:$0xff]
      %v610 = vld [vmem:[%s394 + $0x112] sm:$0xff]
      %v611 = vld [vmem:[%s394 + $0x122] sm:$0xff]
      %v612 = vld [vmem:[%s394 + $0x12a] sm:$0xff]
      %v613 = vld [vmem:[%s394 + $0x13a] sm:$0xff]
      %v614 = vld [vmem:[%s394 + $0x142] sm:$0xff]
      %v615 = vld [vmem:[%s394 + $0x152] sm:$0xff]
      %v616 = vld [vmem:[%s394 + $0x15a] sm:$0xff]
      %v617 = vld [vmem:[%s394 + $0x16a] sm:$0xff]
      %v618 = vld [vmem:[%s394 + $0x172] sm:$0xff]
      %s619 = scalar_lea.vmem [#allocation2], 48
      %v620 = vld [vmem:[%s619] sm:$0xff]
      %v621 = vld [vmem:[%s619 + $0x8] sm:$0xff]
      %v622 = vld [vmem:[%s619 + $0x18] sm:$0xff]
      %v623 = vld [vmem:[%s619 + $0x20] sm:$0xff]
      %v624 = vld [vmem:[%s619 + $0x30] sm:$0xff]
      %v625 = vld [vmem:[%s619 + $0x38] sm:$0xff]
      %v626 = vld [vmem:[%s619 + $0x48] sm:$0xff]
      %v627 = vld [vmem:[%s619 + $0x50] sm:$0xff]
      %v628 = vld [vmem:[%s619 + $0x60] sm:$0xff]
      %v629 = vld [vmem:[%s619 + $0x68] sm:$0xff]
      %v630 = vld [vmem:[%s619 + $0x78] sm:$0xff]
      %v631 = vld [vmem:[%s619 + $0x80] sm:$0xff]
      %v632 = vld [vmem:[%s619 + $0x90] sm:$0xff]
      %v633 = vld [vmem:[%s619 + $0x98] sm:$0xff]
      %v634 = vld [vmem:[%s619 + $0xa8] sm:$0xff]
      %v635 = vld [vmem:[%s619 + $0xb0] sm:$0xff]
      %v636 = vld [vmem:[%s619 + $0xc0] sm:$0xff]
      %v637 = vld [vmem:[%s619 + $0xc8] sm:$0xff]
      %v638 = vld [vmem:[%s619 + $0xd8] sm:$0xff]
      %v639 = vld [vmem:[%s619 + $0xe0] sm:$0xff]
      %v640 = vld [vmem:[%s619 + $0xf0] sm:$0xff]
      %v641 = vld [vmem:[%s619 + $0xf8] sm:$0xff]
      %v642 = vld [vmem:[%s619 + $0x108] sm:$0xff]
      %v643 = vld [vmem:[%s619 + $0x110] sm:$0xff]
      %v644 = vld [vmem:[%s619 + $0x120] sm:$0xff]
      %v645 = vld [vmem:[%s619 + $0x128] sm:$0xff]
      %v646 = vld [vmem:[%s619 + $0x138] sm:$0xff]
      %v647 = vld [vmem:[%s619 + $0x140] sm:$0xff]
      %v648 = vld [vmem:[%s619 + $0x150] sm:$0xff]
      %v649 = vld [vmem:[%s619 + $0x158] sm:$0xff]
      %v650 = vld [vmem:[%s619 + $0x168] sm:$0xff]
      %v651 = vld [vmem:[%s619 + $0x170] sm:$0xff]
      %v652 = vld [vmem:[%s619 + $0x1] sm:$0xff]
      %v653 = vld [vmem:[%s619 + $0x9] sm:$0xff]
      %v654 = vld [vmem:[%s619 + $0x19] sm:$0xff]
      %v655 = vld [vmem:[%s619 + $0x21] sm:$0xff]
      %v656 = vld [vmem:[%s619 + $0x31] sm:$0xff]
      %v657 = vld [vmem:[%s619 + $0x39] sm:$0xff]
      %v658 = vld [vmem:[%s619 + $0x49] sm:$0xff]
      %v659 = vld [vmem:[%s619 + $0x51] sm:$0xff]
      %v660 = vld [vmem:[%s619 + $0x61] sm:$0xff]
      %v661 = vld [vmem:[%s619 + $0x69] sm:$0xff]
      %v662 = vld [vmem:[%s619 + $0x79] sm:$0xff]
      %v663 = vld [vmem:[%s619 + $0x81] sm:$0xff]
      %v664 = vld [vmem:[%s619 + $0x91] sm:$0xff]
      %v665 = vld [vmem:[%s619 + $0x99] sm:$0xff]
      %v666 = vld [vmem:[%s619 + $0xa9] sm:$0xff]
      %v667 = vld [vmem:[%s619 + $0xb1] sm:$0xff]
      %v668 = vld [vmem:[%s619 + $0xc1] sm:$0xff]
      %v669 = vld [vmem:[%s619 + $0xc9] sm:$0xff]
      %v670 = vld [vmem:[%s619 + $0xd9] sm:$0xff]
      %v671 = vld [vmem:[%s619 + $0xe1] sm:$0xff]
      %v672 = vld [vmem:[%s619 + $0xf1] sm:$0xff]
      %v673 = vld [vmem:[%s619 + $0xf9] sm:$0xff]
      %v674 = vld [vmem:[%s619 + $0x109] sm:$0xff]
      %v675 = vld [vmem:[%s619 + $0x111] sm:$0xff]
      %v676 = vld [vmem:[%s619 + $0x121] sm:$0xff]
      %v677 = vld [vmem:[%s619 + $0x129] sm:$0xff]
      %v678 = vld [vmem:[%s619 + $0x139] sm:$0xff]
      %v679 = vld [vmem:[%s619 + $0x141] sm:$0xff]
      %v680 = vld [vmem:[%s619 + $0x151] sm:$0xff]
      %v681 = vld [vmem:[%s619 + $0x159] sm:$0xff]
      %v682 = vld [vmem:[%s619 + $0x169] sm:$0xff]
      %v683 = vld [vmem:[%s619 + $0x171] sm:$0xff]
      %v684 = vld [vmem:[%s619 + $0x2] sm:$0xff]
      %v685 = vld [vmem:[%s619 + $0xa] sm:$0xff]
      %v686 = vld [vmem:[%s619 + $0x1a] sm:$0xff]
      %v687 = vld [vmem:[%s619 + $0x22] sm:$0xff]
      %v688 = vld [vmem:[%s619 + $0x32] sm:$0xff]
      %v689 = vld [vmem:[%s619 + $0x3a] sm:$0xff]
      %v690 = vld [vmem:[%s619 + $0x4a] sm:$0xff]
      %v691 = vld [vmem:[%s619 + $0x52] sm:$0xff]
      %v692 = vld [vmem:[%s619 + $0x62] sm:$0xff]
      %v693 = vld [vmem:[%s619 + $0x6a] sm:$0xff]
      %v694 = vld [vmem:[%s619 + $0x7a] sm:$0xff]
      %v695 = vld [vmem:[%s619 + $0x82] sm:$0xff]
      %v696 = vld [vmem:[%s619 + $0x92] sm:$0xff]
      %v697 = vld [vmem:[%s619 + $0x9a] sm:$0xff]
      %v698 = vld [vmem:[%s619 + $0xaa] sm:$0xff]
      %v699 = vld [vmem:[%s619 + $0xb2] sm:$0xff]
      %v700 = vld [vmem:[%s619 + $0xc2] sm:$0xff]
      %v701 = vld [vmem:[%s619 + $0xca] sm:$0xff]
      %v702 = vld [vmem:[%s619 + $0xda] sm:$0xff]
      %v703 = vld [vmem:[%s619 + $0xe2] sm:$0xff]
      %v704 = vld [vmem:[%s619 + $0xf2] sm:$0xff]
      %v705 = vld [vmem:[%s619 + $0xfa] sm:$0xff]
      %v706 = vld [vmem:[%s619 + $0x10a] sm:$0xff]
      %v707 = vld [vmem:[%s619 + $0x112] sm:$0xff]
      %v708 = vld [vmem:[%s619 + $0x122] sm:$0xff]
      %v709 = vld [vmem:[%s619 + $0x12a] sm:$0xff]
      %v710 = vld [vmem:[%s619 + $0x13a] sm:$0xff]
      %v711 = vld [vmem:[%s619 + $0x142] sm:$0xff]
      %v712 = vld [vmem:[%s619 + $0x152] sm:$0xff]
      %v713 = vld [vmem:[%s619 + $0x15a] sm:$0xff]
      %v714 = vld [vmem:[%s619 + $0x16a] sm:$0xff]
      %v715 = vld [vmem:[%s619 + $0x172] sm:$0xff]
      %v716 = vpack.c.bf16 %v428, %v427
      %v717 = vpack.c.bf16 %v460, %v459
      %v718 = vpack.c.bf16 %v492, %v491
      %v719 = vpack.c.bf16 %v524, %v523
      %v720 = vpack.c.bf16 %v556, %v555
      %v721 = vpack.c.bf16 %v588, %v587
      %v722 = vpack.c.bf16 %v621, %v620
      %v723 = vpack.c.bf16 %v653, %v652
      %v724 = vpack.c.bf16 %v685, %v684
      %v725 = vpack.c.bf16 %v430, %v429
      %v726 = vpack.c.bf16 %v462, %v461
      %v727 = vpack.c.bf16 %v494, %v493
      %v728 = vpack.c.bf16 %v526, %v525
      %v729 = vpack.c.bf16 %v558, %v557
      %v730 = vpack.c.bf16 %v590, %v589
      %v731 = vpack.c.bf16 %v623, %v622
      %v732 = vpack.c.bf16 %v655, %v654
      %v733 = vpack.c.bf16 %v687, %v686
      %v734 = vpack.c.bf16 %v432, %v431
      %v735 = vpack.c.bf16 %v464, %v463
      %v736 = vpack.c.bf16 %v496, %v495
      %v737 = vpack.c.bf16 %v528, %v527
      %v738 = vpack.c.bf16 %v560, %v559
      %v739 = vpack.c.bf16 %v592, %v591
      %v740 = vpack.c.bf16 %v625, %v624
      %v741 = vpack.c.bf16 %v657, %v656
      %v742 = vpack.c.bf16 %v689, %v688
      %v743 = vpack.c.bf16 %v434, %v433
      %v744 = vpack.c.bf16 %v466, %v465
      %v745 = vpack.c.bf16 %v498, %v497
      %v746 = vpack.c.bf16 %v530, %v529
      %v747 = vpack.c.bf16 %v562, %v561
      %v748 = vpack.c.bf16 %v594, %v593
      %v749 = vpack.c.bf16 %v627, %v626
      %v750 = vpack.c.bf16 %v659, %v658
      %v751 = vpack.c.bf16 %v691, %v690
      %v752 = vpack.c.bf16 %v436, %v435
      %v753 = vpack.c.bf16 %v468, %v467
      %v754 = vpack.c.bf16 %v500, %v499
      %v755 = vpack.c.bf16 %v532, %v531
      %v756 = vpack.c.bf16 %v564, %v563
      %v757 = vpack.c.bf16 %v596, %v595
      %v758 = vpack.c.bf16 %v629, %v628
      %v759 = vpack.c.bf16 %v661, %v660
      %v760 = vpack.c.bf16 %v693, %v692
      %v761 = vpack.c.bf16 %v438, %v437
      %v762 = vpack.c.bf16 %v470, %v469
      %v763 = vpack.c.bf16 %v502, %v501
      %v764 = vpack.c.bf16 %v534, %v533
      %v765 = vpack.c.bf16 %v566, %v565
      %v766 = vpack.c.bf16 %v598, %v597
      %v767 = vpack.c.bf16 %v631, %v630
      %v768 = vpack.c.bf16 %v663, %v662
      %v769 = vpack.c.bf16 %v695, %v694
      %v770 = vpack.c.bf16 %v440, %v439
      %v771 = vpack.c.bf16 %v472, %v471
      %v772 = vpack.c.bf16 %v504, %v503
      %v773 = vpack.c.bf16 %v536, %v535
      %v774 = vpack.c.bf16 %v568, %v567
      %v775 = vpack.c.bf16 %v600, %v599
      %v776 = vpack.c.bf16 %v633, %v632
      %v777 = vpack.c.bf16 %v665, %v664
      %v778 = vpack.c.bf16 %v697, %v696
      %v779 = vpack.c.bf16 %v442, %v441
      %v780 = vpack.c.bf16 %v474, %v473
      %v781 = vpack.c.bf16 %v506, %v505
      %v782 = vpack.c.bf16 %v538, %v537
      %v783 = vpack.c.bf16 %v570, %v569
      %v784 = vpack.c.bf16 %v602, %v601
      %v785 = vpack.c.bf16 %v635, %v634
      %v786 = vpack.c.bf16 %v667, %v666
      %v787 = vpack.c.bf16 %v699, %v698
      %v788 = vpack.c.bf16 %v444, %v443
      %v789 = vpack.c.bf16 %v476, %v475
      %v790 = vpack.c.bf16 %v508, %v507
      %v791 = vpack.c.bf16 %v540, %v539
      %v792 = vpack.c.bf16 %v572, %v571
      %v793 = vpack.c.bf16 %v604, %v603
      %v794 = vpack.c.bf16 %v637, %v636
      %v795 = vpack.c.bf16 %v669, %v668
      %v796 = vpack.c.bf16 %v701, %v700
      %v797 = vpack.c.bf16 %v446, %v445
      %v798 = vpack.c.bf16 %v478, %v477
      %v799 = vpack.c.bf16 %v510, %v509
      %v800 = vpack.c.bf16 %v542, %v541
      %v801 = vpack.c.bf16 %v574, %v573
      %v802 = vpack.c.bf16 %v606, %v605
      %v803 = vpack.c.bf16 %v639, %v638
      %v804 = vpack.c.bf16 %v671, %v670
      %v805 = vpack.c.bf16 %v703, %v702
      %v806 = vpack.c.bf16 %v448, %v447
      %v807 = vpack.c.bf16 %v480, %v479
      %v808 = vpack.c.bf16 %v512, %v511
      %v809 = vpack.c.bf16 %v544, %v543
      %v810 = vpack.c.bf16 %v576, %v575
      %v811 = vpack.c.bf16 %v608, %v607
      %v812 = vpack.c.bf16 %v641, %v640
      %v813 = vpack.c.bf16 %v673, %v672
      %v814 = vpack.c.bf16 %v705, %v704
      %v815 = vpack.c.bf16 %v450, %v449
      %v816 = vpack.c.bf16 %v482, %v481
      %v817 = vpack.c.bf16 %v514, %v513
      %v818 = vpack.c.bf16 %v546, %v545
      %v819 = vpack.c.bf16 %v578, %v577
      %v820 = vpack.c.bf16 %v610, %v609
      %v821 = vpack.c.bf16 %v643, %v642
      %v822 = vpack.c.bf16 %v675, %v674
      %v823 = vpack.c.bf16 %v707, %v706
      %v824 = vpack.c.bf16 %v452, %v451
      %v825 = vpack.c.bf16 %v484, %v483
      %v826 = vpack.c.bf16 %v516, %v515
      %v827 = vpack.c.bf16 %v548, %v547
      %v828 = vpack.c.bf16 %v580, %v579
      %v829 = vpack.c.bf16 %v612, %v611
      %v830 = vpack.c.bf16 %v645, %v644
      %v831 = vpack.c.bf16 %v677, %v676
      %v832 = vpack.c.bf16 %v709, %v708
      %v833 = vpack.c.bf16 %v454, %v453
      %v834 = vpack.c.bf16 %v486, %v485
      %v835 = vpack.c.bf16 %v518, %v517
      %v836 = vpack.c.bf16 %v550, %v549
      %v837 = vpack.c.bf16 %v582, %v581
      %v838 = vpack.c.bf16 %v614, %v613
      %v839 = vpack.c.bf16 %v647, %v646
      %v840 = vpack.c.bf16 %v679, %v678
      %v841 = vpack.c.bf16 %v711, %v710
      %v842 = vpack.c.bf16 %v456, %v455
      %v843 = vpack.c.bf16 %v488, %v487
      %v844 = vpack.c.bf16 %v520, %v519
      %v845 = vpack.c.bf16 %v552, %v551
      %v846 = vpack.c.bf16 %v584, %v583
      %v847 = vpack.c.bf16 %v616, %v615
      %v848 = vpack.c.bf16 %v649, %v648
      %v849 = vpack.c.bf16 %v681, %v680
      %v850 = vpack.c.bf16 %v713, %v712
      %v851 = vpack.c.bf16 %v458, %v457
      %v852 = vpack.c.bf16 %v490, %v489
      %v853 = vpack.c.bf16 %v522, %v521
      %v854 = vpack.c.bf16 %v554, %v553
      %v855 = vpack.c.bf16 %v586, %v585
      %v856 = vpack.c.bf16 %v618, %v617
      %v857 = vpack.c.bf16 %v651, %v650
      %v858 = vpack.c.bf16 %v683, %v682
      %v859 = vpack.c.bf16 %v715, %v714
      %v860 = vld [vmem:[%s2] sm:$0xf]
      %v861 = vld [vmem:[%s2 + $0x4] sm:$0xf]
      %v862 = vld [vmem:[%s2 + $0x8] sm:$0xf]
      %v863 = vld [vmem:[%s2 + $0xc] sm:$0xf]
      %v864 = vld [vmem:[%s2 + $0x10] sm:$0xf]
      %v865 = vld [vmem:[%s2 + $0x14] sm:$0xf]
      %v866 = vld [vmem:[%s2 + $0x18] sm:$0xf]
      %v867 = vld [vmem:[%s2 + $0x1c] sm:$0xf]
      %v868 = vld [vmem:[%s2 + $0x20] sm:$0xf]
      %v869 = vld [vmem:[%s2 + $0x24] sm:$0xf]
      %v870 = vld [vmem:[%s2 + $0x28] sm:$0xf]
      %v871 = vld [vmem:[%s2 + $0x2c] sm:$0xf]
      %v872 = vld [vmem:[%s2 + $0x30] sm:$0xf]
      %v873 = vld [vmem:[%s2 + $0x34] sm:$0xf]
      %v874 = vld [vmem:[%s2 + $0x38] sm:$0xf]
      %v875 = vld [vmem:[%s2 + $0x3c] sm:$0xf]
      %v876 = vld [vmem:[%s2 + $0x40] sm:$0xf]
      %v877 = vld [vmem:[%s2 + $0x44] sm:$0xf]
      %v878 = vld [vmem:[%s2 + $0x48] sm:$0xf]
      %v879 = vld [vmem:[%s2 + $0x4c] sm:$0xf]
      %v880 = vld [vmem:[%s2 + $0x50] sm:$0xf]
      %v881 = vld [vmem:[%s2 + $0x54] sm:$0xf]
      %v882 = vld [vmem:[%s2 + $0x58] sm:$0xf]
      %v883 = vld [vmem:[%s2 + $0x5c] sm:$0xf]
      %v884 = vld [vmem:[%s2 + $0x60] sm:$0xf]
      %v885 = vld [vmem:[%s2 + $0x64] sm:$0xf]
      %v886 = vld [vmem:[%s2 + $0x68] sm:$0xf]
      %v887 = vld [vmem:[%s2 + $0x6c] sm:$0xf]
      %v888 = vld [vmem:[%s2 + $0x70] sm:$0xf]
      %v889 = vld [vmem:[%s2 + $0x74] sm:$0xf]
      %v890 = vld [vmem:[%s2 + $0x78] sm:$0xf]
      %v891 = vld [vmem:[%s2 + $0x7c] sm:$0xf]
      %v892 = vld [vmem:[%s2 + $0x80] sm:$0xf]
      %v893 = vld [vmem:[%s2 + $0x84] sm:$0xf]
      %v894 = vld [vmem:[%s2 + $0x88] sm:$0xf]
      %v895 = vld [vmem:[%s2 + $0x8c] sm:$0xf]
      %v896 = vld [vmem:[%s2 + $0x90] sm:$0xf]
      %v897 = vld [vmem:[%s2 + $0x94] sm:$0xf]
      %v898 = vld [vmem:[%s2 + $0x98] sm:$0xf]
      %v899 = vld [vmem:[%s2 + $0x9c] sm:$0xf]
      %v900 = vld [vmem:[%s2 + $0xa0] sm:$0xf]
      %v901 = vld [vmem:[%s2 + $0xa4] sm:$0xf]
      %v902 = vld [vmem:[%s2 + $0xa8] sm:$0xf]
      %v903 = vld [vmem:[%s2 + $0xac] sm:$0xf]
      %v904 = vld [vmem:[%s2 + $0xb0] sm:$0xf]
      %v905 = vld [vmem:[%s2 + $0xb4] sm:$0xf]
      %v906 = vld [vmem:[%s2 + $0xb8] sm:$0xf]
      %v907 = vld [vmem:[%s2 + $0xbc] sm:$0xf]
      %v908 = vld [vmem:[%s2 + $0xc0] sm:$0xf]
      %v909 = vld [vmem:[%s2 + $0xc4] sm:$0xf]
      %v910 = vld [vmem:[%s2 + $0xc8] sm:$0xf]
      %v911 = vld [vmem:[%s2 + $0xcc] sm:$0xf]
      %v912 = vld [vmem:[%s2 + $0xd0] sm:$0xf]
      %v913 = vld [vmem:[%s2 + $0xd4] sm:$0xf]
      %v914 = vld [vmem:[%s2 + $0xd8] sm:$0xf]
      %v915 = vld [vmem:[%s2 + $0xdc] sm:$0xf]
      %v916 = vld [vmem:[%s2 + $0xe0] sm:$0xf]
      %v917 = vld [vmem:[%s2 + $0xe4] sm:$0xf]
      %v918 = vld [vmem:[%s2 + $0xe8] sm:$0xf]
      %v919 = vld [vmem:[%s2 + $0xec] sm:$0xf]
      %v920 = vld [vmem:[%s2 + $0xf0] sm:$0xf]
      %v921 = vld [vmem:[%s2 + $0xf4] sm:$0xf]
      %v922 = vld [vmem:[%s2 + $0xf8] sm:$0xf]
      %v923 = vld [vmem:[%s2 + $0xfc] sm:$0xf]
      %v924 = vld [vmem:[%s2 + $0x100] sm:$0xf]
      %v925 = vld [vmem:[%s2 + $0x104] sm:$0xf]
      %v926 = vld [vmem:[%s2 + $0x108] sm:$0xf]
      %v927 = vld [vmem:[%s2 + $0x10c] sm:$0xf]
      %v928 = vld [vmem:[%s2 + $0x110] sm:$0xf]
      %v929 = vld [vmem:[%s2 + $0x114] sm:$0xf]
      %v930 = vld [vmem:[%s2 + $0x118] sm:$0xf]
      %v931 = vld [vmem:[%s2 + $0x11c] sm:$0xf]
      %v932 = vld [vmem:[%s2 + $0x120] sm:$0xf]
      %v933 = vld [vmem:[%s2 + $0x124] sm:$0xf]
      %v934 = vld [vmem:[%s2 + $0x128] sm:$0xf]
      %v935 = vld [vmem:[%s2 + $0x12c] sm:$0xf]
      %v936 = vld [vmem:[%s2 + $0x130] sm:$0xf]
      %v937 = vld [vmem:[%s2 + $0x134] sm:$0xf]
      %v938 = vld [vmem:[%s2 + $0x138] sm:$0xf]
      %v939 = vld [vmem:[%s2 + $0x13c] sm:$0xf]
      %v940 = vld [vmem:[%s2 + $0x140] sm:$0xf]
      %v941 = vld [vmem:[%s2 + $0x144] sm:$0xf]
      %v942 = vld [vmem:[%s2 + $0x148] sm:$0xf]
      %v943 = vld [vmem:[%s2 + $0x14c] sm:$0xf]
      %v944 = vld [vmem:[%s2 + $0x150] sm:$0xf]
      %v945 = vld [vmem:[%s2 + $0x154] sm:$0xf]
      %v946 = vld [vmem:[%s2 + $0x158] sm:$0xf]
      %v947 = vld [vmem:[%s2 + $0x15c] sm:$0xf]
      %v948 = vld [vmem:[%s2 + $0x160] sm:$0xf]
      %v949 = vld [vmem:[%s2 + $0x164] sm:$0xf]
      %v950 = vld [vmem:[%s2 + $0x168] sm:$0xf]
      %v951 = vld [vmem:[%s2 + $0x16c] sm:$0xf]
      %v952 = vld [vmem:[%s2 + $0x170] sm:$0xf]
      %v953 = vld [vmem:[%s2 + $0x174] sm:$0xf]
      %v954 = vld [vmem:[%s2 + $0x178] sm:$0xf]
      %v955 = vld [vmem:[%s2 + $0x17c] sm:$0xf]
      %v956 = vld [vmem:[%s2 + $0x180] sm:$0xf]
      %v957 = vld [vmem:[%s2 + $0x184] sm:$0xf]
      %v958 = vld [vmem:[%s2 + $0x188] sm:$0xf]
      %v959 = vld [vmem:[%s2 + $0x18c] sm:$0xf]
      %v960 = vld [vmem:[%s2 + $0x190] sm:$0xf]
      %v961 = vld [vmem:[%s2 + $0x194] sm:$0xf]
      %v962 = vld [vmem:[%s2 + $0x198] sm:$0xf]
      %v963 = vld [vmem:[%s2 + $0x19c] sm:$0xf]
      %v964 = vld [vmem:[%s2 + $0x1a0] sm:$0xf]
      %v965 = vld [vmem:[%s2 + $0x1a4] sm:$0xf]
      %v966 = vld [vmem:[%s2 + $0x1a8] sm:$0xf]
      %v967 = vld [vmem:[%s2 + $0x1ac] sm:$0xf]
      %v968 = vld [vmem:[%s2 + $0x1b0] sm:$0xf]
      %v969 = vld [vmem:[%s2 + $0x1b4] sm:$0xf]
      %v970 = vld [vmem:[%s2 + $0x1b8] sm:$0xf]
      %v971 = vld [vmem:[%s2 + $0x1bc] sm:$0xf]
      %v972 = vld [vmem:[%s2 + $0x1c0] sm:$0xf]
      %v973 = vld [vmem:[%s2 + $0x1c4] sm:$0xf]
      %v974 = vld [vmem:[%s2 + $0x1c8] sm:$0xf]
      %v975 = vld [vmem:[%s2 + $0x1cc] sm:$0xf]
      %v976 = vld [vmem:[%s2 + $0x1d0] sm:$0xf]
      %v977 = vld [vmem:[%s2 + $0x1d4] sm:$0xf]
      %v978 = vld [vmem:[%s2 + $0x1d8] sm:$0xf]
      %v979 = vld [vmem:[%s2 + $0x1dc] sm:$0xf]
      %v980 = vld [vmem:[%s2 + $0x1e0] sm:$0xf]
      %v981 = vld [vmem:[%s2 + $0x1e4] sm:$0xf]
      %v982 = vld [vmem:[%s2 + $0x1e8] sm:$0xf]
      %v983 = vld [vmem:[%s2 + $0x1ec] sm:$0xf]
      %v984 = vld [vmem:[%s2 + $0x1f0] sm:$0xf]
      %v985 = vld [vmem:[%s2 + $0x1f4] sm:$0xf]
      %v986 = vld [vmem:[%s2 + $0x1f8] sm:$0xf]
      %v987 = vld [vmem:[%s2 + $0x1fc] sm:$0xf]
      %v988 = vld [vmem:[%s2 + $0x200] sm:$0xf]
      %v989 = vld [vmem:[%s2 + $0x204] sm:$0xf]
      %v990 = vld [vmem:[%s2 + $0x208] sm:$0xf]
      %v991 = vld [vmem:[%s2 + $0x20c] sm:$0xf]
      %v992 = vld [vmem:[%s2 + $0x210] sm:$0xf]
      %v993 = vld [vmem:[%s2 + $0x214] sm:$0xf]
      %v994 = vld [vmem:[%s2 + $0x218] sm:$0xf]
      %v995 = vld [vmem:[%s2 + $0x21c] sm:$0xf]
      %v996 = vld [vmem:[%s2 + $0x220] sm:$0xf]
      %v997 = vld [vmem:[%s2 + $0x224] sm:$0xf]
      %v998 = vld [vmem:[%s2 + $0x228] sm:$0xf]
      %v999 = vld [vmem:[%s2 + $0x22c] sm:$0xf]
      %v1000 = vld [vmem:[%s2 + $0x230] sm:$0xf]
      %v1001 = vld [vmem:[%s2 + $0x234] sm:$0xf]
      %v1002 = vld [vmem:[%s2 + $0x238] sm:$0xf]
      %v1003 = vld [vmem:[%s2 + $0x23c] sm:$0xf]
      %v1148 = vunpack.c.l.b16 %v860
      %v1149 = vunpack.c.l.b16 %v861
      %v1150 = vunpack.c.l.b16 %v862
      %v1151 = vunpack.c.l.b16 %v863
      %v1152 = vunpack.c.l.b16 %v864
      %v1153 = vunpack.c.l.b16 %v865
      %v1154 = vunpack.c.l.b16 %v866
      %v1155 = vunpack.c.l.b16 %v867
      %v1156 = vunpack.c.l.b16 %v868
      %v1157 = vunpack.c.l.b16 %v869
      %v1158 = vunpack.c.l.b16 %v870
      %v1159 = vunpack.c.l.b16 %v871
      %v1160 = vunpack.c.l.b16 %v872
      %v1161 = vunpack.c.l.b16 %v873
      %v1162 = vunpack.c.l.b16 %v874
      %v1163 = vunpack.c.l.b16 %v875
      %v1164 = vunpack.c.l.b16 %v876
      %v1165 = vunpack.c.l.b16 %v877
      %v1166 = vunpack.c.l.b16 %v878
      %v1167 = vunpack.c.l.b16 %v879
      %v1168 = vunpack.c.l.b16 %v880
      %v1169 = vunpack.c.l.b16 %v881
      %v1170 = vunpack.c.l.b16 %v882
      %v1171 = vunpack.c.l.b16 %v883
      %v1172 = vunpack.c.l.b16 %v884
      %v1173 = vunpack.c.l.b16 %v885
      %v1174 = vunpack.c.l.b16 %v886
      %v1175 = vunpack.c.l.b16 %v887
      %v1176 = vunpack.c.l.b16 %v888
      %v1177 = vunpack.c.l.b16 %v889
      %v1178 = vunpack.c.l.b16 %v890
      %v1179 = vunpack.c.l.b16 %v891
      %v1180 = vunpack.c.l.b16 %v892
      %v1181 = vunpack.c.l.b16 %v893
      %v1182 = vunpack.c.l.b16 %v894
      %v1183 = vunpack.c.l.b16 %v895
      %v1184 = vunpack.c.l.b16 %v896
      %v1185 = vunpack.c.l.b16 %v897
      %v1186 = vunpack.c.l.b16 %v898
      %v1187 = vunpack.c.l.b16 %v899
      %v1188 = vunpack.c.l.b16 %v900
      %v1189 = vunpack.c.l.b16 %v901
      %v1190 = vunpack.c.l.b16 %v902
      %v1191 = vunpack.c.l.b16 %v903
      %v1192 = vunpack.c.l.b16 %v904
      %v1193 = vunpack.c.l.b16 %v905
      %v1194 = vunpack.c.l.b16 %v906
      %v1195 = vunpack.c.l.b16 %v907
      %v1196 = vunpack.c.l.b16 %v908
      %v1197 = vunpack.c.l.b16 %v909
      %v1198 = vunpack.c.l.b16 %v910
      %v1199 = vunpack.c.l.b16 %v911
      %v1200 = vunpack.c.l.b16 %v912
      %v1201 = vunpack.c.l.b16 %v913
      %v1202 = vunpack.c.l.b16 %v914
      %v1203 = vunpack.c.l.b16 %v915
      %v1204 = vunpack.c.l.b16 %v916
      %v1205 = vunpack.c.l.b16 %v917
      %v1206 = vunpack.c.l.b16 %v918
      %v1207 = vunpack.c.l.b16 %v919
      %v1208 = vunpack.c.l.b16 %v920
      %v1209 = vunpack.c.l.b16 %v921
      %v1210 = vunpack.c.l.b16 %v922
      %v1211 = vunpack.c.l.b16 %v923
      %v1212 = vunpack.c.l.b16 %v924
      %v1213 = vunpack.c.l.b16 %v925
      %v1214 = vunpack.c.l.b16 %v926
      %v1215 = vunpack.c.l.b16 %v927
      %v1216 = vunpack.c.l.b16 %v928
      %v1217 = vunpack.c.l.b16 %v929
      %v1218 = vunpack.c.l.b16 %v930
      %v1219 = vunpack.c.l.b16 %v931
      %v1220 = vunpack.c.l.b16 %v932
      %v1221 = vunpack.c.l.b16 %v933
      %v1222 = vunpack.c.l.b16 %v934
      %v1223 = vunpack.c.l.b16 %v935
      %v1224 = vunpack.c.l.b16 %v936
      %v1225 = vunpack.c.l.b16 %v937
      %v1226 = vunpack.c.l.b16 %v938
      %v1227 = vunpack.c.l.b16 %v939
      %v1228 = vunpack.c.l.b16 %v940
      %v1229 = vunpack.c.l.b16 %v941
      %v1230 = vunpack.c.l.b16 %v942
      %v1231 = vunpack.c.l.b16 %v943
      %v1232 = vunpack.c.l.b16 %v944
      %v1233 = vunpack.c.l.b16 %v945
      %v1234 = vunpack.c.l.b16 %v946
      %v1235 = vunpack.c.l.b16 %v947
      %v1236 = vunpack.c.l.b16 %v948
      %v1237 = vunpack.c.l.b16 %v949
      %v1238 = vunpack.c.l.b16 %v950
      %v1239 = vunpack.c.l.b16 %v951
      %v1240 = vunpack.c.l.b16 %v952
      %v1241 = vunpack.c.l.b16 %v953
      %v1242 = vunpack.c.l.b16 %v954
      %v1243 = vunpack.c.l.b16 %v955
      %v1244 = vunpack.c.l.b16 %v956
      %v1245 = vunpack.c.l.b16 %v957
      %v1246 = vunpack.c.l.b16 %v958
      %v1247 = vunpack.c.l.b16 %v959
      %v1248 = vunpack.c.l.b16 %v960
      %v1249 = vunpack.c.l.b16 %v961
      %v1250 = vunpack.c.l.b16 %v962
      %v1251 = vunpack.c.l.b16 %v963
      %v1252 = vunpack.c.l.b16 %v964
      %v1253 = vunpack.c.l.b16 %v965
      %v1254 = vunpack.c.l.b16 %v966
      %v1255 = vunpack.c.l.b16 %v967
      %v1256 = vunpack.c.l.b16 %v968
      %v1257 = vunpack.c.l.b16 %v969
      %v1258 = vunpack.c.l.b16 %v970
      %v1259 = vunpack.c.l.b16 %v971
      %v1260 = vunpack.c.l.b16 %v972
      %v1261 = vunpack.c.l.b16 %v973
      %v1262 = vunpack.c.l.b16 %v974
      %v1263 = vunpack.c.l.b16 %v975
      %v1264 = vunpack.c.l.b16 %v976
      %v1265 = vunpack.c.l.b16 %v977
      %v1266 = vunpack.c.l.b16 %v978
      %v1267 = vunpack.c.l.b16 %v979
      %v1268 = vunpack.c.l.b16 %v980
      %v1269 = vunpack.c.l.b16 %v981
      %v1270 = vunpack.c.l.b16 %v982
      %v1271 = vunpack.c.l.b16 %v983
      %v1272 = vunpack.c.l.b16 %v984
      %v1273 = vunpack.c.l.b16 %v985
      %v1274 = vunpack.c.l.b16 %v986
      %v1275 = vunpack.c.l.b16 %v987
      %v1276 = vunpack.c.l.b16 %v988
      %v1277 = vunpack.c.l.b16 %v989
      %v1278 = vunpack.c.l.b16 %v990
      %v1279 = vunpack.c.l.b16 %v991
      %v1280 = vunpack.c.l.b16 %v992
      %v1281 = vunpack.c.l.b16 %v993
      %v1282 = vunpack.c.l.b16 %v994
      %v1283 = vunpack.c.l.b16 %v995
      %v1284 = vunpack.c.l.b16 %v996
      %v1285 = vunpack.c.l.b16 %v997
      %v1286 = vunpack.c.l.b16 %v998
      %v1287 = vunpack.c.l.b16 %v999
      %v1288 = vunpack.c.l.b16 %v1000
      %v1289 = vunpack.c.l.b16 %v1001
      %v1290 = vunpack.c.l.b16 %v1002
      %v1291 = vunpack.c.l.b16 %v1003
      %v1292 = vpack.c.b16 %v1149, %v1148
      %v1293 = vpack.c.b16 %v1151, %v1150
      %v1294 = vpack.c.b16 %v1153, %v1152
      %v1295 = vpack.c.b16 %v1155, %v1154
      %v1296 = vpack.c.b16 %v1157, %v1156
      %v1297 = vpack.c.b16 %v1159, %v1158
      %v1298 = vpack.c.b16 %v1161, %v1160
      %v1299 = vpack.c.b16 %v1163, %v1162
      %v1300 = vpack.c.b16 %v1165, %v1164
      %v1301 = vpack.c.b16 %v1167, %v1166
      %v1302 = vpack.c.b16 %v1169, %v1168
      %v1303 = vpack.c.b16 %v1171, %v1170
      %v1304 = vpack.c.b16 %v1173, %v1172
      %v1305 = vpack.c.b16 %v1175, %v1174
      %v1306 = vpack.c.b16 %v1177, %v1176
      %v1307 = vpack.c.b16 %v1179, %v1178
      %v1308 = vpack.c.b16 %v1181, %v1180
      %v1309 = vpack.c.b16 %v1183, %v1182
      %v1310 = vpack.c.b16 %v1185, %v1184
      %v1311 = vpack.c.b16 %v1187, %v1186
      %v1312 = vpack.c.b16 %v1189, %v1188
      %v1313 = vpack.c.b16 %v1191, %v1190
      %v1314 = vpack.c.b16 %v1193, %v1192
      %v1315 = vpack.c.b16 %v1195, %v1194
      %v1316 = vpack.c.b16 %v1197, %v1196
      %v1317 = vpack.c.b16 %v1199, %v1198
      %v1318 = vpack.c.b16 %v1201, %v1200
      %v1319 = vpack.c.b16 %v1203, %v1202
      %v1320 = vpack.c.b16 %v1205, %v1204
      %v1321 = vpack.c.b16 %v1207, %v1206
      %v1322 = vpack.c.b16 %v1209, %v1208
      %v1323 = vpack.c.b16 %v1211, %v1210
      %v1324 = vpack.c.b16 %v1213, %v1212
      %v1325 = vpack.c.b16 %v1215, %v1214
      %v1326 = vpack.c.b16 %v1217, %v1216
      %v1327 = vpack.c.b16 %v1219, %v1218
      %v1328 = vpack.c.b16 %v1221, %v1220
      %v1329 = vpack.c.b16 %v1223, %v1222
      %v1330 = vpack.c.b16 %v1225, %v1224
      %v1331 = vpack.c.b16 %v1227, %v1226
      %v1332 = vpack.c.b16 %v1229, %v1228
      %v1333 = vpack.c.b16 %v1231, %v1230
      %v1334 = vpack.c.b16 %v1233, %v1232
      %v1335 = vpack.c.b16 %v1235, %v1234
      %v1336 = vpack.c.b16 %v1237, %v1236
      %v1337 = vpack.c.b16 %v1239, %v1238
      %v1338 = vpack.c.b16 %v1241, %v1240
      %v1339 = vpack.c.b16 %v1243, %v1242
      %v1340 = vpack.c.b16 %v1245, %v1244
      %v1341 = vpack.c.b16 %v1247, %v1246
      %v1342 = vpack.c.b16 %v1249, %v1248
      %v1343 = vpack.c.b16 %v1251, %v1250
      %v1344 = vpack.c.b16 %v1253, %v1252
      %v1345 = vpack.c.b16 %v1255, %v1254
      %v1346 = vpack.c.b16 %v1257, %v1256
      %v1347 = vpack.c.b16 %v1259, %v1258
      %v1348 = vpack.c.b16 %v1261, %v1260
      %v1349 = vpack.c.b16 %v1263, %v1262
      %v1350 = vpack.c.b16 %v1265, %v1264
      %v1351 = vpack.c.b16 %v1267, %v1266
      %v1352 = vpack.c.b16 %v1269, %v1268
      %v1353 = vpack.c.b16 %v1271, %v1270
      %v1354 = vpack.c.b16 %v1273, %v1272
      %v1355 = vpack.c.b16 %v1275, %v1274
      %v1356 = vpack.c.b16 %v1277, %v1276
      %v1357 = vpack.c.b16 %v1279, %v1278
      %v1358 = vpack.c.b16 %v1281, %v1280
      %v1359 = vpack.c.b16 %v1283, %v1282
      %v1360 = vpack.c.b16 %v1285, %v1284
      %v1361 = vpack.c.b16 %v1287, %v1286
      %v1362 = vpack.c.b16 %v1289, %v1288
      %v1363 = vpack.c.b16 %v1291, %v1290
      %1436 = vmatprep.subr.bf16.mxu0 0
      %1437 = vmatpush1.bf16.msra.mxu0 %v1292
      %1438 = vmatprep.subr.bf16.mxu0 0
      %1439 = vmatpush1.bf16.msra.mxu0 %v1293
      %1440 = vmatprep.subr.bf16.mxu0 0
      %1441 = vmatpush1.bf16.msra.mxu0 %v1294
      %1442 = vmatprep.subr.bf16.mxu0 0
      %1443 = vmatpush1.bf16.msra.mxu0 %v1295
      %1444 = vmatprep.subr.bf16.mxu0 0
      %1445 = vmatpush1.bf16.msra.mxu0 %v1296
      %1446 = vmatprep.subr.bf16.mxu0 0
      %1447 = vmatpush1.bf16.msra.mxu0 %v1297
      %1448 = vmatprep.subr.bf16.mxu0 0
      %1449 = vmatpush1.bf16.msra.mxu0 %v1298
      %1450 = vmatprep.subr.bf16.mxu0 0
      %1451 = vmatpush1.bf16.msra.mxu0 %v1299
      %1452 = vmatprep.subr.bf16.mxu0 0
      %1453 = vmatpush1.bf16.msra.mxu0 %v1300
      %1454 = vmatprep.subr.bf16.mxu0 0
      %1455 = vmatpush1.bf16.msra.mxu0 %v1301
      %1456 = vmatprep.subr.bf16.mxu0 0
      %1457 = vmatpush1.bf16.msra.mxu0 %v1302
      %1458 = vmatprep.subr.bf16.mxu0 0
      %1459 = vmatpush1.bf16.msra.mxu0 %v1303
      %1460 = vmatprep.subr.bf16.mxu0 0
      %1461 = vmatpush1.bf16.msra.mxu0 %v1304
      %1462 = vmatprep.subr.bf16.mxu0 0
      %1463 = vmatpush1.bf16.msra.mxu0 %v1305
      %1464 = vmatprep.subr.bf16.mxu0 0
      %1465 = vmatpush1.bf16.msra.mxu0 %v1306
      %1466 = vmatprep.subr.bf16.mxu0 0
      %1467 = vmatpush1.bf16.msra.mxu0 %v1307
      %1468 = vmatprep.mubr.bf16.mxu0 %v717
      %1469 = vmatmul.mubr.bf16.gmra.mrb[0].mxu0 %v716
      %v1470 = vpop.f32.mrb[0].mxu0
      %v1471 = vadd.f32 0.0, %v1470
      %v1472 = vpop.f32.mrb[0].mxu0
      %v1473 = vpop.f32.mrb[0].mxu0
      %v1474 = vadd.f32 0.0, %v1473
      %v1475 = vpop.f32.mrb[0].mxu0
      %1476 = vmatprep.mubr.bf16.mxu0 %v726
      %1477 = vmatmul.mubr.bf16.gmra.mrb[0].mxu0 %v725
      %v1478 = vpop.f32.mrb[0].mxu0
      %v1479 = vadd.f32 0.0, %v1478
      %v1480 = vpop.f32.mrb[0].mxu0
      %v1481 = vpop.f32.mrb[0].mxu0
      %v1482 = vadd.f32 0.0, %v1481
      %v1483 = vpop.f32.mrb[0].mxu0
      %1484 = vmatprep.mubr.bf16.mxu0 %v735
      %1485 = vmatmul.mubr.bf16.gmra.mrb[0].mxu0 %v734
      %v1486 = vpop.f32.mrb[0].mxu0
      %v1487 = vadd.f32 0.0, %v1486
      %v1488 = vpop.f32.mrb[0].mxu0
      %v1489 = vpop.f32.mrb[0].mxu0
      %v1490 = vadd.f32 0.0, %v1489
      %v1491 = vpop.f32.mrb[0].mxu0
      %1492 = vmatprep.mubr.bf16.mxu0 %v744
      %1493 = vmatmul.mubr.bf16.gmra.mrb[0].mxu0 %v743
      %v1494 = vpop.f32.mrb[0].mxu0
      %v1495 = vadd.f32 0.0, %v1494
      %v1496 = vpop.f32.mrb[0].mxu0
      %v1497 = vpop.f32.mrb[0].mxu0
      %v1498 = vadd.f32 0.0, %v1497
      %v1499 = vpop.f32.mrb[0].mxu0
      %1500 = vmatprep.mubr.bf16.mxu0 %v753
      %1501 = vmatmul.mubr.bf16.gmra.mrb[0].mxu0 %v752
      %v1502 = vpop.f32.mrb[0].mxu0
      %v1503 = vadd.f32 0.0, %v1502
      %v1504 = vpop.f32.mrb[0].mxu0
      %v1505 = vpop.f32.mrb[0].mxu0
      %v1506 = vadd.f32 0.0, %v1505
      %v1507 = vpop.f32.mrb[0].mxu0
      %1508 = vmatprep.mubr.bf16.mxu0 %v762
      %1509 = vmatmul.mubr.bf16.gmra.mrb[0].mxu0 %v761
      %v1510 = vpop.f32.mrb[0].mxu0
      %v1511 = vadd.f32 0.0, %v1510
      %v1512 = vpop.f32.mrb[0].mxu0
      %v1513 = vpop.f32.mrb[0].mxu0
      %v1514 = vadd.f32 0.0, %v1513
      %v1515 = vpop.f32.mrb[0].mxu0
      %1516 = vmatprep.mubr.bf16.mxu0 %v771
      %1517 = vmatmul.mubr.bf16.gmra.mrb[0].mxu0 %v770
      %v1518 = vpop.f32.mrb[0].mxu0
      %v1519 = vadd.f32 0.0, %v1518
      %v1520 = vpop.f32.mrb[0].mxu0
      %v1521 = vpop.f32.mrb[0].mxu0
      %v1522 = vadd.f32 0.0, %v1521
      %v1523 = vpop.f32.mrb[0].mxu0
      %1524 = vmatprep.mubr.bf16.mxu0 %v780
      %1525 = vmatmul.mubr.bf16.gmra.mrb[0].mxu0 %v779
      %v1526 = vpop.f32.mrb[0].mxu0
      %v1527 = vadd.f32 0.0, %v1526
      %v1528 = vpop.f32.mrb[0].mxu0
      %v1529 = vpop.f32.mrb[0].mxu0
      %v1530 = vadd.f32 0.0, %v1529
      %v1531 = vpop.f32.mrb[0].mxu0
      %1532 = vmatprep.mubr.bf16.mxu0 %v789
      %1533 = vmatmul.mubr.bf16.gmra.mrb[0].mxu0 %v788
      %v1534 = vpop.f32.mrb[0].mxu0
      %v1535 = vadd.f32 0.0, %v1534
      %v1536 = vpop.f32.mrb[0].mxu0
      %v1537 = vpop.f32.mrb[0].mxu0
      %v1538 = vadd.f32 0.0, %v1537
      %v1539 = vpop.f32.mrb[0].mxu0
      %1540 = vmatprep.mubr.bf16.mxu0 %v798
      %1541 = vmatmul.mubr.bf16.gmra.mrb[0].mxu0 %v797
      %v1542 = vpop.f32.mrb[0].mxu0
      %v1543 = vadd.f32 0.0, %v1542
      %v1544 = vpop.f32.mrb[0].mxu0
      %v1545 = vpop.f32.mrb[0].mxu0
      %v1546 = vadd.f32 0.0, %v1545
      %v1547 = vpop.f32.mrb[0].mxu0
      %1548 = vmatprep.mubr.bf16.mxu0 %v807
      %1549 = vmatmul.mubr.bf16.gmra.mrb[0].mxu0 %v806
      %v1550 = vpop.f32.mrb[0].mxu0
      %v1551 = vadd.f32 0.0, %v1550
      %v1552 = vpop.f32.mrb[0].mxu0
      %v1553 = vpop.f32.mrb[0].mxu0
      %v1554 = vadd.f32 0.0, %v1553
      %v1555 = vpop.f32.mrb[0].mxu0
      %1556 = vmatprep.mubr.bf16.mxu0 %v816
      %1557 = vmatmul.mubr.bf16.gmra.mrb[0].mxu0 %v815
      %v1558 = vpop.f32.mrb[0].mxu0
      %v1559 = vadd.f32 0.0, %v1558
      %v1560 = vpop.f32.mrb[0].mxu0
      %v1561 = vpop.f32.mrb[0].mxu0
      %v1562 = vadd.f32 0.0, %v1561
      %v1563 = vpop.f32.mrb[0].mxu0
      %1564 = vmatprep.mubr.bf16.mxu0 %v825
      %1565 = vmatmul.mubr.bf16.gmra.mrb[0].mxu0 %v824
      %v1566 = vpop.f32.mrb[0].mxu0
      %v1567 = vadd.f32 0.0, %v1566
      %v1568 = vpop.f32.mrb[0].mxu0
      %v1569 = vpop.f32.mrb[0].mxu0
      %v1570 = vadd.f32 0.0, %v1569
      %v1571 = vpop.f32.mrb[0].mxu0
      %1572 = vmatprep.mubr.bf16.mxu0 %v834
      %1573 = vmatmul.mubr.bf16.gmra.mrb[0].mxu0 %v833
      %v1574 = vpop.f32.mrb[0].mxu0
      %v1575 = vadd.f32 0.0, %v1574
      %v1576 = vpop.f32.mrb[0].mxu0
      %v1577 = vpop.f32.mrb[0].mxu0
      %v1578 = vadd.f32 0.0, %v1577
      %v1579 = vpop.f32.mrb[0].mxu0
      %1580 = vmatprep.mubr.bf16.mxu0 %v843
      %1581 = vmatmul.mubr.bf16.gmra.mrb[0].mxu0 %v842
      %v1582 = vpop.f32.mrb[0].mxu0
      %v1583 = vadd.f32 0.0, %v1582
      %v1584 = vpop.f32.mrb[0].mxu0
      %v1585 = vpop.f32.mrb[0].mxu0
      %v1586 = vadd.f32 0.0, %v1585
      %v1587 = vpop.f32.mrb[0].mxu0
      %1588 = vmatprep.mubr.bf16.mxu0 %v852
      %1589 = vmatmul.mubr.bf16.gmra.mrb[0].mxu0 %v851
      %v1590 = vpop.f32.mrb[0].mxu0
      %v1591 = vadd.f32 0.0, %v1590
      %v1592 = vpop.f32.mrb[0].mxu0
      %v1593 = vpop.f32.mrb[0].mxu0
      %v1594 = vadd.f32 0.0, %v1593
      %v1595 = vpop.f32.mrb[0].mxu0
      %1596 = vdwg.mxu0
      %1597 = vmatprep.subr.bf16.mxu0 0
      %1598 = vmatpush1.bf16.msra.mxu0 %v1308
      %1599 = vmatprep.subr.bf16.mxu0 0
      %1600 = vmatpush1.bf16.msra.mxu0 %v1309
      %1601 = vmatprep.subr.bf16.mxu0 0
      %1602 = vmatpush1.bf16.msra.mxu0 %v1310
      %1603 = vmatprep.subr.bf16.mxu0 0
      %1604 = vmatpush1.bf16.msra.mxu0 %v1311
      %1605 = vmatprep.subr.bf16.mxu0 0
      %1606 = vmatpush1.bf16.msra.mxu0 %v1312
      %1607 = vmatprep.subr.bf16.mxu0 0
      %1608 = vmatpush1.bf16.msra.mxu0 %v1313
      %1609 = vmatprep.subr.bf16.mxu0 0
      %1610 = vmatpush1.bf16.msra.mxu0 %v1314
      %1611 = vmatprep.subr.bf16.mxu0 0
      %1612 = vmatpush1.bf16.msra.mxu0 %v1315
      %1613 = vmatprep.subr.bf16.mxu0 0
      %1614 = vmatpush1.bf16.msra.mxu0 %v1316
      %1615 = vmatprep.subr.bf16.mxu0 0
      %1616 = vmatpush1.bf16.msra.mxu0 %v1317
      %1617 = vmatprep.subr.bf16.mxu0 0
      %1618 = vmatpush1.bf16.msra.mxu0 %v1318
      %1619 = vmatprep.subr.bf16.mxu0 0
      %1620 = vmatpush1.bf16.msra.mxu0 %v1319
      %1621 = vmatprep.subr.bf16.mxu0 0
      %1622 = vmatpush1.bf16.msra.mxu0 %v1320
      %1623 = vmatprep.subr.bf16.mxu0 0
      %1624 = vmatpush1.bf16.msra.mxu0 %v1321
      %1625 = vmatprep.subr.bf16.mxu0 0
      %1626 = vmatpush1.bf16.msra.mxu0 %v1322
      %1627 = vmatprep.subr.bf16.mxu0 0
      %1628 = vmatpush1.bf16.msra.mxu0 %v1323
      %1629 = vmatprep.mubr.bf16.mxu0 %v719
      %1630 = vmatmul.mubr.bf16.gmra.mrb[0].mxu0 %v718
      %v1631 = vpop.f32.mrb[0].mxu0
      %v1632 = vadd.f32 %v1471, %v1631
      %v1633 = vpop.f32.mrb[0].mxu0
      %v1634 = vpop.f32.mrb[0].mxu0
      %v1635 = vadd.f32 %v1474, %v1634
      %v1636 = vpop.f32.mrb[0].mxu0
      %1637 = vmatprep.mubr.bf16.mxu0 %v728
      %1638 = vmatmul.mubr.bf16.gmra.mrb[0].mxu0 %v727
      %v1639 = vpop.f32.mrb[0].mxu0
      %v1640 = vadd.f32 %v1479, %v1639
      %v1641 = vpop.f32.mrb[0].mxu0
      %v1642 = vpop.f32.mrb[0].mxu0
      %v1643 = vadd.f32 %v1482, %v1642
      %v1644 = vpop.f32.mrb[0].mxu0
      %1645 = vmatprep.mubr.bf16.mxu0 %v737
      %1646 = vmatmul.mubr.bf16.gmra.mrb[0].mxu0 %v736
      %v1647 = vpop.f32.mrb[0].mxu0
      %v1648 = vadd.f32 %v1487, %v1647
      %v1649 = vpop.f32.mrb[0].mxu0
      %v1650 = vpop.f32.mrb[0].mxu0
      %v1651 = vadd.f32 %v1490, %v1650
      %v1652 = vpop.f32.mrb[0].mxu0
      %1653 = vmatprep.mubr.bf16.mxu0 %v746
      %1654 = vmatmul.mubr.bf16.gmra.mrb[0].mxu0 %v745
      %v1655 = vpop.f32.mrb[0].mxu0
      %v1656 = vadd.f32 %v1495, %v1655
      %v1657 = vpop.f32.mrb[0].mxu0
      %v1658 = vpop.f32.mrb[0].mxu0
      %v1659 = vadd.f32 %v1498, %v1658
      %v1660 = vpop.f32.mrb[0].mxu0
      %1661 = vmatprep.mubr.bf16.mxu0 %v755
      %1662 = vmatmul.mubr.bf16.gmra.mrb[0].mxu0 %v754
      %v1663 = vpop.f32.mrb[0].mxu0
      %v1664 = vadd.f32 %v1503, %v1663
      %v1665 = vpop.f32.mrb[0].mxu0
      %v1666 = vpop.f32.mrb[0].mxu0
      %v1667 = vadd.f32 %v1506, %v1666
      %v1668 = vpop.f32.mrb[0].mxu0
      %1669 = vmatprep.mubr.bf16.mxu0 %v764
      %1670 = vmatmul.mubr.bf16.gmra.mrb[0].mxu0 %v763
      %v1671 = vpop.f32.mrb[0].mxu0
      %v1672 = vadd.f32 %v1511, %v1671
      %v1673 = vpop.f32.mrb[0].mxu0
      %v1674 = vpop.f32.mrb[0].mxu0
      %v1675 = vadd.f32 %v1514, %v1674
      %v1676 = vpop.f32.mrb[0].mxu0
      %1677 = vmatprep.mubr.bf16.mxu0 %v773
      %1678 = vmatmul.mubr.bf16.gmra.mrb[0].mxu0 %v772
      %v1679 = vpop.f32.mrb[0].mxu0
      %v1680 = vadd.f32 %v1519, %v1679
      %v1681 = vpop.f32.mrb[0].mxu0
      %v1682 = vpop.f32.mrb[0].mxu0
      %v1683 = vadd.f32 %v1522, %v1682
      %v1684 = vpop.f32.mrb[0].mxu0
      %1685 = vmatprep.mubr.bf16.mxu0 %v782
      %1686 = vmatmul.mubr.bf16.gmra.mrb[0].mxu0 %v781
      %v1687 = vpop.f32.mrb[0].mxu0
      %v1688 = vadd.f32 %v1527, %v1687
      %v1689 = vpop.f32.mrb[0].mxu0
      %v1690 = vpop.f32.mrb[0].mxu0
      %v1691 = vadd.f32 %v1530, %v1690
      %v1692 = vpop.f32.mrb[0].mxu0
      %1693 = vmatprep.mubr.bf16.mxu0 %v791
      %1694 = vmatmul.mubr.bf16.gmra.mrb[0].mxu0 %v790
      %v1695 = vpop.f32.mrb[0].mxu0
      %v1696 = vadd.f32 %v1535, %v1695
      %v1697 = vpop.f32.mrb[0].mxu0
      %v1698 = vpop.f32.mrb[0].mxu0
      %v1699 = vadd.f32 %v1538, %v1698
      %v1700 = vpop.f32.mrb[0].mxu0
      %1701 = vmatprep.mubr.bf16.mxu0 %v800
      %1702 = vmatmul.mubr.bf16.gmra.mrb[0].mxu0 %v799
      %v1703 = vpop.f32.mrb[0].mxu0
      %v1704 = vadd.f32 %v1543, %v1703
      %v1705 = vpop.f32.mrb[0].mxu0
      %v1706 = vpop.f32.mrb[0].mxu0
      %v1707 = vadd.f32 %v1546, %v1706
      %v1708 = vpop.f32.mrb[0].mxu0
      %1709 = vmatprep.mubr.bf16.mxu0 %v809
      %1710 = vmatmul.mubr.bf16.gmra.mrb[0].mxu0 %v808
      %v1711 = vpop.f32.mrb[0].mxu0
      %v1712 = vadd.f32 %v1551, %v1711
      %v1713 = vpop.f32.mrb[0].mxu0
      %v1714 = vpop.f32.mrb[0].mxu0
      %v1715 = vadd.f32 %v1554, %v1714
      %v1716 = vpop.f32.mrb[0].mxu0
      %1717 = vmatprep.mubr.bf16.mxu0 %v818
      %1718 = vmatmul.mubr.bf16.gmra.mrb[0].mxu0 %v817
      %v1719 = vpop.f32.mrb[0].mxu0
      %v1720 = vadd.f32 %v1559, %v1719
      %v1721 = vpop.f32.mrb[0].mxu0
      %v1722 = vpop.f32.mrb[0].mxu0
      %v1723 = vadd.f32 %v1562, %v1722
      %v1724 = vpop.f32.mrb[0].mxu0
      %1725 = vmatprep.mubr.bf16.mxu0 %v827
      %1726 = vmatmul.mubr.bf16.gmra.mrb[0].mxu0 %v826
      %v1727 = vpop.f32.mrb[0].mxu0
      %v1728 = vadd.f32 %v1567, %v1727
      %v1729 = vpop.f32.mrb[0].mxu0
      %v1730 = vpop.f32.mrb[0].mxu0
      %v1731 = vadd.f32 %v1570, %v1730
      %v1732 = vpop.f32.mrb[0].mxu0
      %1733 = vmatprep.mubr.bf16.mxu0 %v836
      %1734 = vmatmul.mubr.bf16.gmra.mrb[0].mxu0 %v835
      %v1735 = vpop.f32.mrb[0].mxu0
      %v1736 = vadd.f32 %v1575, %v1735
      %v1737 = vpop.f32.mrb[0].mxu0
      %v1738 = vpop.f32.mrb[0].mxu0
      %v1739 = vadd.f32 %v1578, %v1738
      %v1740 = vpop.f32.mrb[0].mxu0
      %1741 = vmatprep.mubr.bf16.mxu0 %v845
      %1742 = vmatmul.mubr.bf16.gmra.mrb[0].mxu0 %v844
      %v1743 = vpop.f32.mrb[0].mxu0
      %v1744 = vadd.f32 %v1583, %v1743
      %v1745 = vpop.f32.mrb[0].mxu0
      %v1746 = vpop.f32.mrb[0].mxu0
      %v1747 = vadd.f32 %v1586, %v1746
      %v1748 = vpop.f32.mrb[0].mxu0
      %1749 = vmatprep.mubr.bf16.mxu0 %v854
      %1750 = vmatmul.mubr.bf16.gmra.mrb[0].mxu0 %v853
      %v1751 = vpop.f32.mrb[0].mxu0
      %v1752 = vadd.f32 %v1591, %v1751
      %v1753 = vpop.f32.mrb[0].mxu0
      %v1754 = vpop.f32.mrb[0].mxu0
      %v1755 = vadd.f32 %v1594, %v1754
      %v1756 = vpop.f32.mrb[0].mxu0
      %1757 = vdwg.mxu0
      %1758 = vmatprep.subr.bf16.mxu0 0
      %1759 = vmatpush1.bf16.msra.mxu0 %v1324
      %1760 = vmatprep.subr.bf16.mxu0 0
      %1761 = vmatpush1.bf16.msra.mxu0 %v1325
      %1762 = vmatprep.subr.bf16.mxu0 0
      %1763 = vmatpush1.bf16.msra.mxu0 %v1326
      %1764 = vmatprep.subr.bf16.mxu0 0
      %1765 = vmatpush1.bf16.msra.mxu0 %v1327
      %1766 = vmatprep.subr.bf16.mxu0 0
      %1767 = vmatpush1.bf16.msra.mxu0 %v1328
      %1768 = vmatprep.subr.bf16.mxu0 0
      %1769 = vmatpush1.bf16.msra.mxu0 %v1329
      %1770 = vmatprep.subr.bf16.mxu0 0
      %1771 = vmatpush1.bf16.msra.mxu0 %v1330
      %1772 = vmatprep.subr.bf16.mxu0 0
      %1773 = vmatpush1.bf16.msra.mxu0 %v1331
      %1774 = vmatprep.subr.bf16.mxu0 0
      %1775 = vmatpush1.bf16.msra.mxu0 %v1332
      %1776 = vmatprep.subr.bf16.mxu0 0
      %1777 = vmatpush1.bf16.msra.mxu0 %v1333
      %1778 = vmatprep.subr.bf16.mxu0 0
      %1779 = vmatpush1.bf16.msra.mxu0 %v1334
      %1780 = vmatprep.subr.bf16.mxu0 0
      %1781 = vmatpush1.bf16.msra.mxu0 %v1335
      %1782 = vmatprep.subr.bf16.mxu0 0
      %1783 = vmatpush1.bf16.msra.mxu0 %v1336
      %1784 = vmatprep.subr.bf16.mxu0 0
      %1785 = vmatpush1.bf16.msra.mxu0 %v1337
      %1786 = vmatprep.subr.bf16.mxu0 0
      %1787 = vmatpush1.bf16.msra.mxu0 %v1338
      %1788 = vmatprep.subr.bf16.mxu0 0
      %1789 = vmatpush1.bf16.msra.mxu0 %v1339
      %1790 = vmatprep.mubr.bf16.mxu0 %v721
      %1791 = vmatmul.mubr.bf16.gmra.mrb[0].mxu0 %v720
      %v1792 = vpop.f32.mrb[0].mxu0
      %v1793 = vadd.f32 %v1632, %v1792
      %v1794 = vpop.f32.mrb[0].mxu0
      %v1795 = vpop.f32.mrb[0].mxu0
      %v1796 = vadd.f32 %v1635, %v1795
      %v1797 = vpop.f32.mrb[0].mxu0
      %1798 = vmatprep.mubr.bf16.mxu0 %v730
      %1799 = vmatmul.mubr.bf16.gmra.mrb[0].mxu0 %v729
      %v1800 = vpop.f32.mrb[0].mxu0
      %v1801 = vadd.f32 %v1640, %v1800
      %v1802 = vpop.f32.mrb[0].mxu0
      %v1803 = vpop.f32.mrb[0].mxu0
      %v1804 = vadd.f32 %v1643, %v1803
      %v1805 = vpop.f32.mrb[0].mxu0
      %1806 = vmatprep.mubr.bf16.mxu0 %v739
      %1807 = vmatmul.mubr.bf16.gmra.mrb[0].mxu0 %v738
      %v1808 = vpop.f32.mrb[0].mxu0
      %v1809 = vadd.f32 %v1648, %v1808
      %v1810 = vpop.f32.mrb[0].mxu0
      %v1811 = vpop.f32.mrb[0].mxu0
      %v1812 = vadd.f32 %v1651, %v1811
      %v1813 = vpop.f32.mrb[0].mxu0
      %1814 = vmatprep.mubr.bf16.mxu0 %v748
      %1815 = vmatmul.mubr.bf16.gmra.mrb[0].mxu0 %v747
      %v1816 = vpop.f32.mrb[0].mxu0
      %v1817 = vadd.f32 %v1656, %v1816
      %v1818 = vpop.f32.mrb[0].mxu0
      %v1819 = vpop.f32.mrb[0].mxu0
      %v1820 = vadd.f32 %v1659, %v1819
      %v1821 = vpop.f32.mrb[0].mxu0
      %1822 = vmatprep.mubr.bf16.mxu0 %v757
      %1823 = vmatmul.mubr.bf16.gmra.mrb[0].mxu0 %v756
      %v1824 = vpop.f32.mrb[0].mxu0
      %v1825 = vadd.f32 %v1664, %v1824
      %v1826 = vpop.f32.mrb[0].mxu0
      %v1827 = vpop.f32.mrb[0].mxu0
      %v1828 = vadd.f32 %v1667, %v1827
      %v1829 = vpop.f32.mrb[0].mxu0
      %1830 = vmatprep.mubr.bf16.mxu0 %v766
      %1831 = vmatmul.mubr.bf16.gmra.mrb[0].mxu0 %v765
      %v1832 = vpop.f32.mrb[0].mxu0
      %v1833 = vadd.f32 %v1672, %v1832
      %v1834 = vpop.f32.mrb[0].mxu0
      %v1835 = vpop.f32.mrb[0].mxu0
      %v1836 = vadd.f32 %v1675, %v1835
      %v1837 = vpop.f32.mrb[0].mxu0
      %1838 = vmatprep.mubr.bf16.mxu0 %v775
      %1839 = vmatmul.mubr.bf16.gmra.mrb[0].mxu0 %v774
      %v1840 = vpop.f32.mrb[0].mxu0
      %v1841 = vadd.f32 %v1680, %v1840
      %v1842 = vpop.f32.mrb[0].mxu0
      %v1843 = vpop.f32.mrb[0].mxu0
      %v1844 = vadd.f32 %v1683, %v1843
      %v1845 = vpop.f32.mrb[0].mxu0
      %1846 = vmatprep.mubr.bf16.mxu0 %v784
      %1847 = vmatmul.mubr.bf16.gmra.mrb[0].mxu0 %v783
      %v1848 = vpop.f32.mrb[0].mxu0
      %v1849 = vadd.f32 %v1688, %v1848
      %v1850 = vpop.f32.mrb[0].mxu0
      %v1851 = vpop.f32.mrb[0].mxu0
      %v1852 = vadd.f32 %v1691, %v1851
      %v1853 = vpop.f32.mrb[0].mxu0
      %1854 = vmatprep.mubr.bf16.mxu0 %v793
      %1855 = vmatmul.mubr.bf16.gmra.mrb[0].mxu0 %v792
      %v1856 = vpop.f32.mrb[0].mxu0
      %v1857 = vadd.f32 %v1696, %v1856
      %v1858 = vpop.f32.mrb[0].mxu0
      %v1859 = vpop.f32.mrb[0].mxu0
      %v1860 = vadd.f32 %v1699, %v1859
      %v1861 = vpop.f32.mrb[0].mxu0
      %1862 = vmatprep.mubr.bf16.mxu0 %v802
      %1863 = vmatmul.mubr.bf16.gmra.mrb[0].mxu0 %v801
      %v1864 = vpop.f32.mrb[0].mxu0
      %v1865 = vadd.f32 %v1704, %v1864
      %v1866 = vpop.f32.mrb[0].mxu0
      %v1867 = vpop.f32.mrb[0].mxu0
      %v1868 = vadd.f32 %v1707, %v1867
      %v1869 = vpop.f32.mrb[0].mxu0
      %1870 = vmatprep.mubr.bf16.mxu0 %v811
      %1871 = vmatmul.mubr.bf16.gmra.mrb[0].mxu0 %v810
      %v1872 = vpop.f32.mrb[0].mxu0
      %v1873 = vadd.f32 %v1712, %v1872
      %v1874 = vpop.f32.mrb[0].mxu0
      %v1875 = vpop.f32.mrb[0].mxu0
      %v1876 = vadd.f32 %v1715, %v1875
      %v1877 = vpop.f32.mrb[0].mxu0
      %1878 = vmatprep.mubr.bf16.mxu0 %v820
      %1879 = vmatmul.mubr.bf16.gmra.mrb[0].mxu0 %v819
      %v1880 = vpop.f32.mrb[0].mxu0
      %v1881 = vadd.f32 %v1720, %v1880
      %v1882 = vpop.f32.mrb[0].mxu0
      %v1883 = vpop.f32.mrb[0].mxu0
      %v1884 = vadd.f32 %v1723, %v1883
      %v1885 = vpop.f32.mrb[0].mxu0
      %1886 = vmatprep.mubr.bf16.mxu0 %v829
      %1887 = vmatmul.mubr.bf16.gmra.mrb[0].mxu0 %v828
      %v1888 = vpop.f32.mrb[0].mxu0
      %v1889 = vadd.f32 %v1728, %v1888
      %v1890 = vpop.f32.mrb[0].mxu0
      %v1891 = vpop.f32.mrb[0].mxu0
      %v1892 = vadd.f32 %v1731, %v1891
      %v1893 = vpop.f32.mrb[0].mxu0
      %1894 = vmatprep.mubr.bf16.mxu0 %v838
      %1895 = vmatmul.mubr.bf16.gmra.mrb[0].mxu0 %v837
      %v1896 = vpop.f32.mrb[0].mxu0
      %v1897 = vadd.f32 %v1736, %v1896
      %v1898 = vpop.f32.mrb[0].mxu0
      %v1899 = vpop.f32.mrb[0].mxu0
      %v1900 = vadd.f32 %v1739, %v1899
      %v1901 = vpop.f32.mrb[0].mxu0
      %1902 = vmatprep.mubr.bf16.mxu0 %v847
      %1903 = vmatmul.mubr.bf16.gmra.mrb[0].mxu0 %v846
      %v1904 = vpop.f32.mrb[0].mxu0
      %v1905 = vadd.f32 %v1744, %v1904
      %v1906 = vpop.f32.mrb[0].mxu0
      %v1907 = vpop.f32.mrb[0].mxu0
      %v1908 = vadd.f32 %v1747, %v1907
      %v1909 = vpop.f32.mrb[0].mxu0
      %1910 = vmatprep.mubr.bf16.mxu0 %v856
      %1911 = vmatmul.mubr.bf16.gmra.mrb[0].mxu0 %v855
      %v1912 = vpop.f32.mrb[0].mxu0
      %v1913 = vadd.f32 %v1752, %v1912
      %v1914 = vpop.f32.mrb[0].mxu0
      %v1915 = vpop.f32.mrb[0].mxu0
      %v1916 = vadd.f32 %v1755, %v1915
      %v1917 = vpop.f32.mrb[0].mxu0
      %1918 = vdwg.mxu0
      %1919 = vmatprep.subr.bf16.mxu0 0
      %1920 = vmatpush1.bf16.msra.mxu0 %v1340
      %1921 = vmatprep.subr.bf16.mxu0 0
      %1922 = vmatpush1.bf16.msra.mxu0 %v1341
      %1923 = vmatprep.subr.bf16.mxu0 0
      %1924 = vmatpush1.bf16.msra.mxu0 %v1342
      %1925 = vmatprep.subr.bf16.mxu0 0
      %1926 = vmatpush1.bf16.msra.mxu0 %v1343
      %1927 = vmatprep.subr.bf16.mxu0 0
      %1928 = vmatpush1.bf16.msra.mxu0 %v1344
      %1929 = vmatprep.subr.bf16.mxu0 0
      %1930 = vmatpush1.bf16.msra.mxu0 %v1345
      %1931 = vmatprep.subr.bf16.mxu0 0
      %1932 = vmatpush1.bf16.msra.mxu0 %v1346
      %1933 = vmatprep.subr.bf16.mxu0 0
      %1934 = vmatpush1.bf16.msra.mxu0 %v1347
      %1935 = vmatprep.subr.bf16.mxu0 0
      %1936 = vmatpush1.bf16.msra.mxu0 %v1348
      %1937 = vmatprep.subr.bf16.mxu0 0
      %1938 = vmatpush1.bf16.msra.mxu0 %v1349
      %1939 = vmatprep.subr.bf16.mxu0 0
      %1940 = vmatpush1.bf16.msra.mxu0 %v1350
      %1941 = vmatprep.subr.bf16.mxu0 0
      %1942 = vmatpush1.bf16.msra.mxu0 %v1351
      %1943 = vmatprep.subr.bf16.mxu0 0
      %1944 = vmatpush1.bf16.msra.mxu0 %v1352
      %1945 = vmatprep.subr.bf16.mxu0 0
      %1946 = vmatpush1.bf16.msra.mxu0 %v1353
      %1947 = vmatprep.subr.bf16.mxu0 0
      %1948 = vmatpush1.bf16.msra.mxu0 %v1354
      %1949 = vmatprep.subr.bf16.mxu0 0
      %1950 = vmatpush1.bf16.msra.mxu0 %v1355
      %1951 = vmatprep.mubr.bf16.mxu0 %v723
      %1952 = vmatmul.mubr.bf16.gmra.mrb[0].mxu0 %v722
      %v1953 = vpop.f32.mrb[0].mxu0
      %v1954 = vadd.f32 %v1793, %v1953
      %v1955 = vpop.f32.mrb[0].mxu0
      %v1956 = vpop.f32.mrb[0].mxu0
      %v1957 = vadd.f32 %v1796, %v1956
      %v1958 = vpop.f32.mrb[0].mxu0
      %1959 = vmatprep.mubr.bf16.mxu0 %v732
      %1960 = vmatmul.mubr.bf16.gmra.mrb[0].mxu0 %v731
      %v1961 = vpop.f32.mrb[0].mxu0
      %v1962 = vadd.f32 %v1801, %v1961
      %v1963 = vpop.f32.mrb[0].mxu0
      %v1964 = vpop.f32.mrb[0].mxu0
      %v1965 = vadd.f32 %v1804, %v1964
      %v1966 = vpop.f32.mrb[0].mxu0
      %1967 = vmatprep.mubr.bf16.mxu0 %v741
      %1968 = vmatmul.mubr.bf16.gmra.mrb[0].mxu0 %v740
      %v1969 = vpop.f32.mrb[0].mxu0
      %v1970 = vadd.f32 %v1809, %v1969
      %v1971 = vpop.f32.mrb[0].mxu0
      %v1972 = vpop.f32.mrb[0].mxu0
      %v1973 = vadd.f32 %v1812, %v1972
      %v1974 = vpop.f32.mrb[0].mxu0
      %1975 = vmatprep.mubr.bf16.mxu0 %v750
      %1976 = vmatmul.mubr.bf16.gmra.mrb[0].mxu0 %v749
      %v1977 = vpop.f32.mrb[0].mxu0
      %v1978 = vadd.f32 %v1817, %v1977
      %v1979 = vpop.f32.mrb[0].mxu0
      %v1980 = vpop.f32.mrb[0].mxu0
      %v1981 = vadd.f32 %v1820, %v1980
      %v1982 = vpop.f32.mrb[0].mxu0
      %1983 = vmatprep.mubr.bf16.mxu0 %v759
      %1984 = vmatmul.mubr.bf16.gmra.mrb[0].mxu0 %v758
      %v1985 = vpop.f32.mrb[0].mxu0
      %v1986 = vadd.f32 %v1825, %v1985
      %v1987 = vpop.f32.mrb[0].mxu0
      %v1988 = vpop.f32.mrb[0].mxu0
      %v1989 = vadd.f32 %v1828, %v1988
      %v1990 = vpop.f32.mrb[0].mxu0
      %1991 = vmatprep.mubr.bf16.mxu0 %v768
      %1992 = vmatmul.mubr.bf16.gmra.mrb[0].mxu0 %v767
      %v1993 = vpop.f32.mrb[0].mxu0
      %v1994 = vadd.f32 %v1833, %v1993
      %v1995 = vpop.f32.mrb[0].mxu0
      %v1996 = vpop.f32.mrb[0].mxu0
      %v1997 = vadd.f32 %v1836, %v1996
      %v1998 = vpop.f32.mrb[0].mxu0
      %1999 = vmatprep.mubr.bf16.mxu0 %v777
      %2000 = vmatmul.mubr.bf16.gmra.mrb[0].mxu0 %v776
      %v2001 = vpop.f32.mrb[0].mxu0
      %v2002 = vadd.f32 %v1841, %v2001
      %v2003 = vpop.f32.mrb[0].mxu0
      %v2004 = vpop.f32.mrb[0].mxu0
      %v2005 = vadd.f32 %v1844, %v2004
      %v2006 = vpop.f32.mrb[0].mxu0
      %2007 = vmatprep.mubr.bf16.mxu0 %v786
      %2008 = vmatmul.mubr.bf16.gmra.mrb[0].mxu0 %v785
      %v2009 = vpop.f32.mrb[0].mxu0
      %v2010 = vadd.f32 %v1849, %v2009
      %v2011 = vpop.f32.mrb[0].mxu0
      %v2012 = vpop.f32.mrb[0].mxu0
      %v2013 = vadd.f32 %v1852, %v2012
      %v2014 = vpop.f32.mrb[0].mxu0
      %2015 = vmatprep.mubr.bf16.mxu0 %v795
      %2016 = vmatmul.mubr.bf16.gmra.mrb[0].mxu0 %v794
      %v2017 = vpop.f32.mrb[0].mxu0
      %v2018 = vadd.f32 %v1857, %v2017
      %v2019 = vpop.f32.mrb[0].mxu0
      %v2020 = vpop.f32.mrb[0].mxu0
      %v2021 = vadd.f32 %v1860, %v2020
      %v2022 = vpop.f32.mrb[0].mxu0
      %2023 = vmatprep.mubr.bf16.mxu0 %v804
      %2024 = vmatmul.mubr.bf16.gmra.mrb[0].mxu0 %v803
      %v2025 = vpop.f32.mrb[0].mxu0
      %v2026 = vadd.f32 %v1865, %v2025
      %v2027 = vpop.f32.mrb[0].mxu0
      %v2028 = vpop.f32.mrb[0].mxu0
      %v2029 = vadd.f32 %v1868, %v2028
      %v2030 = vpop.f32.mrb[0].mxu0
      %2031 = vmatprep.mubr.bf16.mxu0 %v813
      %2032 = vmatmul.mubr.bf16.gmra.mrb[0].mxu0 %v812
      %v2033 = vpop.f32.mrb[0].mxu0
      %v2034 = vadd.f32 %v1873, %v2033
      %v2035 = vpop.f32.mrb[0].mxu0
      %v2036 = vpop.f32.mrb[0].mxu0
      %v2037 = vadd.f32 %v1876, %v2036
      %v2038 = vpop.f32.mrb[0].mxu0
      %2039 = vmatprep.mubr.bf16.mxu0 %v822
      %2040 = vmatmul.mubr.bf16.gmra.mrb[0].mxu0 %v821
      %v2041 = vpop.f32.mrb[0].mxu0
      %v2042 = vadd.f32 %v1881, %v2041
      %v2043 = vpop.f32.mrb[0].mxu0
      %v2044 = vpop.f32.mrb[0].mxu0
      %v2045 = vadd.f32 %v1884, %v2044
      %v2046 = vpop.f32.mrb[0].mxu0
      %2047 = vmatprep.mubr.bf16.mxu0 %v831
      %2048 = vmatmul.mubr.bf16.gmra.mrb[0].mxu0 %v830
      %v2049 = vpop.f32.mrb[0].mxu0
      %v2050 = vadd.f32 %v1889, %v2049
      %v2051 = vpop.f32.mrb[0].mxu0
      %v2052 = vpop.f32.mrb[0].mxu0
      %v2053 = vadd.f32 %v1892, %v2052
      %v2054 = vpop.f32.mrb[0].mxu0
      %2055 = vmatprep.mubr.bf16.mxu0 %v840
      %2056 = vmatmul.mubr.bf16.gmra.mrb[0].mxu0 %v839
      %v2057 = vpop.f32.mrb[0].mxu0
      %v2058 = vadd.f32 %v1897, %v2057
      %v2059 = vpop.f32.mrb[0].mxu0
      %v2060 = vpop.f32.mrb[0].mxu0
      %v2061 = vadd.f32 %v1900, %v2060
      %v2062 = vpop.f32.mrb[0].mxu0
      %2063 = vmatprep.mubr.bf16.mxu0 %v849
      %2064 = vmatmul.mubr.bf16.gmra.mrb[0].mxu0 %v848
      %v2065 = vpop.f32.mrb[0].mxu0
      %v2066 = vadd.f32 %v1905, %v2065
      %v2067 = vpop.f32.mrb[0].mxu0
      %v2068 = vpop.f32.mrb[0].mxu0
      %v2069 = vadd.f32 %v1908, %v2068
      %v2070 = vpop.f32.mrb[0].mxu0
      %2071 = vmatprep.mubr.bf16.mxu0 %v858
      %2072 = vmatmul.mubr.bf16.gmra.mrb[0].mxu0 %v857
      %v2073 = vpop.f32.mrb[0].mxu0
      %v2074 = vadd.f32 %v1913, %v2073
      %v2075 = vpop.f32.mrb[0].mxu0
      %v2076 = vpop.f32.mrb[0].mxu0
      %v2077 = vadd.f32 %v1916, %v2076
      %v2078 = vpop.f32.mrb[0].mxu0
      %2079 = vdwg.mxu0
      %2080 = vmatprep.subr.bf16.mxu0 0
      %2081 = vmatpush1.bf16.msra.mxu0 %v1356
      %2082 = vmatprep.subr.bf16.mxu0 0
      %2083 = vmatpush1.bf16.msra.mxu0 %v1357
      %2084 = vmatprep.subr.bf16.mxu0 0
      %2085 = vmatpush1.bf16.msra.mxu0 %v1358
      %2086 = vmatprep.subr.bf16.mxu0 0
      %2087 = vmatpush1.bf16.msra.mxu0 %v1359
      %2088 = vmatprep.subr.bf16.mxu0 0
      %2089 = vmatpush1.bf16.msra.mxu0 %v1360
      %2090 = vmatprep.subr.bf16.mxu0 0
      %2091 = vmatpush1.bf16.msra.mxu0 %v1361
      %2092 = vmatprep.subr.bf16.mxu0 0
      %2093 = vmatpush1.bf16.msra.mxu0 %v1362
      %2094 = vmatprep.subr.bf16.mxu0 0
      %2095 = vmatpush1.bf16.msra.mxu0 %v1363
      %2096 = vmatprep.subr.bf16.mxu0 0
      %2097 = vmatpush1.bf16.msra.mxu0 0
      %2098 = vmatprep.subr.bf16.mxu0 0
      %2099 = vmatpush1.bf16.msra.mxu0 0
      %2100 = vmatprep.subr.bf16.mxu0 0
      %2101 = vmatpush1.bf16.msra.mxu0 0
      %2102 = vmatprep.subr.bf16.mxu0 0
      %2103 = vmatpush1.bf16.msra.mxu0 0
      %2104 = vmatprep.subr.bf16.mxu0 0
      %2105 = vmatpush1.bf16.msra.mxu0 0
      %2106 = vmatprep.subr.bf16.mxu0 0
      %2107 = vmatpush1.bf16.msra.mxu0 0
      %2108 = vmatprep.subr.bf16.mxu0 0
      %2109 = vmatpush1.bf16.msra.mxu0 0
      %2110 = vmatprep.subr.bf16.mxu0 0
      %2111 = vmatpush1.bf16.msra.mxu0 0
      %2112 = vmatprep.mubr.bf16.mxu0 0
      %2113 = vmatmul.mubr.bf16.gmra.mrb[0].mxu0 %v724
      %v2114 = vpop.f32.mrb[0].mxu0
      %v2115 = vadd.f32 %v1954, %v2114
      %v2116 = vpop.f32.mrb[0].mxu0
      %v2117 = vpop.f32.mrb[0].mxu0
      %v2118 = vadd.f32 %v1957, %v2117
      %v2119 = vpop.f32.mrb[0].mxu0
      %2120 = vmatprep.mubr.bf16.mxu0 0
      %2121 = vmatmul.mubr.bf16.gmra.mrb[0].mxu0 %v733
      %v2122 = vpop.f32.mrb[0].mxu0
      %v2123 = vadd.f32 %v1962, %v2122
      %v2124 = vpop.f32.mrb[0].mxu0
      %v2125 = vpop.f32.mrb[0].mxu0
      %v2126 = vadd.f32 %v1965, %v2125
      %v2127 = vpop.f32.mrb[0].mxu0
      %2128 = vmatprep.mubr.bf16.mxu0 0
      %2129 = vmatmul.mubr.bf16.gmra.mrb[0].mxu0 %v742
      %v2130 = vpop.f32.mrb[0].mxu0
      %v2131 = vadd.f32 %v1970, %v2130
      %v2132 = vpop.f32.mrb[0].mxu0
      %v2133 = vpop.f32.mrb[0].mxu0
      %v2134 = vadd.f32 %v1973, %v2133
      %v2135 = vpop.f32.mrb[0].mxu0
      %2136 = vmatprep.mubr.bf16.mxu0 0
      %2137 = vmatmul.mubr.bf16.gmra.mrb[0].mxu0 %v751
      %v2138 = vpop.f32.mrb[0].mxu0
      %v2139 = vadd.f32 %v1978, %v2138
      %v2140 = vpop.f32.mrb[0].mxu0
      %v2141 = vpop.f32.mrb[0].mxu0
      %v2142 = vadd.f32 %v1981, %v2141
      %v2143 = vpop.f32.mrb[0].mxu0
      %2144 = vmatprep.mubr.bf16.mxu0 0
      %2145 = vmatmul.mubr.bf16.gmra.mrb[0].mxu0 %v760
      %v2146 = vpop.f32.mrb[0].mxu0
      %v2147 = vadd.f32 %v1986, %v2146
      %v2148 = vpop.f32.mrb[0].mxu0
      %v2149 = vpop.f32.mrb[0].mxu0
      %v2150 = vadd.f32 %v1989, %v2149
      %v2151 = vpop.f32.mrb[0].mxu0
      %2152 = vmatprep.mubr.bf16.mxu0 0
      %2153 = vmatmul.mubr.bf16.gmra.mrb[0].mxu0 %v769
      %v2154 = vpop.f32.mrb[0].mxu0
      %v2155 = vadd.f32 %v1994, %v2154
      %v2156 = vpop.f32.mrb[0].mxu0
      %v2157 = vpop.f32.mrb[0].mxu0
      %v2158 = vadd.f32 %v1997, %v2157
      %v2159 = vpop.f32.mrb[0].mxu0
      %2160 = vmatprep.mubr.bf16.mxu0 0
      %2161 = vmatmul.mubr.bf16.gmra.mrb[0].mxu0 %v778
      %v2162 = vpop.f32.mrb[0].mxu0
      %v2163 = vadd.f32 %v2002, %v2162
      %v2164 = vpop.f32.mrb[0].mxu0
      %v2165 = vpop.f32.mrb[0].mxu0
      %v2166 = vadd.f32 %v2005, %v2165
      %v2167 = vpop.f32.mrb[0].mxu0
      %2168 = vmatprep.mubr.bf16.mxu0 0
      %2169 = vmatmul.mubr.bf16.gmra.mrb[0].mxu0 %v787
      %v2170 = vpop.f32.mrb[0].mxu0
      %v2171 = vadd.f32 %v2010, %v2170
      %v2172 = vpop.f32.mrb[0].mxu0
      %v2173 = vpop.f32.mrb[0].mxu0
      %v2174 = vadd.f32 %v2013, %v2173
      %v2175 = vpop.f32.mrb[0].mxu0
      %2176 = vmatprep.mubr.bf16.mxu0 0
      %2177 = vmatmul.mubr.bf16.gmra.mrb[0].mxu0 %v796
      %v2178 = vpop.f32.mrb[0].mxu0
      %v2179 = vadd.f32 %v2018, %v2178
      %v2180 = vpop.f32.mrb[0].mxu0
      %v2181 = vpop.f32.mrb[0].mxu0
      %v2182 = vadd.f32 %v2021, %v2181
      %v2183 = vpop.f32.mrb[0].mxu0
      %2184 = vmatprep.mubr.bf16.mxu0 0
      %2185 = vmatmul.mubr.bf16.gmra.mrb[0].mxu0 %v805
      %v2186 = vpop.f32.mrb[0].mxu0
      %v2187 = vadd.f32 %v2026, %v2186
      %v2188 = vpop.f32.mrb[0].mxu0
      %v2189 = vpop.f32.mrb[0].mxu0
      %v2190 = vadd.f32 %v2029, %v2189
      %v2191 = vpop.f32.mrb[0].mxu0
      %2192 = vmatprep.mubr.bf16.mxu0 0
      %2193 = vmatmul.mubr.bf16.gmra.mrb[0].mxu0 %v814
      %v2194 = vpop.f32.mrb[0].mxu0
      %v2195 = vadd.f32 %v2034, %v2194
      %v2196 = vpop.f32.mrb[0].mxu0
      %v2197 = vpop.f32.mrb[0].mxu0
      %v2198 = vadd.f32 %v2037, %v2197
      %v2199 = vpop.f32.mrb[0].mxu0
      %2200 = vmatprep.mubr.bf16.mxu0 0
      %2201 = vmatmul.mubr.bf16.gmra.mrb[0].mxu0 %v823
      %v2202 = vpop.f32.mrb[0].mxu0
      %v2203 = vadd.f32 %v2042, %v2202
      %v2204 = vpop.f32.mrb[0].mxu0
      %v2205 = vpop.f32.mrb[0].mxu0
      %v2206 = vadd.f32 %v2045, %v2205
      %v2207 = vpop.f32.mrb[0].mxu0
      %2208 = vmatprep.mubr.bf16.mxu0 0
      %2209 = vmatmul.mubr.bf16.gmra.mrb[0].mxu0 %v832
      %v2210 = vpop.f32.mrb[0].mxu0
      %v2211 = vadd.f32 %v2050, %v2210
      %v2212 = vpop.f32.mrb[0].mxu0
      %v2213 = vpop.f32.mrb[0].mxu0
      %v2214 = vadd.f32 %v2053, %v2213
      %v2215 = vpop.f32.mrb[0].mxu0
      %2216 = vmatprep.mubr.bf16.mxu0 0
      %2217 = vmatmul.mubr.bf16.gmra.mrb[0].mxu0 %v841
      %v2218 = vpop.f32.mrb[0].mxu0
      %v2219 = vadd.f32 %v2058, %v2218
      %v2220 = vpop.f32.mrb[0].mxu0
      %v2221 = vpop.f32.mrb[0].mxu0
      %v2222 = vadd.f32 %v2061, %v2221
      %v2223 = vpop.f32.mrb[0].mxu0
      %2224 = vmatprep.mubr.bf16.mxu0 0
      %2225 = vmatmul.mubr.bf16.gmra.mrb[0].mxu0 %v850
      %v2226 = vpop.f32.mrb[0].mxu0
      %v2227 = vadd.f32 %v2066, %v2226
      %v2228 = vpop.f32.mrb[0].mxu0
      %v2229 = vpop.f32.mrb[0].mxu0
      %v2230 = vadd.f32 %v2069, %v2229
      %v2231 = vpop.f32.mrb[0].mxu0
      %2232 = vmatprep.mubr.bf16.mxu0 0
      %2233 = vmatmul.mubr.bf16.gmra.mrb[0].mxu0 %v859
      %v2234 = vpop.f32.mrb[0].mxu0
      %v2235 = vadd.f32 %v2074, %v2234
      %v2236 = vpop.f32.mrb[0].mxu0
      %v2237 = vpop.f32.mrb[0].mxu0
      %v2238 = vadd.f32 %v2077, %v2237
      %v2239 = vpop.f32.mrb[0].mxu0
      %2240 = vdwg.mxu0
      %2241 = vst [vmem:[%s195] sm:$0xff] %v2115
      %2242 = vst [vmem:[%s195 + $0x8] sm:$0xff] %v2118
      %2243 = vst [vmem:[%s195 + $0x10] sm:$0xff] %v2123
      %2244 = vst [vmem:[%s195 + $0x18] sm:$0xff] %v2126
      %2245 = vst [vmem:[%s195 + $0x20] sm:$0xff] %v2131
      %2246 = vst [vmem:[%s195 + $0x28] sm:$0xff] %v2134
      %2247 = vst [vmem:[%s195 + $0x30] sm:$0xff] %v2139
      %2248 = vst [vmem:[%s195 + $0x38] sm:$0xff] %v2142
      %2249 = vst [vmem:[%s195 + $0x40] sm:$0xff] %v2147
      %2250 = vst [vmem:[%s195 + $0x48] sm:$0xff] %v2150
      %2251 = vst [vmem:[%s195 + $0x50] sm:$0xff] %v2155
      %2252 = vst [vmem:[%s195 + $0x58] sm:$0xff] %v2158
      %2253 = vst [vmem:[%s195 + $0x60] sm:$0xff] %v2163
      %2254 = vst [vmem:[%s195 + $0x68] sm:$0xff] %v2166
      %2255 = vst [vmem:[%s195 + $0x70] sm:$0xff] %v2171
      %2256 = vst [vmem:[%s195 + $0x78] sm:$0xff] %v2174
      %2257 = vst [vmem:[%s195 + $0x80] sm:$0xff] %v2179
      %2258 = vst [vmem:[%s195 + $0x88] sm:$0xff] %v2182
      %2259 = vst [vmem:[%s195 + $0x90] sm:$0xff] %v2187
      %2260 = vst [vmem:[%s195 + $0x98] sm:$0xff] %v2190
      %2261 = vst [vmem:[%s195 + $0xa0] sm:$0xff] %v2195
      %2262 = vst [vmem:[%s195 + $0xa8] sm:$0xff] %v2198
      %2263 = vst [vmem:[%s195 + $0xb0] sm:$0xff] %v2203
      %2264 = vst [vmem:[%s195 + $0xb8] sm:$0xff] %v2206
      %2265 = vst [vmem:[%s195 + $0xc0] sm:$0xff] %v2211
      %2266 = vst [vmem:[%s195 + $0xc8] sm:$0xff] %v2214
      %2267 = vst [vmem:[%s195 + $0xd0] sm:$0xff] %v2219
      %2268 = vst [vmem:[%s195 + $0xd8] sm:$0xff] %v2222
      %2269 = vst [vmem:[%s195 + $0xe0] sm:$0xff] %v2227
      %2270 = vst [vmem:[%s195 + $0xe8] sm:$0xff] %v2230
      %2271 = vst [vmem:[%s195 + $0xf0] sm:$0xff] %v2235
      %2272 = vst [vmem:[%s195 + $0xf8] sm:$0xff] %v2238
      %v2273 = vld [vmem:[%s4] sm:$0x3]
      %v2274 = vadd.f32 %v2115, %v2118
      %v2275 = vadd.f32 %v2274, %v2123
      %v2276 = vadd.f32 %v2275, %v2126
      %v2277 = vadd.f32 %v2276, %v2131
      %v2278 = vadd.f32 %v2277, %v2134
      %v2279 = vadd.f32 %v2278, %v2139
      %v2280 = vadd.f32 %v2279, %v2142
      %v2281 = vadd.f32 %v2280, %v2147
      %v2282 = vadd.f32 %v2281, %v2150
      %v2283 = vadd.f32 %v2282, %v2155
      %v2284 = vadd.f32 %v2283, %v2158
      %v2285 = vadd.f32 %v2284, %v2163
      %v2286 = vadd.f32 %v2285, %v2166
      %v2287 = vadd.f32 %v2286, %v2171
      %v2288 = vadd.f32 %v2287, %v2174
      %v2289 = vadd.f32 %v2288, %v2179
      %v2290 = vadd.f32 %v2289, %v2182
      %v2291 = vadd.f32 %v2290, %v2187
      %v2292 = vadd.f32 %v2291, %v2190
      %v2293 = vadd.f32 %v2292, %v2195
      %v2294 = vadd.f32 %v2293, %v2198
      %v2295 = vadd.f32 %v2294, %v2203
      %v2296 = vadd.f32 %v2295, %v2206
      %v2297 = vadd.f32 %v2296, %v2211
      %v2298 = vadd.f32 %v2297, %v2214
      %v2299 = vadd.f32 %v2298, %v2219
      %v2300 = vadd.f32 %v2299, %v2222
      %v2301 = vadd.f32 %v2300, %v2227
      %v2302 = vadd.f32 %v2301, %v2230
      %v2303 = vadd.f32 %v2302, %v2235
      %v2304 = vadd.f32 %v2303, %v2238
      %v2305 = vrot.slane %v2304, 4
      %v2306 = vadd.f32 %v2304, %v2305
      %v2307 = vrot.slane %v2306, 2
      %v2308 = vadd.f32 %v2306, %v2307
      %v2309 = vrot.slane %v2308, 1
      %v2310 = vadd.f32 %v2308, %v2309
      %v2311 = vmul.f32 %v2115, %v2115
      %v2312 = vmul.f32 %v2118, %v2118
      %v2313 = vmul.f32 %v2123, %v2123
      %v2314 = vmul.f32 %v2126, %v2126
      %v2315 = vmul.f32 %v2131, %v2131
      %v2316 = vmul.f32 %v2134, %v2134
      %v2317 = vmul.f32 %v2139, %v2139
      %v2318 = vmul.f32 %v2142, %v2142
      %v2319 = vmul.f32 %v2147, %v2147
      %v2320 = vmul.f32 %v2150, %v2150
      %v2321 = vmul.f32 %v2155, %v2155
      %v2322 = vmul.f32 %v2158, %v2158
      %v2323 = vmul.f32 %v2163, %v2163
      %v2324 = vmul.f32 %v2166, %v2166
      %v2325 = vmul.f32 %v2171, %v2171
      %v2326 = vmul.f32 %v2174, %v2174
      %v2327 = vmul.f32 %v2179, %v2179
      %v2328 = vmul.f32 %v2182, %v2182
      %v2329 = vmul.f32 %v2187, %v2187
      %v2330 = vmul.f32 %v2190, %v2190
      %v2331 = vmul.f32 %v2195, %v2195
      %v2332 = vmul.f32 %v2198, %v2198
      %v2333 = vmul.f32 %v2203, %v2203
      %v2334 = vmul.f32 %v2206, %v2206
      %v2335 = vmul.f32 %v2211, %v2211
      %v2336 = vmul.f32 %v2214, %v2214
      %v2337 = vmul.f32 %v2219, %v2219
      %v2338 = vmul.f32 %v2222, %v2222
      %v2339 = vmul.f32 %v2227, %v2227
      %v2340 = vmul.f32 %v2230, %v2230
      %v2341 = vmul.f32 %v2235, %v2235
      %v2342 = vmul.f32 %v2238, %v2238
      %v2343 = vadd.f32 %v2311, %v2312
      %v2344 = vadd.f32 %v2343, %v2313
      %v2345 = vadd.f32 %v2344, %v2314
      %v2346 = vadd.f32 %v2345, %v2315
      %v2347 = vadd.f32 %v2346, %v2316
      %v2348 = vadd.f32 %v2347, %v2317
      %v2349 = vadd.f32 %v2348, %v2318
      %v2350 = vadd.f32 %v2349, %v2319
      %v2351 = vadd.f32 %v2350, %v2320
      %v2352 = vadd.f32 %v2351, %v2321
      %v2353 = vadd.f32 %v2352, %v2322
      %v2354 = vadd.f32 %v2353, %v2323
      %v2355 = vadd.f32 %v2354, %v2324
      %v2356 = vadd.f32 %v2355, %v2325
      %v2357 = vadd.f32 %v2356, %v2326
      %v2358 = vadd.f32 %v2357, %v2327
      %v2359 = vadd.f32 %v2358, %v2328
      %v2360 = vadd.f32 %v2359, %v2329
      %v2361 = vadd.f32 %v2360, %v2330
      %v2362 = vadd.f32 %v2361, %v2331
      %v2363 = vadd.f32 %v2362, %v2332
      %v2364 = vadd.f32 %v2363, %v2333
      %v2365 = vadd.f32 %v2364, %v2334
      %v2366 = vadd.f32 %v2365, %v2335
      %v2367 = vadd.f32 %v2366, %v2336
      %v2368 = vadd.f32 %v2367, %v2337
      %v2369 = vadd.f32 %v2368, %v2338
      %v2370 = vadd.f32 %v2369, %v2339
      %v2371 = vadd.f32 %v2370, %v2340
      %v2372 = vadd.f32 %v2371, %v2341
      %v2373 = vadd.f32 %v2372, %v2342
      %v2374 = vrot.slane %v2373, 4
      %v2375 = vadd.f32 %v2373, %v2374
      %v2376 = vrot.slane %v2375, 2
      %v2377 = vadd.f32 %v2375, %v2376
      %v2378 = vrot.slane %v2377, 1
      %v2379 = vadd.f32 %v2377, %v2378
      %vm2380 = vcmask 1040384
      %v2381 = vsel %vm2380, %v2310, %v2379
      %v2382 = vadd.f32 %v2273, %v2381
      %2383 = vst [vmem:[%s4] sm:$0x3] %v2382
      %p2384 = scmp.lt.s32.totalorder %s16, 1
      %s2385 = scalar_select %p2384, %s16, 1
      %s2386 = smul.addr %s2385, 32
      %s2387 = smul.addr %s2386, 8
      %s2388 = scalar_lea.vmem %s3, %s2387
      // Predicated region
      $region37: #{block_forward.4} parent=31 // pred_check
        %p2389 = pneg %p102
      $region38: #{block_forward.4} parent=31 // pred_check_branch
        %2391 = sbr.rel (%p2389) target = $region40
      $region39: #{block_forward.4} parent=31 // pred_region
        _
      $region40: #{block_forward.4} parent=31 // pred_fallthru
        _
      // Predicated region
      $region41: #{block_forward.4} parent=31 // pred_check
        %p2392 = pneg %p123
      $region42: #{block_forward.4} parent=31 // pred_check_branch
        %2394 = sbr.rel (%p2392) target = $region44
      $region43: #{block_forward.4} parent=31 // pred_region
        _
      $region44: #{block_forward.4} parent=31 // pred_fallthru
        _
      // Predicated region
      $region45: #{block_forward.4} parent=31 // pred_check
        %p2395 = pneg %p123
      $region46: #{block_forward.4} parent=31 // pred_check_branch
        %2397 = sbr.rel (%p2395) target = $region48
      $region47: #{block_forward.4} parent=31 // pred_region
        _
      $region48: #{block_forward.4} parent=31 // pred_fallthru
        _
    $region32: #{block_forward.4} parent=5 // pred_fallthru
      _
    %p2398 = scmp.le.s32.totalorder 2, %s11
    // Predicated region
    $region49: #{block_forward.4} parent=5 // pred_check
      %p2399 = pneg %p2398
    $region50: #{block_forward.4} parent=5 // pred_check_branch
      %2401 = sbr.rel (%p2399) target = $region52
    $region51: #{block_forward.4} parent=5 // pred_region
      %s2402 = ssub.s32 %s11, 2
      // Predicated region
      $region53: #{block_forward.4} parent=51 // pred_check
        %p2403 = pneg %p108
      $region54: #{block_forward.4} parent=51 // pred_check_branch
        %2405 = sbr.rel (%p2403) target = $region56
      $region55: #{block_forward.4} parent=51 // pred_region
        %p2406 = scmp.lt.s32.totalorder %s17, 1
        %s2407 = scalar_select %p2406, %s17, 1
        %s2408 = smul.addr %s2407, 32
        %s2409 = smul.addr %s2408, 8
        %s2410 = scalar_lea.vmem %s3, %s2409
      $region56: #{block_forward.4} parent=51 // pred_fallthru
        _
    $region52: #{block_forward.4} parent=5 // pred_fallthru
      _
  $region6: #{block_forward.4} parent=0 // loop_footer
    %s15 = sadd.s32 1, %s11
  $region7: #{block_forward.4} parent=0 // loop_footer_branch
    %10 = sbr.rel target = $region3
  $region8: #{block_forward.4} parent=0 // loop_exit
    _

</llo_original>
